<compile_context>
chip_gen: v7x
topology: tpu7x:2x2x1
jax: 0.10.0
libtpu: 0.0.40
codegen_flags: <defaults>
</compile_context>

<pallas_src>
import numpy as np
import jax
import jax.numpy as jnp
from jax.experimental import pallas as pl
from jax.experimental.pallas import tpu as pltpu

PHI = 1.618033988749895
LN_EPS = 1e-5


# ----------------------------- in-kernel math helpers -----------------------------
def _layernorm(h, gamma, beta, inv_n):
    # Single-pass LN (sum + sum-of-squares). Padded lanes are exactly zero and
    # padded gamma/beta are zero, so they contribute nothing; divide by the REAL
    # feature count, not the padded width.
    s = jnp.sum(h, axis=-1, keepdims=True)
    ss = jnp.sum(h * h, axis=-1, keepdims=True)
    mu = s * inv_n
    var = ss * inv_n - mu * mu
    return (h - mu) * jax.lax.rsqrt(var + LN_EPS) * gamma + beta


def _gelu_exact(h):
    return 0.5 * h * (1.0 + jax.lax.erf(h * (1.0 / np.sqrt(2.0))))


# ----------------------------------- kernel ---------------------------------------
def make_fractal_kernel(n_iterations, c_real, wd_real, wd_pad):
    inv_c = 1.0 / c_real
    inv_wd = 1.0 / wd_real
    final_scale = PHI ** max(n_iterations - 1, 0)

    def kernel(x_ref, wc_ref, wcat_ref, wh1w_ref, wh2_ref,
               vecs_ref, ivecs_ref, out_ref):
        # Packed 1-row parameters (cheap to hoist; weights stay in VMEM and are
        # read at the dot sites to keep vreg pressure low across the unrolled loop).
        bc = vecs_ref[0:1, :]
        gc = vecs_ref[1:2, :]
        betac = vecs_ref[2:3, :]
        bh1 = vecs_ref[3:4, :]
        gh = vecs_ref[4:5, :]
        betah = vecs_ref[5:6, :]
        bh2 = vecs_ref[6:7, :]

        # consciousness_transform: Linear -> LayerNorm -> GELU
        c = jnp.dot(x_ref[...], wc_ref[...],
                    preferred_element_type=jnp.float32) + bc
        h = _gelu_exact(_layernorm(c, gc, betac, inv_c))

        # Fractal evolution loop (static small trip count -> unrolled).
        # Wh2 (+ phi**(i-1)) of the previous iteration is pre-folded into wcat[i],
        # so each iteration is 2 serial MXU passes instead of 3.
        for i in range(n_iterations):
            iv = ivecs_ref[i]                       # (8, Wd_p + C_p), short-lived
            cw = jnp.dot(h, wcat_ref[i],
                         preferred_element_type=jnp.float32) + iv[0:1, :]

            # wavelength_modulators[i]: LayerNorm -> Tanh
            w = jnp.tanh(_layernorm(cw[:, :wd_pad],
                                    iv[1:2, :wd_pad], iv[2:3, :wd_pad], inv_wd))

            # holographic_integrator[0..2]: Linear(cat[c, w]) -> LN -> GELU
            h = cw[:, wd_pad:] + jnp.dot(w, wh1w_ref[...],
                                         preferred_element_type=jnp.float32) + bh1
            h = _gelu_exact(_layernorm(h, gh, betah, inv_c))

        if n_iterations == 0:
            out_ref[...] = h
        else:
            # holographic_integrator[3] of the LAST iteration + phi**(n-1) scale.
            out_ref[...] = (jnp.dot(h, wh2_ref[...],
                                    preferred_element_type=jnp.float32)
                            + bh2) * final_scale

    return kernel


# ---------------------------------- wrapper ----------------------------------------
def _round_up(n, m):
    return ((n + m - 1) // m) * m


def _pad_axis(a, axis, target):
    pad = target - a.shape[axis]
    if pad <= 0:
        return a
    widths = [(0, 0)] * a.ndim
    widths[axis] = (0, pad)
    return jnp.pad(a, widths)


def fractal_consciousness_pallas(x, params, n_iterations):
    B, in_dim = x.shape
    C = params["wc"].shape[1]
    Wd = params["ww"].shape[2]

    LANE, SUB = 128, 8
    in_p = _round_up(in_dim, LANE)
    c_p = _round_up(C, LANE)
    wd_p = _round_up(Wd, LANE)
    wc_p = wd_p + c_p
    HIGH = jax.lax.Precision.HIGHEST

    # Batch tiling: >=2 grid steps whenever B > 8 so the "parallel" batch axis can
    # shard across v7x's two TensorCores; tile capped at 512 rows to amortize the
    # ~0.35us per-grid-step overhead on v5e/v6e without VMEM pressure.
    if B <= SUB:
        tile_b = _round_up(B, SUB)
    else:
        tile_b = min(512, _round_up(pl.cdiv(B, 2), SUB))
    b_p = _round_up(B, tile_b)
    grid = (b_p // tile_b,)

    # ---- lane-dense zero padding. Padded LN gamma/beta are zero, so padded lanes
    # stay exactly 0 through LN/GELU/Tanh; all padded weight rows/cols are zero.
    xp = _pad_axis(_pad_axis(x, 1, in_p), 0, b_p)

    wc = _pad_axis(_pad_axis(params["wc"], 0, in_p), 1, c_p)
    ww = _pad_axis(_pad_axis(params["ww"], 1, c_p), 2, wd_p)        # (n, C_p, Wd_p)
    wh1c = _pad_axis(_pad_axis(params["wh1c"], 0, c_p), 1, c_p)     # (C_p, C_p)
    wh1w = _pad_axis(_pad_axis(params["wh1w"], 0, wd_p), 1, c_p)    # (Wd_p, C_p)
    wh2 = _pad_axis(_pad_axis(params["wh2"], 0, c_p), 1, c_p)       # (C_p, C_p)
    bh2 = _pad_axis(params["bh2"], 1, c_p)                          # (1, C_p)
    bw = _pad_axis(params["bw"], 1, wd_p)                           # (n, Wd_p)

    # Per-iteration fused weights:
    #   i == 0 : wcat[0] = [Ww[0] | Wh1_c],           bcat[0] = [bw[0] | 0]
    #   i >= 1 : wcat[i] = phi**(i-1) * Wh2 @ [Ww[i] | Wh1_c]
    #            bcat[i] = [bw[i] | 0] + phi**(i-1) * bh2 @ [Ww[i] | Wh1_c]
    # Fusion is computed on the already-zero-padded matrices, preserving the
    # padded-lane-is-zero invariant.
    # TODO(synk): for large C/Wd/n_iter where wcat no longer fits VMEM (v7x: 64 MiB
    # physical), stream wcat[i] per iteration via manual double-buffered
    # pltpu.make_async_copy from a pl.ANY HBM operand instead of a resident block.
    zeros_c = jnp.zeros((1, c_p), jnp.float32)
    if n_iterations == 0:
        wcat = jnp.zeros((1, c_p, wc_p), jnp.float32)
        ivecs = jnp.zeros((1, 8, wc_p), jnp.float32)
    else:
        wcat_list, bcat_list = [], []
        for i in range(n_iterations):
            base_i = jnp.concatenate([ww[i], wh1c], axis=1)         # (C_p, WC_p)
            b_i = jnp.concatenate([bw[i:i + 1], zeros_c], axis=1)   # (1, WC_p)
            if i == 0:
                wcat_list.append(base_i)
                bcat_list.append(b_i)
            else:
                s = PHI ** (i - 1)
                wcat_list.append(s * jnp.dot(wh2, base_i, precision=HIGH))
                bcat_list.append(b_i + s * jnp.dot(bh2, base_i, precision=HIGH))
        wcat = jnp.stack(wcat_list)                                 # (n, C_p, WC_p)
        bcat = jnp.concatenate(bcat_list, axis=0)                   # (n, WC_p)

        ivecs = jnp.zeros((n_iterations, 8, wc_p), jnp.float32)
        ivecs = ivecs.at[:, 0, :].set(bcat)
        ivecs = ivecs.at[:, 1, :].set(_pad_axis(params["gw"], 1, wc_p))
        ivecs = ivecs.at[:, 2, :].set(_pad_axis(params["betaw"], 1, wc_p))

    # Packed 1-row parameters -> one (8, C_p) slab.
    def row(p):
        return _pad_axis(p, 1, c_p)[0]

    vecs = jnp.zeros((8, c_p), jnp.float32)
    vecs = vecs.at[0].set(row(params["bc"]))
    vecs = vecs.at[1].set(row(params["gc"]))
    vecs = vecs.at[2].set(row(params["betac"]))
    vecs = vecs.at[3].set(row(params["bh1"]))
    vecs = vecs.at[4].set(row(params["gh"]))
    vecs = vecs.at[5].set(row(params["betah"]))
    vecs = vecs.at[6].set(row(params["bh2"]))

    inputs = (xp, wc, wcat, wh1w, wh2, vecs, ivecs)

    def tile_spec(shape):       # batch-tiled operand
        nd = len(shape)
        return pl.BlockSpec(shape, lambda b, _nd=nd: (b,) + (0,) * (_nd - 1))

    def full_spec(shape):       # whole-array operand, same block every grid step
        nd = len(shape)
        return pl.BlockSpec(shape, lambda b, _nd=nd: (0,) * _nd)

    in_specs = [tile_spec((tile_b, in_p))] + [full_spec(a.shape) for a in inputs[1:]]

    out = pl.pallas_call(
        make_fractal_kernel(n_iterations, C, Wd, wd_p),
        out_shape=jax.ShapeDtypeStruct((b_p, c_p), jnp.float32),
        grid=grid,
        in_specs=in_specs,
        out_specs=tile_spec((tile_b, c_p)),
        compiler_params=pltpu.CompilerParams(
            dimension_semantics=("parallel",)),
    )(*inputs)

    return out[:B, :C]


# ----------------------- pure-JAX reference (for checking) -------------------------
def _layernorm_ref(h, gamma, beta):
    mu = jnp.mean(h, axis=-1, keepdims=True)
    var = jnp.mean((h - mu) ** 2, axis=-1, keepdims=True)
    return (h - mu) * jax.lax.rsqrt(var + LN_EPS) * gamma + beta


def fractal_consciousness_ref(x, params, n_iterations):
    c = x @ params["wc"] + params["bc"]
    c = _gelu_exact(_layernorm_ref(c, params["gc"], params["betac"]))
    for i in range(n_iterations):
        w = c @ params["ww"][i] + params["bw"][i][None, :]
        w = jnp.tanh(_layernorm_ref(w, params["gw"][i][None, :],
                                    params["betaw"][i][None, :]))
        h = c @ params["wh1c"] + w @ params["wh1w"] + params["bh1"]
        h = _gelu_exact(_layernorm_ref(h, params["gh"], params["betah"]))
        e = h @ params["wh2"] + params["bh2"]
        c = e * (PHI ** i)
    return c


# ----------------------- deterministic parameter construction ----------------------
def init_params(key, input_dim, consciousness_dim, wavelength_dim, n_iterations):
    def linear(k, fan_in, fan_out):
        k1, k2 = jax.random.split(k)
        bound = 1.0 / np.sqrt(fan_in)
        W = jax.random.uniform(k1, (fan_in, fan_out), jnp.float32, -bound, bound)
        b = jax.random.uniform(k2, (1, fan_out), jnp.float32, -bound, bound)
        return W, b

    keys = jax.random.split(key, 3 + n_iterations)
    C, Wd = consciousness_dim, wavelength_dim

    wc, bc = linear(keys[0], input_dim, C)

    ww, bw = [], []
    for i in range(n_iterations):
        Wi, bi = linear(keys[3 + i], C, Wd)
        ww.append(Wi)
        bw.append(bi[0])
    ww = jnp.stack(ww)          # (n_iter, C, Wd)
    bw = jnp.stack(bw)          # (n_iter, Wd)

    wh1, bh1 = linear(keys[1], C + Wd, C)   # cat order: [consciousness, wavelength]
    wh1c, wh1w = wh1[:C, :], wh1[C:, :]
    wh2, bh2 = linear(keys[2], C, C)

    ones_c = jnp.ones((1, C), jnp.float32)
    zeros_c = jnp.zeros((1, C), jnp.float32)
    return {
        "wc": wc, "bc": bc, "gc": ones_c, "betac": zeros_c,
        "ww": ww, "bw": bw,
        "gw": jnp.ones((n_iterations, Wd), jnp.float32),
        "betaw": jnp.zeros((n_iterations, Wd), jnp.float32),
        "wh1c": wh1c, "wh1w": wh1w, "bh1": bh1, "gh": ones_c, "betah": zeros_c,
        "wh2": wh2, "bh2": bh2,
    }


if __name__ == "__main__":
    batch = 8
    input_dim = 16
    consciousness_dim = 32
    wavelength_dim = 32
    n_iterations = 8

    key = jax.random.PRNGKey(0)
    kx, kp = jax.random.split(key)
    x = jax.random.normal(kx, (batch, input_dim), jnp.float32)
    params = init_params(kp, input_dim, consciousness_dim, wavelength_dim, n_iterations)

    out = fractal_consciousness_pallas(x, params, n_iterations)
    out = jax.block_until_ready(out)

    ref = fractal_consciousness_ref(x, params, n_iterations)
    np.testing.assert_allclose(np.asarray(out), np.asarray(ref), rtol=1e-3, atol=1e-3)

    print("KERNEL_OK")
</pallas_src>

<mosaic_0001>
module attributes {stable_mosaic.version = 11 : i64} {
  func.func @kernel(%arg0: i32, %arg1: memref<8x128xf32, #tpu.memory_space<vmem>>, %arg2: memref<128x128xf32, #tpu.memory_space<vmem>>, %arg3: memref<8x128x256xf32, #tpu.memory_space<vmem>>, %arg4: memref<128x128xf32, #tpu.memory_space<vmem>>, %arg5: memref<128x128xf32, #tpu.memory_space<vmem>>, %arg6: memref<8x128xf32, #tpu.memory_space<vmem>>, %arg7: memref<8x8x256xf32, #tpu.memory_space<vmem>>, %arg8: memref<8x128xf32, #tpu.memory_space<vmem>>) attributes {dimension_semantics = [#tpu.dimension_semantics<parallel>], iteration_bounds = array<i64: 1>, scalar_prefetch = 0 : i64, scratch_operands = 0 : i64, tpu.core_type = #tpu.core_type<tc>, window_params = [{transform_indices = @transform_0, window_bounds = array<i64: 8, 128>}, {pipeline_mode = #tpu.pipeline_mode<synchronous>, transform_indices = @transform_1, window_bounds = array<i64: 128, 128>}, {pipeline_mode = #tpu.pipeline_mode<synchronous>, transform_indices = @transform_2, window_bounds = array<i64: 8, 128, 256>}, {pipeline_mode = #tpu.pipeline_mode<synchronous>, transform_indices = @transform_3, window_bounds = array<i64: 128, 128>}, {pipeline_mode = #tpu.pipeline_mode<synchronous>, transform_indices = @transform_4, window_bounds = array<i64: 128, 128>}, {pipeline_mode = #tpu.pipeline_mode<synchronous>, transform_indices = @transform_5, window_bounds = array<i64: 8, 128>}, {pipeline_mode = #tpu.pipeline_mode<synchronous>, transform_indices = @transform_6, window_bounds = array<i64: 8, 8, 256>}, {transform_indices = @transform_7, window_bounds = array<i64: 8, 128>}]} {
    %c0 = arith.constant 0 : index
    %c0_0 = arith.constant 0 : index
    %0 = vector.load %arg6[%c0, %c0_0] : memref<8x128xf32, #tpu.memory_space<vmem>>, vector<1x128xf32>
    %c1 = arith.constant 1 : index
    %c0_1 = arith.constant 0 : index
    %1 = vector.load %arg6[%c1, %c0_1] : memref<8x128xf32, #tpu.memory_space<vmem>>, vector<1x128xf32>
    %c2 = arith.constant 2 : index
    %c0_2 = arith.constant 0 : index
    %2 = vector.load %arg6[%c2, %c0_2] : memref<8x128xf32, #tpu.memory_space<vmem>>, vector<1x128xf32>
    %c3 = arith.constant 3 : index
    %c0_3 = arith.constant 0 : index
    %3 = vector.load %arg6[%c3, %c0_3] : memref<8x128xf32, #tpu.memory_space<vmem>>, vector<1x128xf32>
    %c4 = arith.constant 4 : index
    %c0_4 = arith.constant 0 : index
    %4 = vector.load %arg6[%c4, %c0_4] : memref<8x128xf32, #tpu.memory_space<vmem>>, vector<1x128xf32>
    %c5 = arith.constant 5 : index
    %c0_5 = arith.constant 0 : index
    %5 = vector.load %arg6[%c5, %c0_5] : memref<8x128xf32, #tpu.memory_space<vmem>>, vector<1x128xf32>
    %c6 = arith.constant 6 : index
    %c0_6 = arith.constant 0 : index
    %6 = vector.load %arg6[%c6, %c0_6] : memref<8x128xf32, #tpu.memory_space<vmem>>, vector<1x128xf32>
    %c0_7 = arith.constant 0 : index
    %c0_8 = arith.constant 0 : index
    %7 = vector.load %arg1[%c0_7, %c0_8] : memref<8x128xf32, #tpu.memory_space<vmem>>, vector<8x128xf32>
    %c0_9 = arith.constant 0 : index
    %c0_10 = arith.constant 0 : index
    %8 = vector.load %arg2[%c0_9, %c0_10] : memref<128x128xf32, #tpu.memory_space<vmem>>, vector<128x128xf32>
    %cst = arith.constant dense<0.000000e+00> : vector<8x128xf32>
    %9 = tpu.matmul %7, %8, %cst {dimension_numbers = #tpu.dot_dimension_numbers<[1], [0], [0], [1], [0, 0, 1, 1], [], []>} : vector<8x128xf32>, vector<128x128xf32>, vector<8x128xf32> -> vector<8x128xf32>
    %10 = vector.broadcast %0 : vector<1x128xf32> to vector<8x128xf32>
    %11 = arith.addf %9, %10 : vector<8x128xf32>
    %cst_11 = arith.constant dense<0.000000e+00> : vector<8xf32>
    %12 = vector.multi_reduction <add>, %11, %cst_11 [1] : vector<8x128xf32> to vector<8xf32>
    %13 = vector.shape_cast %12 : vector<8xf32> to vector<8x1xf32>
    %14 = arith.mulf %11, %11 : vector<8x128xf32>
    %cst_12 = arith.constant dense<0.000000e+00> : vector<8xf32>
    %15 = vector.multi_reduction <add>, %14, %cst_12 [1] : vector<8x128xf32> to vector<8xf32>
    %16 = vector.shape_cast %15 : vector<8xf32> to vector<8x1xf32>
    %cst_13 = arith.constant 3.125000e-02 : f32
    %17 = vector.broadcast %cst_13 : f32 to vector<8x1xf32>
    %18 = arith.mulf %13, %17 : vector<8x1xf32>
    %cst_14 = arith.constant 3.125000e-02 : f32
    %19 = vector.broadcast %cst_14 : f32 to vector<8x1xf32>
    %20 = arith.mulf %16, %19 : vector<8x1xf32>
    %21 = arith.mulf %18, %18 : vector<8x1xf32>
    %22 = arith.subf %20, %21 : vector<8x1xf32>
    %23 = vector.broadcast %18 : vector<8x1xf32> to vector<8x128xf32>
    %24 = arith.subf %11, %23 : vector<8x128xf32>
    %cst_15 = arith.constant 9.99999974E-6 : f32
    %25 = vector.broadcast %cst_15 : f32 to vector<8x1xf32>
    %26 = arith.addf %22, %25 : vector<8x1xf32>
    %27 = math.rsqrt %26 : vector<8x1xf32>
    %28 = vector.broadcast %27 : vector<8x1xf32> to vector<8x128xf32>
    %29 = arith.mulf %24, %28 : vector<8x128xf32>
    %30 = vector.broadcast %1 : vector<1x128xf32> to vector<8x128xf32>
    %31 = arith.mulf %29, %30 : vector<8x128xf32>
    %32 = vector.broadcast %2 : vector<1x128xf32> to vector<8x128xf32>
    %33 = arith.addf %31, %32 : vector<8x128xf32>
    %cst_16 = arith.constant 5.000000e-01 : f32
    %34 = vector.broadcast %cst_16 : f32 to vector<8x128xf32>
    %35 = arith.mulf %34, %33 : vector<8x128xf32>
    %cst_17 = arith.constant 0.707106769 : f32
    %36 = vector.broadcast %cst_17 : f32 to vector<8x128xf32>
    %37 = arith.mulf %33, %36 : vector<8x128xf32>
    %38 = math.erf %37 : vector<8x128xf32>
    %cst_18 = arith.constant 1.000000e+00 : f32
    %39 = vector.broadcast %cst_18 : f32 to vector<8x128xf32>
    %40 = arith.addf %39, %38 : vector<8x128xf32>
    %41 = arith.mulf %35, %40 : vector<8x128xf32>
    %c0_19 = arith.constant 0 : index
    %c0_20 = arith.constant 0 : index
    %c0_21 = arith.constant 0 : index
    %42 = vector.load %arg7[%c0_19, %c0_20, %c0_21] : memref<8x8x256xf32, #tpu.memory_space<vmem>>, vector<1x8x256xf32>
    %43 = vector.shape_cast %42 : vector<1x8x256xf32> to vector<8x256xf32>
    %c0_22 = arith.constant 0 : index
    %c0_23 = arith.constant 0 : index
    %c0_24 = arith.constant 0 : index
    %44 = vector.load %arg3[%c0_22, %c0_23, %c0_24] : memref<8x128x256xf32, #tpu.memory_space<vmem>>, vector<1x128x256xf32>
    %45 = vector.shape_cast %44 : vector<1x128x256xf32> to vector<128x256xf32>
    %cst_25 = arith.constant dense<0.000000e+00> : vector<8x256xf32>
    %46 = tpu.matmul %41, %45, %cst_25 {dimension_numbers = #tpu.dot_dimension_numbers<[1], [0], [0], [1], [0, 0, 1, 1], [], []>} : vector<8x128xf32>, vector<128x256xf32>, vector<8x256xf32> -> vector<8x256xf32>
    %47 = vector.extract_strided_slice %43 {offsets = [0, 0], sizes = [1, 256], strides = [1, 1]} : vector<8x256xf32> to vector<1x256xf32>
    %48 = vector.broadcast %47 : vector<1x256xf32> to vector<8x256xf32>
    %49 = arith.addf %46, %48 : vector<8x256xf32>
    %50 = vector.extract_strided_slice %49 {offsets = [0, 0], sizes = [8, 128], strides = [1, 1]} : vector<8x256xf32> to vector<8x128xf32>
    %51 = vector.extract_strided_slice %43 {offsets = [1, 0], sizes = [1, 128], strides = [1, 1]} : vector<8x256xf32> to vector<1x128xf32>
    %52 = vector.extract_strided_slice %43 {offsets = [2, 0], sizes = [1, 128], strides = [1, 1]} : vector<8x256xf32> to vector<1x128xf32>
    %cst_26 = arith.constant dense<0.000000e+00> : vector<8xf32>
    %53 = vector.multi_reduction <add>, %50, %cst_26 [1] : vector<8x128xf32> to vector<8xf32>
    %54 = vector.shape_cast %53 : vector<8xf32> to vector<8x1xf32>
    %55 = arith.mulf %50, %50 : vector<8x128xf32>
    %cst_27 = arith.constant dense<0.000000e+00> : vector<8xf32>
    %56 = vector.multi_reduction <add>, %55, %cst_27 [1] : vector<8x128xf32> to vector<8xf32>
    %57 = vector.shape_cast %56 : vector<8xf32> to vector<8x1xf32>
    %cst_28 = arith.constant 3.125000e-02 : f32
    %58 = vector.broadcast %cst_28 : f32 to vector<8x1xf32>
    %59 = arith.mulf %54, %58 : vector<8x1xf32>
    %cst_29 = arith.constant 3.125000e-02 : f32
    %60 = vector.broadcast %cst_29 : f32 to vector<8x1xf32>
    %61 = arith.mulf %57, %60 : vector<8x1xf32>
    %62 = arith.mulf %59, %59 : vector<8x1xf32>
    %63 = arith.subf %61, %62 : vector<8x1xf32>
    %64 = vector.broadcast %59 : vector<8x1xf32> to vector<8x128xf32>
    %65 = arith.subf %50, %64 : vector<8x128xf32>
    %cst_30 = arith.constant 9.99999974E-6 : f32
    %66 = vector.broadcast %cst_30 : f32 to vector<8x1xf32>
    %67 = arith.addf %63, %66 : vector<8x1xf32>
    %68 = math.rsqrt %67 : vector<8x1xf32>
    %69 = vector.broadcast %68 : vector<8x1xf32> to vector<8x128xf32>
    %70 = arith.mulf %65, %69 : vector<8x128xf32>
    %71 = vector.broadcast %51 : vector<1x128xf32> to vector<8x128xf32>
    %72 = arith.mulf %70, %71 : vector<8x128xf32>
    %73 = vector.broadcast %52 : vector<1x128xf32> to vector<8x128xf32>
    %74 = arith.addf %72, %73 : vector<8x128xf32>
    %75 = math.tanh %74 : vector<8x128xf32>
    %76 = vector.extract_strided_slice %49 {offsets = [0, 128], sizes = [8, 128], strides = [1, 1]} : vector<8x256xf32> to vector<8x128xf32>
    %c0_31 = arith.constant 0 : index
    %c0_32 = arith.constant 0 : index
    %77 = vector.load %arg4[%c0_31, %c0_32] : memref<128x128xf32, #tpu.memory_space<vmem>>, vector<128x128xf32>
    %cst_33 = arith.constant dense<0.000000e+00> : vector<8x128xf32>
    %78 = tpu.matmul %75, %77, %cst_33 {dimension_numbers = #tpu.dot_dimension_numbers<[1], [0], [0], [1], [0, 0, 1, 1], [], []>} : vector<8x128xf32>, vector<128x128xf32>, vector<8x128xf32> -> vector<8x128xf32>
    %79 = arith.addf %76, %78 : vector<8x128xf32>
    %80 = vector.broadcast %3 : vector<1x128xf32> to vector<8x128xf32>
    %81 = arith.addf %79, %80 : vector<8x128xf32>
    %cst_34 = arith.constant dense<0.000000e+00> : vector<8xf32>
    %82 = vector.multi_reduction <add>, %81, %cst_34 [1] : vector<8x128xf32> to vector<8xf32>
    %83 = vector.shape_cast %82 : vector<8xf32> to vector<8x1xf32>
    %84 = arith.mulf %81, %81 : vector<8x128xf32>
    %cst_35 = arith.constant dense<0.000000e+00> : vector<8xf32>
    %85 = vector.multi_reduction <add>, %84, %cst_35 [1] : vector<8x128xf32> to vector<8xf32>
    %86 = vector.shape_cast %85 : vector<8xf32> to vector<8x1xf32>
    %cst_36 = arith.constant 3.125000e-02 : f32
    %87 = vector.broadcast %cst_36 : f32 to vector<8x1xf32>
    %88 = arith.mulf %83, %87 : vector<8x1xf32>
    %cst_37 = arith.constant 3.125000e-02 : f32
    %89 = vector.broadcast %cst_37 : f32 to vector<8x1xf32>
    %90 = arith.mulf %86, %89 : vector<8x1xf32>
    %91 = arith.mulf %88, %88 : vector<8x1xf32>
    %92 = arith.subf %90, %91 : vector<8x1xf32>
    %93 = vector.broadcast %88 : vector<8x1xf32> to vector<8x128xf32>
    %94 = arith.subf %81, %93 : vector<8x128xf32>
    %cst_38 = arith.constant 9.99999974E-6 : f32
    %95 = vector.broadcast %cst_38 : f32 to vector<8x1xf32>
    %96 = arith.addf %92, %95 : vector<8x1xf32>
    %97 = math.rsqrt %96 : vector<8x1xf32>
    %98 = vector.broadcast %97 : vector<8x1xf32> to vector<8x128xf32>
    %99 = arith.mulf %94, %98 : vector<8x128xf32>
    %100 = vector.broadcast %4 : vector<1x128xf32> to vector<8x128xf32>
    %101 = arith.mulf %99, %100 : vector<8x128xf32>
    %102 = vector.broadcast %5 : vector<1x128xf32> to vector<8x128xf32>
    %103 = arith.addf %101, %102 : vector<8x128xf32>
    %cst_39 = arith.constant 5.000000e-01 : f32
    %104 = vector.broadcast %cst_39 : f32 to vector<8x128xf32>
    %105 = arith.mulf %104, %103 : vector<8x128xf32>
    %cst_40 = arith.constant 0.707106769 : f32
    %106 = vector.broadcast %cst_40 : f32 to vector<8x128xf32>
    %107 = arith.mulf %103, %106 : vector<8x128xf32>
    %108 = math.erf %107 : vector<8x128xf32>
    %cst_41 = arith.constant 1.000000e+00 : f32
    %109 = vector.broadcast %cst_41 : f32 to vector<8x128xf32>
    %110 = arith.addf %109, %108 : vector<8x128xf32>
    %111 = arith.mulf %105, %110 : vector<8x128xf32>
    %c1_42 = arith.constant 1 : index
    %c0_43 = arith.constant 0 : index
    %c0_44 = arith.constant 0 : index
    %112 = vector.load %arg7[%c1_42, %c0_43, %c0_44] : memref<8x8x256xf32, #tpu.memory_space<vmem>>, vector<1x8x256xf32>
    %113 = vector.shape_cast %112 : vector<1x8x256xf32> to vector<8x256xf32>
    %c1_45 = arith.constant 1 : index
    %c0_46 = arith.constant 0 : index
    %c0_47 = arith.constant 0 : index
    %114 = vector.load %arg3[%c1_45, %c0_46, %c0_47] : memref<8x128x256xf32, #tpu.memory_space<vmem>>, vector<1x128x256xf32>
    %115 = vector.shape_cast %114 : vector<1x128x256xf32> to vector<128x256xf32>
    %cst_48 = arith.constant dense<0.000000e+00> : vector<8x256xf32>
    %116 = tpu.matmul %111, %115, %cst_48 {dimension_numbers = #tpu.dot_dimension_numbers<[1], [0], [0], [1], [0, 0, 1, 1], [], []>} : vector<8x128xf32>, vector<128x256xf32>, vector<8x256xf32> -> vector<8x256xf32>
    %117 = vector.extract_strided_slice %113 {offsets = [0, 0], sizes = [1, 256], strides = [1, 1]} : vector<8x256xf32> to vector<1x256xf32>
    %118 = vector.broadcast %117 : vector<1x256xf32> to vector<8x256xf32>
    %119 = arith.addf %116, %118 : vector<8x256xf32>
    %120 = vector.extract_strided_slice %119 {offsets = [0, 0], sizes = [8, 128], strides = [1, 1]} : vector<8x256xf32> to vector<8x128xf32>
    %121 = vector.extract_strided_slice %113 {offsets = [1, 0], sizes = [1, 128], strides = [1, 1]} : vector<8x256xf32> to vector<1x128xf32>
    %122 = vector.extract_strided_slice %113 {offsets = [2, 0], sizes = [1, 128], strides = [1, 1]} : vector<8x256xf32> to vector<1x128xf32>
    %cst_49 = arith.constant dense<0.000000e+00> : vector<8xf32>
    %123 = vector.multi_reduction <add>, %120, %cst_49 [1] : vector<8x128xf32> to vector<8xf32>
    %124 = vector.shape_cast %123 : vector<8xf32> to vector<8x1xf32>
    %125 = arith.mulf %120, %120 : vector<8x128xf32>
    %cst_50 = arith.constant dense<0.000000e+00> : vector<8xf32>
    %126 = vector.multi_reduction <add>, %125, %cst_50 [1] : vector<8x128xf32> to vector<8xf32>
    %127 = vector.shape_cast %126 : vector<8xf32> to vector<8x1xf32>
    %cst_51 = arith.constant 3.125000e-02 : f32
    %128 = vector.broadcast %cst_51 : f32 to vector<8x1xf32>
    %129 = arith.mulf %124, %128 : vector<8x1xf32>
    %cst_52 = arith.constant 3.125000e-02 : f32
    %130 = vector.broadcast %cst_52 : f32 to vector<8x1xf32>
    %131 = arith.mulf %127, %130 : vector<8x1xf32>
    %132 = arith.mulf %129, %129 : vector<8x1xf32>
    %133 = arith.subf %131, %132 : vector<8x1xf32>
    %134 = vector.broadcast %129 : vector<8x1xf32> to vector<8x128xf32>
    %135 = arith.subf %120, %134 : vector<8x128xf32>
    %cst_53 = arith.constant 9.99999974E-6 : f32
    %136 = vector.broadcast %cst_53 : f32 to vector<8x1xf32>
    %137 = arith.addf %133, %136 : vector<8x1xf32>
    %138 = math.rsqrt %137 : vector<8x1xf32>
    %139 = vector.broadcast %138 : vector<8x1xf32> to vector<8x128xf32>
    %140 = arith.mulf %135, %139 : vector<8x128xf32>
    %141 = vector.broadcast %121 : vector<1x128xf32> to vector<8x128xf32>
    %142 = arith.mulf %140, %141 : vector<8x128xf32>
    %143 = vector.broadcast %122 : vector<1x128xf32> to vector<8x128xf32>
    %144 = arith.addf %142, %143 : vector<8x128xf32>
    %145 = math.tanh %144 : vector<8x128xf32>
    %146 = vector.extract_strided_slice %119 {offsets = [0, 128], sizes = [8, 128], strides = [1, 1]} : vector<8x256xf32> to vector<8x128xf32>
    %c0_54 = arith.constant 0 : index
    %c0_55 = arith.constant 0 : index
    %147 = vector.load %arg4[%c0_54, %c0_55] : memref<128x128xf32, #tpu.memory_space<vmem>>, vector<128x128xf32>
    %cst_56 = arith.constant dense<0.000000e+00> : vector<8x128xf32>
    %148 = tpu.matmul %145, %147, %cst_56 {dimension_numbers = #tpu.dot_dimension_numbers<[1], [0], [0], [1], [0, 0, 1, 1], [], []>} : vector<8x128xf32>, vector<128x128xf32>, vector<8x128xf32> -> vector<8x128xf32>
    %149 = arith.addf %146, %148 : vector<8x128xf32>
    %150 = vector.broadcast %3 : vector<1x128xf32> to vector<8x128xf32>
    %151 = arith.addf %149, %150 : vector<8x128xf32>
    %cst_57 = arith.constant dense<0.000000e+00> : vector<8xf32>
    %152 = vector.multi_reduction <add>, %151, %cst_57 [1] : vector<8x128xf32> to vector<8xf32>
    %153 = vector.shape_cast %152 : vector<8xf32> to vector<8x1xf32>
    %154 = arith.mulf %151, %151 : vector<8x128xf32>
    %cst_58 = arith.constant dense<0.000000e+00> : vector<8xf32>
    %155 = vector.multi_reduction <add>, %154, %cst_58 [1] : vector<8x128xf32> to vector<8xf32>
    %156 = vector.shape_cast %155 : vector<8xf32> to vector<8x1xf32>
    %cst_59 = arith.constant 3.125000e-02 : f32
    %157 = vector.broadcast %cst_59 : f32 to vector<8x1xf32>
    %158 = arith.mulf %153, %157 : vector<8x1xf32>
    %cst_60 = arith.constant 3.125000e-02 : f32
    %159 = vector.broadcast %cst_60 : f32 to vector<8x1xf32>
    %160 = arith.mulf %156, %159 : vector<8x1xf32>
    %161 = arith.mulf %158, %158 : vector<8x1xf32>
    %162 = arith.subf %160, %161 : vector<8x1xf32>
    %163 = vector.broadcast %158 : vector<8x1xf32> to vector<8x128xf32>
    %164 = arith.subf %151, %163 : vector<8x128xf32>
    %cst_61 = arith.constant 9.99999974E-6 : f32
    %165 = vector.broadcast %cst_61 : f32 to vector<8x1xf32>
    %166 = arith.addf %162, %165 : vector<8x1xf32>
    %167 = math.rsqrt %166 : vector<8x1xf32>
    %168 = vector.broadcast %167 : vector<8x1xf32> to vector<8x128xf32>
    %169 = arith.mulf %164, %168 : vector<8x128xf32>
    %170 = vector.broadcast %4 : vector<1x128xf32> to vector<8x128xf32>
    %171 = arith.mulf %169, %170 : vector<8x128xf32>
    %172 = vector.broadcast %5 : vector<1x128xf32> to vector<8x128xf32>
    %173 = arith.addf %171, %172 : vector<8x128xf32>
    %cst_62 = arith.constant 5.000000e-01 : f32
    %174 = vector.broadcast %cst_62 : f32 to vector<8x128xf32>
    %175 = arith.mulf %174, %173 : vector<8x128xf32>
    %cst_63 = arith.constant 0.707106769 : f32
    %176 = vector.broadcast %cst_63 : f32 to vector<8x128xf32>
    %177 = arith.mulf %173, %176 : vector<8x128xf32>
    %178 = math.erf %177 : vector<8x128xf32>
    %cst_64 = arith.constant 1.000000e+00 : f32
    %179 = vector.broadcast %cst_64 : f32 to vector<8x128xf32>
    %180 = arith.addf %179, %178 : vector<8x128xf32>
    %181 = arith.mulf %175, %180 : vector<8x128xf32>
    %c2_65 = arith.constant 2 : index
    %c0_66 = arith.constant 0 : index
    %c0_67 = arith.constant 0 : index
    %182 = vector.load %arg7[%c2_65, %c0_66, %c0_67] : memref<8x8x256xf32, #tpu.memory_space<vmem>>, vector<1x8x256xf32>
    %183 = vector.shape_cast %182 : vector<1x8x256xf32> to vector<8x256xf32>
    %c2_68 = arith.constant 2 : index
    %c0_69 = arith.constant 0 : index
    %c0_70 = arith.constant 0 : index
    %184 = vector.load %arg3[%c2_68, %c0_69, %c0_70] : memref<8x128x256xf32, #tpu.memory_space<vmem>>, vector<1x128x256xf32>
    %185 = vector.shape_cast %184 : vector<1x128x256xf32> to vector<128x256xf32>
    %cst_71 = arith.constant dense<0.000000e+00> : vector<8x256xf32>
    %186 = tpu.matmul %181, %185, %cst_71 {dimension_numbers = #tpu.dot_dimension_numbers<[1], [0], [0], [1], [0, 0, 1, 1], [], []>} : vector<8x128xf32>, vector<128x256xf32>, vector<8x256xf32> -> vector<8x256xf32>
    %187 = vector.extract_strided_slice %183 {offsets = [0, 0], sizes = [1, 256], strides = [1, 1]} : vector<8x256xf32> to vector<1x256xf32>
    %188 = vector.broadcast %187 : vector<1x256xf32> to vector<8x256xf32>
    %189 = arith.addf %186, %188 : vector<8x256xf32>
    %190 = vector.extract_strided_slice %189 {offsets = [0, 0], sizes = [8, 128], strides = [1, 1]} : vector<8x256xf32> to vector<8x128xf32>
    %191 = vector.extract_strided_slice %183 {offsets = [1, 0], sizes = [1, 128], strides = [1, 1]} : vector<8x256xf32> to vector<1x128xf32>
    %192 = vector.extract_strided_slice %183 {offsets = [2, 0], sizes = [1, 128], strides = [1, 1]} : vector<8x256xf32> to vector<1x128xf32>
    %cst_72 = arith.constant dense<0.000000e+00> : vector<8xf32>
    %193 = vector.multi_reduction <add>, %190, %cst_72 [1] : vector<8x128xf32> to vector<8xf32>
    %194 = vector.shape_cast %193 : vector<8xf32> to vector<8x1xf32>
    %195 = arith.mulf %190, %190 : vector<8x128xf32>
    %cst_73 = arith.constant dense<0.000000e+00> : vector<8xf32>
    %196 = vector.multi_reduction <add>, %195, %cst_73 [1] : vector<8x128xf32> to vector<8xf32>
    %197 = vector.shape_cast %196 : vector<8xf32> to vector<8x1xf32>
    %cst_74 = arith.constant 3.125000e-02 : f32
    %198 = vector.broadcast %cst_74 : f32 to vector<8x1xf32>
    %199 = arith.mulf %194, %198 : vector<8x1xf32>
    %cst_75 = arith.constant 3.125000e-02 : f32
    %200 = vector.broadcast %cst_75 : f32 to vector<8x1xf32>
    %201 = arith.mulf %197, %200 : vector<8x1xf32>
    %202 = arith.mulf %199, %199 : vector<8x1xf32>
    %203 = arith.subf %201, %202 : vector<8x1xf32>
    %204 = vector.broadcast %199 : vector<8x1xf32> to vector<8x128xf32>
    %205 = arith.subf %190, %204 : vector<8x128xf32>
    %cst_76 = arith.constant 9.99999974E-6 : f32
    %206 = vector.broadcast %cst_76 : f32 to vector<8x1xf32>
    %207 = arith.addf %203, %206 : vector<8x1xf32>
    %208 = math.rsqrt %207 : vector<8x1xf32>
    %209 = vector.broadcast %208 : vector<8x1xf32> to vector<8x128xf32>
    %210 = arith.mulf %205, %209 : vector<8x128xf32>
    %211 = vector.broadcast %191 : vector<1x128xf32> to vector<8x128xf32>
    %212 = arith.mulf %210, %211 : vector<8x128xf32>
    %213 = vector.broadcast %192 : vector<1x128xf32> to vector<8x128xf32>
    %214 = arith.addf %212, %213 : vector<8x128xf32>
    %215 = math.tanh %214 : vector<8x128xf32>
    %216 = vector.extract_strided_slice %189 {offsets = [0, 128], sizes = [8, 128], strides = [1, 1]} : vector<8x256xf32> to vector<8x128xf32>
    %c0_77 = arith.constant 0 : index
    %c0_78 = arith.constant 0 : index
    %217 = vector.load %arg4[%c0_77, %c0_78] : memref<128x128xf32, #tpu.memory_space<vmem>>, vector<128x128xf32>
    %cst_79 = arith.constant dense<0.000000e+00> : vector<8x128xf32>
    %218 = tpu.matmul %215, %217, %cst_79 {dimension_numbers = #tpu.dot_dimension_numbers<[1], [0], [0], [1], [0, 0, 1, 1], [], []>} : vector<8x128xf32>, vector<128x128xf32>, vector<8x128xf32> -> vector<8x128xf32>
    %219 = arith.addf %216, %218 : vector<8x128xf32>
    %220 = vector.broadcast %3 : vector<1x128xf32> to vector<8x128xf32>
    %221 = arith.addf %219, %220 : vector<8x128xf32>
    %cst_80 = arith.constant dense<0.000000e+00> : vector<8xf32>
    %222 = vector.multi_reduction <add>, %221, %cst_80 [1] : vector<8x128xf32> to vector<8xf32>
    %223 = vector.shape_cast %222 : vector<8xf32> to vector<8x1xf32>
    %224 = arith.mulf %221, %221 : vector<8x128xf32>
    %cst_81 = arith.constant dense<0.000000e+00> : vector<8xf32>
    %225 = vector.multi_reduction <add>, %224, %cst_81 [1] : vector<8x128xf32> to vector<8xf32>
    %226 = vector.shape_cast %225 : vector<8xf32> to vector<8x1xf32>
    %cst_82 = arith.constant 3.125000e-02 : f32
    %227 = vector.broadcast %cst_82 : f32 to vector<8x1xf32>
    %228 = arith.mulf %223, %227 : vector<8x1xf32>
    %cst_83 = arith.constant 3.125000e-02 : f32
    %229 = vector.broadcast %cst_83 : f32 to vector<8x1xf32>
    %230 = arith.mulf %226, %229 : vector<8x1xf32>
    %231 = arith.mulf %228, %228 : vector<8x1xf32>
    %232 = arith.subf %230, %231 : vector<8x1xf32>
    %233 = vector.broadcast %228 : vector<8x1xf32> to vector<8x128xf32>
    %234 = arith.subf %221, %233 : vector<8x128xf32>
    %cst_84 = arith.constant 9.99999974E-6 : f32
    %235 = vector.broadcast %cst_84 : f32 to vector<8x1xf32>
    %236 = arith.addf %232, %235 : vector<8x1xf32>
    %237 = math.rsqrt %236 : vector<8x1xf32>
    %238 = vector.broadcast %237 : vector<8x1xf32> to vector<8x128xf32>
    %239 = arith.mulf %234, %238 : vector<8x128xf32>
    %240 = vector.broadcast %4 : vector<1x128xf32> to vector<8x128xf32>
    %241 = arith.mulf %239, %240 : vector<8x128xf32>
    %242 = vector.broadcast %5 : vector<1x128xf32> to vector<8x128xf32>
    %243 = arith.addf %241, %242 : vector<8x128xf32>
    %cst_85 = arith.constant 5.000000e-01 : f32
    %244 = vector.broadcast %cst_85 : f32 to vector<8x128xf32>
    %245 = arith.mulf %244, %243 : vector<8x128xf32>
    %cst_86 = arith.constant 0.707106769 : f32
    %246 = vector.broadcast %cst_86 : f32 to vector<8x128xf32>
    %247 = arith.mulf %243, %246 : vector<8x128xf32>
    %248 = math.erf %247 : vector<8x128xf32>
    %cst_87 = arith.constant 1.000000e+00 : f32
    %249 = vector.broadcast %cst_87 : f32 to vector<8x128xf32>
    %250 = arith.addf %249, %248 : vector<8x128xf32>
    %251 = arith.mulf %245, %250 : vector<8x128xf32>
    %c3_88 = arith.constant 3 : index
    %c0_89 = arith.constant 0 : index
    %c0_90 = arith.constant 0 : index
    %252 = vector.load %arg7[%c3_88, %c0_89, %c0_90] : memref<8x8x256xf32, #tpu.memory_space<vmem>>, vector<1x8x256xf32>
    %253 = vector.shape_cast %252 : vector<1x8x256xf32> to vector<8x256xf32>
    %c3_91 = arith.constant 3 : index
    %c0_92 = arith.constant 0 : index
    %c0_93 = arith.constant 0 : index
    %254 = vector.load %arg3[%c3_91, %c0_92, %c0_93] : memref<8x128x256xf32, #tpu.memory_space<vmem>>, vector<1x128x256xf32>
    %255 = vector.shape_cast %254 : vector<1x128x256xf32> to vector<128x256xf32>
    %cst_94 = arith.constant dense<0.000000e+00> : vector<8x256xf32>
    %256 = tpu.matmul %251, %255, %cst_94 {dimension_numbers = #tpu.dot_dimension_numbers<[1], [0], [0], [1], [0, 0, 1, 1], [], []>} : vector<8x128xf32>, vector<128x256xf32>, vector<8x256xf32> -> vector<8x256xf32>
    %257 = vector.extract_strided_slice %253 {offsets = [0, 0], sizes = [1, 256], strides = [1, 1]} : vector<8x256xf32> to vector<1x256xf32>
    %258 = vector.broadcast %257 : vector<1x256xf32> to vector<8x256xf32>
    %259 = arith.addf %256, %258 : vector<8x256xf32>
    %260 = vector.extract_strided_slice %259 {offsets = [0, 0], sizes = [8, 128], strides = [1, 1]} : vector<8x256xf32> to vector<8x128xf32>
    %261 = vector.extract_strided_slice %253 {offsets = [1, 0], sizes = [1, 128], strides = [1, 1]} : vector<8x256xf32> to vector<1x128xf32>
    %262 = vector.extract_strided_slice %253 {offsets = [2, 0], sizes = [1, 128], strides = [1, 1]} : vector<8x256xf32> to vector<1x128xf32>
    %cst_95 = arith.constant dense<0.000000e+00> : vector<8xf32>
    %263 = vector.multi_reduction <add>, %260, %cst_95 [1] : vector<8x128xf32> to vector<8xf32>
    %264 = vector.shape_cast %263 : vector<8xf32> to vector<8x1xf32>
    %265 = arith.mulf %260, %260 : vector<8x128xf32>
    %cst_96 = arith.constant dense<0.000000e+00> : vector<8xf32>
    %266 = vector.multi_reduction <add>, %265, %cst_96 [1] : vector<8x128xf32> to vector<8xf32>
    %267 = vector.shape_cast %266 : vector<8xf32> to vector<8x1xf32>
    %cst_97 = arith.constant 3.125000e-02 : f32
    %268 = vector.broadcast %cst_97 : f32 to vector<8x1xf32>
    %269 = arith.mulf %264, %268 : vector<8x1xf32>
    %cst_98 = arith.constant 3.125000e-02 : f32
    %270 = vector.broadcast %cst_98 : f32 to vector<8x1xf32>
    %271 = arith.mulf %267, %270 : vector<8x1xf32>
    %272 = arith.mulf %269, %269 : vector<8x1xf32>
    %273 = arith.subf %271, %272 : vector<8x1xf32>
    %274 = vector.broadcast %269 : vector<8x1xf32> to vector<8x128xf32>
    %275 = arith.subf %260, %274 : vector<8x128xf32>
    %cst_99 = arith.constant 9.99999974E-6 : f32
    %276 = vector.broadcast %cst_99 : f32 to vector<8x1xf32>
    %277 = arith.addf %273, %276 : vector<8x1xf32>
    %278 = math.rsqrt %277 : vector<8x1xf32>
    %279 = vector.broadcast %278 : vector<8x1xf32> to vector<8x128xf32>
    %280 = arith.mulf %275, %279 : vector<8x128xf32>
    %281 = vector.broadcast %261 : vector<1x128xf32> to vector<8x128xf32>
    %282 = arith.mulf %280, %281 : vector<8x128xf32>
    %283 = vector.broadcast %262 : vector<1x128xf32> to vector<8x128xf32>
    %284 = arith.addf %282, %283 : vector<8x128xf32>
    %285 = math.tanh %284 : vector<8x128xf32>
    %286 = vector.extract_strided_slice %259 {offsets = [0, 128], sizes = [8, 128], strides = [1, 1]} : vector<8x256xf32> to vector<8x128xf32>
    %c0_100 = arith.constant 0 : index
    %c0_101 = arith.constant 0 : index
    %287 = vector.load %arg4[%c0_100, %c0_101] : memref<128x128xf32, #tpu.memory_space<vmem>>, vector<128x128xf32>
    %cst_102 = arith.constant dense<0.000000e+00> : vector<8x128xf32>
    %288 = tpu.matmul %285, %287, %cst_102 {dimension_numbers = #tpu.dot_dimension_numbers<[1], [0], [0], [1], [0, 0, 1, 1], [], []>} : vector<8x128xf32>, vector<128x128xf32>, vector<8x128xf32> -> vector<8x128xf32>
    %289 = arith.addf %286, %288 : vector<8x128xf32>
    %290 = vector.broadcast %3 : vector<1x128xf32> to vector<8x128xf32>
    %291 = arith.addf %289, %290 : vector<8x128xf32>
    %cst_103 = arith.constant dense<0.000000e+00> : vector<8xf32>
    %292 = vector.multi_reduction <add>, %291, %cst_103 [1] : vector<8x128xf32> to vector<8xf32>
    %293 = vector.shape_cast %292 : vector<8xf32> to vector<8x1xf32>
    %294 = arith.mulf %291, %291 : vector<8x128xf32>
    %cst_104 = arith.constant dense<0.000000e+00> : vector<8xf32>
    %295 = vector.multi_reduction <add>, %294, %cst_104 [1] : vector<8x128xf32> to vector<8xf32>
    %296 = vector.shape_cast %295 : vector<8xf32> to vector<8x1xf32>
    %cst_105 = arith.constant 3.125000e-02 : f32
    %297 = vector.broadcast %cst_105 : f32 to vector<8x1xf32>
    %298 = arith.mulf %293, %297 : vector<8x1xf32>
    %cst_106 = arith.constant 3.125000e-02 : f32
    %299 = vector.broadcast %cst_106 : f32 to vector<8x1xf32>
    %300 = arith.mulf %296, %299 : vector<8x1xf32>
    %301 = arith.mulf %298, %298 : vector<8x1xf32>
    %302 = arith.subf %300, %301 : vector<8x1xf32>
    %303 = vector.broadcast %298 : vector<8x1xf32> to vector<8x128xf32>
    %304 = arith.subf %291, %303 : vector<8x128xf32>
    %cst_107 = arith.constant 9.99999974E-6 : f32
    %305 = vector.broadcast %cst_107 : f32 to vector<8x1xf32>
    %306 = arith.addf %302, %305 : vector<8x1xf32>
    %307 = math.rsqrt %306 : vector<8x1xf32>
    %308 = vector.broadcast %307 : vector<8x1xf32> to vector<8x128xf32>
    %309 = arith.mulf %304, %308 : vector<8x128xf32>
    %310 = vector.broadcast %4 : vector<1x128xf32> to vector<8x128xf32>
    %311 = arith.mulf %309, %310 : vector<8x128xf32>
    %312 = vector.broadcast %5 : vector<1x128xf32> to vector<8x128xf32>
    %313 = arith.addf %311, %312 : vector<8x128xf32>
    %cst_108 = arith.constant 5.000000e-01 : f32
    %314 = vector.broadcast %cst_108 : f32 to vector<8x128xf32>
    %315 = arith.mulf %314, %313 : vector<8x128xf32>
    %cst_109 = arith.constant 0.707106769 : f32
    %316 = vector.broadcast %cst_109 : f32 to vector<8x128xf32>
    %317 = arith.mulf %313, %316 : vector<8x128xf32>
    %318 = math.erf %317 : vector<8x128xf32>
    %cst_110 = arith.constant 1.000000e+00 : f32
    %319 = vector.broadcast %cst_110 : f32 to vector<8x128xf32>
    %320 = arith.addf %319, %318 : vector<8x128xf32>
    %321 = arith.mulf %315, %320 : vector<8x128xf32>
    %c4_111 = arith.constant 4 : index
    %c0_112 = arith.constant 0 : index
    %c0_113 = arith.constant 0 : index
    %322 = vector.load %arg7[%c4_111, %c0_112, %c0_113] : memref<8x8x256xf32, #tpu.memory_space<vmem>>, vector<1x8x256xf32>
    %323 = vector.shape_cast %322 : vector<1x8x256xf32> to vector<8x256xf32>
    %c4_114 = arith.constant 4 : index
    %c0_115 = arith.constant 0 : index
    %c0_116 = arith.constant 0 : index
    %324 = vector.load %arg3[%c4_114, %c0_115, %c0_116] : memref<8x128x256xf32, #tpu.memory_space<vmem>>, vector<1x128x256xf32>
    %325 = vector.shape_cast %324 : vector<1x128x256xf32> to vector<128x256xf32>
    %cst_117 = arith.constant dense<0.000000e+00> : vector<8x256xf32>
    %326 = tpu.matmul %321, %325, %cst_117 {dimension_numbers = #tpu.dot_dimension_numbers<[1], [0], [0], [1], [0, 0, 1, 1], [], []>} : vector<8x128xf32>, vector<128x256xf32>, vector<8x256xf32> -> vector<8x256xf32>
    %327 = vector.extract_strided_slice %323 {offsets = [0, 0], sizes = [1, 256], strides = [1, 1]} : vector<8x256xf32> to vector<1x256xf32>
    %328 = vector.broadcast %327 : vector<1x256xf32> to vector<8x256xf32>
    %329 = arith.addf %326, %328 : vector<8x256xf32>
    %330 = vector.extract_strided_slice %329 {offsets = [0, 0], sizes = [8, 128], strides = [1, 1]} : vector<8x256xf32> to vector<8x128xf32>
    %331 = vector.extract_strided_slice %323 {offsets = [1, 0], sizes = [1, 128], strides = [1, 1]} : vector<8x256xf32> to vector<1x128xf32>
    %332 = vector.extract_strided_slice %323 {offsets = [2, 0], sizes = [1, 128], strides = [1, 1]} : vector<8x256xf32> to vector<1x128xf32>
    %cst_118 = arith.constant dense<0.000000e+00> : vector<8xf32>
    %333 = vector.multi_reduction <add>, %330, %cst_118 [1] : vector<8x128xf32> to vector<8xf32>
    %334 = vector.shape_cast %333 : vector<8xf32> to vector<8x1xf32>
    %335 = arith.mulf %330, %330 : vector<8x128xf32>
    %cst_119 = arith.constant dense<0.000000e+00> : vector<8xf32>
    %336 = vector.multi_reduction <add>, %335, %cst_119 [1] : vector<8x128xf32> to vector<8xf32>
    %337 = vector.shape_cast %336 : vector<8xf32> to vector<8x1xf32>
    %cst_120 = arith.constant 3.125000e-02 : f32
    %338 = vector.broadcast %cst_120 : f32 to vector<8x1xf32>
    %339 = arith.mulf %334, %338 : vector<8x1xf32>
    %cst_121 = arith.constant 3.125000e-02 : f32
    %340 = vector.broadcast %cst_121 : f32 to vector<8x1xf32>
    %341 = arith.mulf %337, %340 : vector<8x1xf32>
    %342 = arith.mulf %339, %339 : vector<8x1xf32>
    %343 = arith.subf %341, %342 : vector<8x1xf32>
    %344 = vector.broadcast %339 : vector<8x1xf32> to vector<8x128xf32>
    %345 = arith.subf %330, %344 : vector<8x128xf32>
    %cst_122 = arith.constant 9.99999974E-6 : f32
    %346 = vector.broadcast %cst_122 : f32 to vector<8x1xf32>
    %347 = arith.addf %343, %346 : vector<8x1xf32>
    %348 = math.rsqrt %347 : vector<8x1xf32>
    %349 = vector.broadcast %348 : vector<8x1xf32> to vector<8x128xf32>
    %350 = arith.mulf %345, %349 : vector<8x128xf32>
    %351 = vector.broadcast %331 : vector<1x128xf32> to vector<8x128xf32>
    %352 = arith.mulf %350, %351 : vector<8x128xf32>
    %353 = vector.broadcast %332 : vector<1x128xf32> to vector<8x128xf32>
    %354 = arith.addf %352, %353 : vector<8x128xf32>
    %355 = math.tanh %354 : vector<8x128xf32>
    %356 = vector.extract_strided_slice %329 {offsets = [0, 128], sizes = [8, 128], strides = [1, 1]} : vector<8x256xf32> to vector<8x128xf32>
    %c0_123 = arith.constant 0 : index
    %c0_124 = arith.constant 0 : index
    %357 = vector.load %arg4[%c0_123, %c0_124] : memref<128x128xf32, #tpu.memory_space<vmem>>, vector<128x128xf32>
    %cst_125 = arith.constant dense<0.000000e+00> : vector<8x128xf32>
    %358 = tpu.matmul %355, %357, %cst_125 {dimension_numbers = #tpu.dot_dimension_numbers<[1], [0], [0], [1], [0, 0, 1, 1], [], []>} : vector<8x128xf32>, vector<128x128xf32>, vector<8x128xf32> -> vector<8x128xf32>
    %359 = arith.addf %356, %358 : vector<8x128xf32>
    %360 = vector.broadcast %3 : vector<1x128xf32> to vector<8x128xf32>
    %361 = arith.addf %359, %360 : vector<8x128xf32>
    %cst_126 = arith.constant dense<0.000000e+00> : vector<8xf32>
    %362 = vector.multi_reduction <add>, %361, %cst_126 [1] : vector<8x128xf32> to vector<8xf32>
    %363 = vector.shape_cast %362 : vector<8xf32> to vector<8x1xf32>
    %364 = arith.mulf %361, %361 : vector<8x128xf32>
    %cst_127 = arith.constant dense<0.000000e+00> : vector<8xf32>
    %365 = vector.multi_reduction <add>, %364, %cst_127 [1] : vector<8x128xf32> to vector<8xf32>
    %366 = vector.shape_cast %365 : vector<8xf32> to vector<8x1xf32>
    %cst_128 = arith.constant 3.125000e-02 : f32
    %367 = vector.broadcast %cst_128 : f32 to vector<8x1xf32>
    %368 = arith.mulf %363, %367 : vector<8x1xf32>
    %cst_129 = arith.constant 3.125000e-02 : f32
    %369 = vector.broadcast %cst_129 : f32 to vector<8x1xf32>
    %370 = arith.mulf %366, %369 : vector<8x1xf32>
    %371 = arith.mulf %368, %368 : vector<8x1xf32>
    %372 = arith.subf %370, %371 : vector<8x1xf32>
    %373 = vector.broadcast %368 : vector<8x1xf32> to vector<8x128xf32>
    %374 = arith.subf %361, %373 : vector<8x128xf32>
    %cst_130 = arith.constant 9.99999974E-6 : f32
    %375 = vector.broadcast %cst_130 : f32 to vector<8x1xf32>
    %376 = arith.addf %372, %375 : vector<8x1xf32>
    %377 = math.rsqrt %376 : vector<8x1xf32>
    %378 = vector.broadcast %377 : vector<8x1xf32> to vector<8x128xf32>
    %379 = arith.mulf %374, %378 : vector<8x128xf32>
    %380 = vector.broadcast %4 : vector<1x128xf32> to vector<8x128xf32>
    %381 = arith.mulf %379, %380 : vector<8x128xf32>
    %382 = vector.broadcast %5 : vector<1x128xf32> to vector<8x128xf32>
    %383 = arith.addf %381, %382 : vector<8x128xf32>
    %cst_131 = arith.constant 5.000000e-01 : f32
    %384 = vector.broadcast %cst_131 : f32 to vector<8x128xf32>
    %385 = arith.mulf %384, %383 : vector<8x128xf32>
    %cst_132 = arith.constant 0.707106769 : f32
    %386 = vector.broadcast %cst_132 : f32 to vector<8x128xf32>
    %387 = arith.mulf %383, %386 : vector<8x128xf32>
    %388 = math.erf %387 : vector<8x128xf32>
    %cst_133 = arith.constant 1.000000e+00 : f32
    %389 = vector.broadcast %cst_133 : f32 to vector<8x128xf32>
    %390 = arith.addf %389, %388 : vector<8x128xf32>
    %391 = arith.mulf %385, %390 : vector<8x128xf32>
    %c5_134 = arith.constant 5 : index
    %c0_135 = arith.constant 0 : index
    %c0_136 = arith.constant 0 : index
    %392 = vector.load %arg7[%c5_134, %c0_135, %c0_136] : memref<8x8x256xf32, #tpu.memory_space<vmem>>, vector<1x8x256xf32>
    %393 = vector.shape_cast %392 : vector<1x8x256xf32> to vector<8x256xf32>
    %c5_137 = arith.constant 5 : index
    %c0_138 = arith.constant 0 : index
    %c0_139 = arith.constant 0 : index
    %394 = vector.load %arg3[%c5_137, %c0_138, %c0_139] : memref<8x128x256xf32, #tpu.memory_space<vmem>>, vector<1x128x256xf32>
    %395 = vector.shape_cast %394 : vector<1x128x256xf32> to vector<128x256xf32>
    %cst_140 = arith.constant dense<0.000000e+00> : vector<8x256xf32>
    %396 = tpu.matmul %391, %395, %cst_140 {dimension_numbers = #tpu.dot_dimension_numbers<[1], [0], [0], [1], [0, 0, 1, 1], [], []>} : vector<8x128xf32>, vector<128x256xf32>, vector<8x256xf32> -> vector<8x256xf32>
    %397 = vector.extract_strided_slice %393 {offsets = [0, 0], sizes = [1, 256], strides = [1, 1]} : vector<8x256xf32> to vector<1x256xf32>
    %398 = vector.broadcast %397 : vector<1x256xf32> to vector<8x256xf32>
    %399 = arith.addf %396, %398 : vector<8x256xf32>
    %400 = vector.extract_strided_slice %399 {offsets = [0, 0], sizes = [8, 128], strides = [1, 1]} : vector<8x256xf32> to vector<8x128xf32>
    %401 = vector.extract_strided_slice %393 {offsets = [1, 0], sizes = [1, 128], strides = [1, 1]} : vector<8x256xf32> to vector<1x128xf32>
    %402 = vector.extract_strided_slice %393 {offsets = [2, 0], sizes = [1, 128], strides = [1, 1]} : vector<8x256xf32> to vector<1x128xf32>
    %cst_141 = arith.constant dense<0.000000e+00> : vector<8xf32>
    %403 = vector.multi_reduction <add>, %400, %cst_141 [1] : vector<8x128xf32> to vector<8xf32>
    %404 = vector.shape_cast %403 : vector<8xf32> to vector<8x1xf32>
    %405 = arith.mulf %400, %400 : vector<8x128xf32>
    %cst_142 = arith.constant dense<0.000000e+00> : vector<8xf32>
    %406 = vector.multi_reduction <add>, %405, %cst_142 [1] : vector<8x128xf32> to vector<8xf32>
    %407 = vector.shape_cast %406 : vector<8xf32> to vector<8x1xf32>
    %cst_143 = arith.constant 3.125000e-02 : f32
    %408 = vector.broadcast %cst_143 : f32 to vector<8x1xf32>
    %409 = arith.mulf %404, %408 : vector<8x1xf32>
    %cst_144 = arith.constant 3.125000e-02 : f32
    %410 = vector.broadcast %cst_144 : f32 to vector<8x1xf32>
    %411 = arith.mulf %407, %410 : vector<8x1xf32>
    %412 = arith.mulf %409, %409 : vector<8x1xf32>
    %413 = arith.subf %411, %412 : vector<8x1xf32>
    %414 = vector.broadcast %409 : vector<8x1xf32> to vector<8x128xf32>
    %415 = arith.subf %400, %414 : vector<8x128xf32>
    %cst_145 = arith.constant 9.99999974E-6 : f32
    %416 = vector.broadcast %cst_145 : f32 to vector<8x1xf32>
    %417 = arith.addf %413, %416 : vector<8x1xf32>
    %418 = math.rsqrt %417 : vector<8x1xf32>
    %419 = vector.broadcast %418 : vector<8x1xf32> to vector<8x128xf32>
    %420 = arith.mulf %415, %419 : vector<8x128xf32>
    %421 = vector.broadcast %401 : vector<1x128xf32> to vector<8x128xf32>
    %422 = arith.mulf %420, %421 : vector<8x128xf32>
    %423 = vector.broadcast %402 : vector<1x128xf32> to vector<8x128xf32>
    %424 = arith.addf %422, %423 : vector<8x128xf32>
    %425 = math.tanh %424 : vector<8x128xf32>
    %426 = vector.extract_strided_slice %399 {offsets = [0, 128], sizes = [8, 128], strides = [1, 1]} : vector<8x256xf32> to vector<8x128xf32>
    %c0_146 = arith.constant 0 : index
    %c0_147 = arith.constant 0 : index
    %427 = vector.load %arg4[%c0_146, %c0_147] : memref<128x128xf32, #tpu.memory_space<vmem>>, vector<128x128xf32>
    %cst_148 = arith.constant dense<0.000000e+00> : vector<8x128xf32>
    %428 = tpu.matmul %425, %427, %cst_148 {dimension_numbers = #tpu.dot_dimension_numbers<[1], [0], [0], [1], [0, 0, 1, 1], [], []>} : vector<8x128xf32>, vector<128x128xf32>, vector<8x128xf32> -> vector<8x128xf32>
    %429 = arith.addf %426, %428 : vector<8x128xf32>
    %430 = vector.broadcast %3 : vector<1x128xf32> to vector<8x128xf32>
    %431 = arith.addf %429, %430 : vector<8x128xf32>
    %cst_149 = arith.constant dense<0.000000e+00> : vector<8xf32>
    %432 = vector.multi_reduction <add>, %431, %cst_149 [1] : vector<8x128xf32> to vector<8xf32>
    %433 = vector.shape_cast %432 : vector<8xf32> to vector<8x1xf32>
    %434 = arith.mulf %431, %431 : vector<8x128xf32>
    %cst_150 = arith.constant dense<0.000000e+00> : vector<8xf32>
    %435 = vector.multi_reduction <add>, %434, %cst_150 [1] : vector<8x128xf32> to vector<8xf32>
    %436 = vector.shape_cast %435 : vector<8xf32> to vector<8x1xf32>
    %cst_151 = arith.constant 3.125000e-02 : f32
    %437 = vector.broadcast %cst_151 : f32 to vector<8x1xf32>
    %438 = arith.mulf %433, %437 : vector<8x1xf32>
    %cst_152 = arith.constant 3.125000e-02 : f32
    %439 = vector.broadcast %cst_152 : f32 to vector<8x1xf32>
    %440 = arith.mulf %436, %439 : vector<8x1xf32>
    %441 = arith.mulf %438, %438 : vector<8x1xf32>
    %442 = arith.subf %440, %441 : vector<8x1xf32>
    %443 = vector.broadcast %438 : vector<8x1xf32> to vector<8x128xf32>
    %444 = arith.subf %431, %443 : vector<8x128xf32>
    %cst_153 = arith.constant 9.99999974E-6 : f32
    %445 = vector.broadcast %cst_153 : f32 to vector<8x1xf32>
    %446 = arith.addf %442, %445 : vector<8x1xf32>
    %447 = math.rsqrt %446 : vector<8x1xf32>
    %448 = vector.broadcast %447 : vector<8x1xf32> to vector<8x128xf32>
    %449 = arith.mulf %444, %448 : vector<8x128xf32>
    %450 = vector.broadcast %4 : vector<1x128xf32> to vector<8x128xf32>
    %451 = arith.mulf %449, %450 : vector<8x128xf32>
    %452 = vector.broadcast %5 : vector<1x128xf32> to vector<8x128xf32>
    %453 = arith.addf %451, %452 : vector<8x128xf32>
    %cst_154 = arith.constant 5.000000e-01 : f32
    %454 = vector.broadcast %cst_154 : f32 to vector<8x128xf32>
    %455 = arith.mulf %454, %453 : vector<8x128xf32>
    %cst_155 = arith.constant 0.707106769 : f32
    %456 = vector.broadcast %cst_155 : f32 to vector<8x128xf32>
    %457 = arith.mulf %453, %456 : vector<8x128xf32>
    %458 = math.erf %457 : vector<8x128xf32>
    %cst_156 = arith.constant 1.000000e+00 : f32
    %459 = vector.broadcast %cst_156 : f32 to vector<8x128xf32>
    %460 = arith.addf %459, %458 : vector<8x128xf32>
    %461 = arith.mulf %455, %460 : vector<8x128xf32>
    %c6_157 = arith.constant 6 : index
    %c0_158 = arith.constant 0 : index
    %c0_159 = arith.constant 0 : index
    %462 = vector.load %arg7[%c6_157, %c0_158, %c0_159] : memref<8x8x256xf32, #tpu.memory_space<vmem>>, vector<1x8x256xf32>
    %463 = vector.shape_cast %462 : vector<1x8x256xf32> to vector<8x256xf32>
    %c6_160 = arith.constant 6 : index
    %c0_161 = arith.constant 0 : index
    %c0_162 = arith.constant 0 : index
    %464 = vector.load %arg3[%c6_160, %c0_161, %c0_162] : memref<8x128x256xf32, #tpu.memory_space<vmem>>, vector<1x128x256xf32>
    %465 = vector.shape_cast %464 : vector<1x128x256xf32> to vector<128x256xf32>
    %cst_163 = arith.constant dense<0.000000e+00> : vector<8x256xf32>
    %466 = tpu.matmul %461, %465, %cst_163 {dimension_numbers = #tpu.dot_dimension_numbers<[1], [0], [0], [1], [0, 0, 1, 1], [], []>} : vector<8x128xf32>, vector<128x256xf32>, vector<8x256xf32> -> vector<8x256xf32>
    %467 = vector.extract_strided_slice %463 {offsets = [0, 0], sizes = [1, 256], strides = [1, 1]} : vector<8x256xf32> to vector<1x256xf32>
    %468 = vector.broadcast %467 : vector<1x256xf32> to vector<8x256xf32>
    %469 = arith.addf %466, %468 : vector<8x256xf32>
    %470 = vector.extract_strided_slice %469 {offsets = [0, 0], sizes = [8, 128], strides = [1, 1]} : vector<8x256xf32> to vector<8x128xf32>
    %471 = vector.extract_strided_slice %463 {offsets = [1, 0], sizes = [1, 128], strides = [1, 1]} : vector<8x256xf32> to vector<1x128xf32>
    %472 = vector.extract_strided_slice %463 {offsets = [2, 0], sizes = [1, 128], strides = [1, 1]} : vector<8x256xf32> to vector<1x128xf32>
    %cst_164 = arith.constant dense<0.000000e+00> : vector<8xf32>
    %473 = vector.multi_reduction <add>, %470, %cst_164 [1] : vector<8x128xf32> to vector<8xf32>
    %474 = vector.shape_cast %473 : vector<8xf32> to vector<8x1xf32>
    %475 = arith.mulf %470, %470 : vector<8x128xf32>
    %cst_165 = arith.constant dense<0.000000e+00> : vector<8xf32>
    %476 = vector.multi_reduction <add>, %475, %cst_165 [1] : vector<8x128xf32> to vector<8xf32>
    %477 = vector.shape_cast %476 : vector<8xf32> to vector<8x1xf32>
    %cst_166 = arith.constant 3.125000e-02 : f32
    %478 = vector.broadcast %cst_166 : f32 to vector<8x1xf32>
    %479 = arith.mulf %474, %478 : vector<8x1xf32>
    %cst_167 = arith.constant 3.125000e-02 : f32
    %480 = vector.broadcast %cst_167 : f32 to vector<8x1xf32>
    %481 = arith.mulf %477, %480 : vector<8x1xf32>
    %482 = arith.mulf %479, %479 : vector<8x1xf32>
    %483 = arith.subf %481, %482 : vector<8x1xf32>
    %484 = vector.broadcast %479 : vector<8x1xf32> to vector<8x128xf32>
    %485 = arith.subf %470, %484 : vector<8x128xf32>
    %cst_168 = arith.constant 9.99999974E-6 : f32
    %486 = vector.broadcast %cst_168 : f32 to vector<8x1xf32>
    %487 = arith.addf %483, %486 : vector<8x1xf32>
    %488 = math.rsqrt %487 : vector<8x1xf32>
    %489 = vector.broadcast %488 : vector<8x1xf32> to vector<8x128xf32>
    %490 = arith.mulf %485, %489 : vector<8x128xf32>
    %491 = vector.broadcast %471 : vector<1x128xf32> to vector<8x128xf32>
    %492 = arith.mulf %490, %491 : vector<8x128xf32>
    %493 = vector.broadcast %472 : vector<1x128xf32> to vector<8x128xf32>
    %494 = arith.addf %492, %493 : vector<8x128xf32>
    %495 = math.tanh %494 : vector<8x128xf32>
    %496 = vector.extract_strided_slice %469 {offsets = [0, 128], sizes = [8, 128], strides = [1, 1]} : vector<8x256xf32> to vector<8x128xf32>
    %c0_169 = arith.constant 0 : index
    %c0_170 = arith.constant 0 : index
    %497 = vector.load %arg4[%c0_169, %c0_170] : memref<128x128xf32, #tpu.memory_space<vmem>>, vector<128x128xf32>
    %cst_171 = arith.constant dense<0.000000e+00> : vector<8x128xf32>
    %498 = tpu.matmul %495, %497, %cst_171 {dimension_numbers = #tpu.dot_dimension_numbers<[1], [0], [0], [1], [0, 0, 1, 1], [], []>} : vector<8x128xf32>, vector<128x128xf32>, vector<8x128xf32> -> vector<8x128xf32>
    %499 = arith.addf %496, %498 : vector<8x128xf32>
    %500 = vector.broadcast %3 : vector<1x128xf32> to vector<8x128xf32>
    %501 = arith.addf %499, %500 : vector<8x128xf32>
    %cst_172 = arith.constant dense<0.000000e+00> : vector<8xf32>
    %502 = vector.multi_reduction <add>, %501, %cst_172 [1] : vector<8x128xf32> to vector<8xf32>
    %503 = vector.shape_cast %502 : vector<8xf32> to vector<8x1xf32>
    %504 = arith.mulf %501, %501 : vector<8x128xf32>
    %cst_173 = arith.constant dense<0.000000e+00> : vector<8xf32>
    %505 = vector.multi_reduction <add>, %504, %cst_173 [1] : vector<8x128xf32> to vector<8xf32>
    %506 = vector.shape_cast %505 : vector<8xf32> to vector<8x1xf32>
    %cst_174 = arith.constant 3.125000e-02 : f32
    %507 = vector.broadcast %cst_174 : f32 to vector<8x1xf32>
    %508 = arith.mulf %503, %507 : vector<8x1xf32>
    %cst_175 = arith.constant 3.125000e-02 : f32
    %509 = vector.broadcast %cst_175 : f32 to vector<8x1xf32>
    %510 = arith.mulf %506, %509 : vector<8x1xf32>
    %511 = arith.mulf %508, %508 : vector<8x1xf32>
    %512 = arith.subf %510, %511 : vector<8x1xf32>
    %513 = vector.broadcast %508 : vector<8x1xf32> to vector<8x128xf32>
    %514 = arith.subf %501, %513 : vector<8x128xf32>
    %cst_176 = arith.constant 9.99999974E-6 : f32
    %515 = vector.broadcast %cst_176 : f32 to vector<8x1xf32>
    %516 = arith.addf %512, %515 : vector<8x1xf32>
    %517 = math.rsqrt %516 : vector<8x1xf32>
    %518 = vector.broadcast %517 : vector<8x1xf32> to vector<8x128xf32>
    %519 = arith.mulf %514, %518 : vector<8x128xf32>
    %520 = vector.broadcast %4 : vector<1x128xf32> to vector<8x128xf32>
    %521 = arith.mulf %519, %520 : vector<8x128xf32>
    %522 = vector.broadcast %5 : vector<1x128xf32> to vector<8x128xf32>
    %523 = arith.addf %521, %522 : vector<8x128xf32>
    %cst_177 = arith.constant 5.000000e-01 : f32
    %524 = vector.broadcast %cst_177 : f32 to vector<8x128xf32>
    %525 = arith.mulf %524, %523 : vector<8x128xf32>
    %cst_178 = arith.constant 0.707106769 : f32
    %526 = vector.broadcast %cst_178 : f32 to vector<8x128xf32>
    %527 = arith.mulf %523, %526 : vector<8x128xf32>
    %528 = math.erf %527 : vector<8x128xf32>
    %cst_179 = arith.constant 1.000000e+00 : f32
    %529 = vector.broadcast %cst_179 : f32 to vector<8x128xf32>
    %530 = arith.addf %529, %528 : vector<8x128xf32>
    %531 = arith.mulf %525, %530 : vector<8x128xf32>
    %c7 = arith.constant 7 : index
    %c0_180 = arith.constant 0 : index
    %c0_181 = arith.constant 0 : index
    %532 = vector.load %arg7[%c7, %c0_180, %c0_181] : memref<8x8x256xf32, #tpu.memory_space<vmem>>, vector<1x8x256xf32>
    %533 = vector.shape_cast %532 : vector<1x8x256xf32> to vector<8x256xf32>
    %c7_182 = arith.constant 7 : index
    %c0_183 = arith.constant 0 : index
    %c0_184 = arith.constant 0 : index
    %534 = vector.load %arg3[%c7_182, %c0_183, %c0_184] : memref<8x128x256xf32, #tpu.memory_space<vmem>>, vector<1x128x256xf32>
    %535 = vector.shape_cast %534 : vector<1x128x256xf32> to vector<128x256xf32>
    %cst_185 = arith.constant dense<0.000000e+00> : vector<8x256xf32>
    %536 = tpu.matmul %531, %535, %cst_185 {dimension_numbers = #tpu.dot_dimension_numbers<[1], [0], [0], [1], [0, 0, 1, 1], [], []>} : vector<8x128xf32>, vector<128x256xf32>, vector<8x256xf32> -> vector<8x256xf32>
    %537 = vector.extract_strided_slice %533 {offsets = [0, 0], sizes = [1, 256], strides = [1, 1]} : vector<8x256xf32> to vector<1x256xf32>
    %538 = vector.broadcast %537 : vector<1x256xf32> to vector<8x256xf32>
    %539 = arith.addf %536, %538 : vector<8x256xf32>
    %540 = vector.extract_strided_slice %539 {offsets = [0, 0], sizes = [8, 128], strides = [1, 1]} : vector<8x256xf32> to vector<8x128xf32>
    %541 = vector.extract_strided_slice %533 {offsets = [1, 0], sizes = [1, 128], strides = [1, 1]} : vector<8x256xf32> to vector<1x128xf32>
    %542 = vector.extract_strided_slice %533 {offsets = [2, 0], sizes = [1, 128], strides = [1, 1]} : vector<8x256xf32> to vector<1x128xf32>
    %cst_186 = arith.constant dense<0.000000e+00> : vector<8xf32>
    %543 = vector.multi_reduction <add>, %540, %cst_186 [1] : vector<8x128xf32> to vector<8xf32>
    %544 = vector.shape_cast %543 : vector<8xf32> to vector<8x1xf32>
    %545 = arith.mulf %540, %540 : vector<8x128xf32>
    %cst_187 = arith.constant dense<0.000000e+00> : vector<8xf32>
    %546 = vector.multi_reduction <add>, %545, %cst_187 [1] : vector<8x128xf32> to vector<8xf32>
    %547 = vector.shape_cast %546 : vector<8xf32> to vector<8x1xf32>
    %cst_188 = arith.constant 3.125000e-02 : f32
    %548 = vector.broadcast %cst_188 : f32 to vector<8x1xf32>
    %549 = arith.mulf %544, %548 : vector<8x1xf32>
    %cst_189 = arith.constant 3.125000e-02 : f32
    %550 = vector.broadcast %cst_189 : f32 to vector<8x1xf32>
    %551 = arith.mulf %547, %550 : vector<8x1xf32>
    %552 = arith.mulf %549, %549 : vector<8x1xf32>
    %553 = arith.subf %551, %552 : vector<8x1xf32>
    %554 = vector.broadcast %549 : vector<8x1xf32> to vector<8x128xf32>
    %555 = arith.subf %540, %554 : vector<8x128xf32>
    %cst_190 = arith.constant 9.99999974E-6 : f32
    %556 = vector.broadcast %cst_190 : f32 to vector<8x1xf32>
    %557 = arith.addf %553, %556 : vector<8x1xf32>
    %558 = math.rsqrt %557 : vector<8x1xf32>
    %559 = vector.broadcast %558 : vector<8x1xf32> to vector<8x128xf32>
    %560 = arith.mulf %555, %559 : vector<8x128xf32>
    %561 = vector.broadcast %541 : vector<1x128xf32> to vector<8x128xf32>
    %562 = arith.mulf %560, %561 : vector<8x128xf32>
    %563 = vector.broadcast %542 : vector<1x128xf32> to vector<8x128xf32>
    %564 = arith.addf %562, %563 : vector<8x128xf32>
    %565 = math.tanh %564 : vector<8x128xf32>
    %566 = vector.extract_strided_slice %539 {offsets = [0, 128], sizes = [8, 128], strides = [1, 1]} : vector<8x256xf32> to vector<8x128xf32>
    %c0_191 = arith.constant 0 : index
    %c0_192 = arith.constant 0 : index
    %567 = vector.load %arg4[%c0_191, %c0_192] : memref<128x128xf32, #tpu.memory_space<vmem>>, vector<128x128xf32>
    %cst_193 = arith.constant dense<0.000000e+00> : vector<8x128xf32>
    %568 = tpu.matmul %565, %567, %cst_193 {dimension_numbers = #tpu.dot_dimension_numbers<[1], [0], [0], [1], [0, 0, 1, 1], [], []>} : vector<8x128xf32>, vector<128x128xf32>, vector<8x128xf32> -> vector<8x128xf32>
    %569 = arith.addf %566, %568 : vector<8x128xf32>
    %570 = vector.broadcast %3 : vector<1x128xf32> to vector<8x128xf32>
    %571 = arith.addf %569, %570 : vector<8x128xf32>
    %cst_194 = arith.constant dense<0.000000e+00> : vector<8xf32>
    %572 = vector.multi_reduction <add>, %571, %cst_194 [1] : vector<8x128xf32> to vector<8xf32>
    %573 = vector.shape_cast %572 : vector<8xf32> to vector<8x1xf32>
    %574 = arith.mulf %571, %571 : vector<8x128xf32>
    %cst_195 = arith.constant dense<0.000000e+00> : vector<8xf32>
    %575 = vector.multi_reduction <add>, %574, %cst_195 [1] : vector<8x128xf32> to vector<8xf32>
    %576 = vector.shape_cast %575 : vector<8xf32> to vector<8x1xf32>
    %cst_196 = arith.constant 3.125000e-02 : f32
    %577 = vector.broadcast %cst_196 : f32 to vector<8x1xf32>
    %578 = arith.mulf %573, %577 : vector<8x1xf32>
    %cst_197 = arith.constant 3.125000e-02 : f32
    %579 = vector.broadcast %cst_197 : f32 to vector<8x1xf32>
    %580 = arith.mulf %576, %579 : vector<8x1xf32>
    %581 = arith.mulf %578, %578 : vector<8x1xf32>
    %582 = arith.subf %580, %581 : vector<8x1xf32>
    %583 = vector.broadcast %578 : vector<8x1xf32> to vector<8x128xf32>
    %584 = arith.subf %571, %583 : vector<8x128xf32>
    %cst_198 = arith.constant 9.99999974E-6 : f32
    %585 = vector.broadcast %cst_198 : f32 to vector<8x1xf32>
    %586 = arith.addf %582, %585 : vector<8x1xf32>
    %587 = math.rsqrt %586 : vector<8x1xf32>
    %588 = vector.broadcast %587 : vector<8x1xf32> to vector<8x128xf32>
    %589 = arith.mulf %584, %588 : vector<8x128xf32>
    %590 = vector.broadcast %4 : vector<1x128xf32> to vector<8x128xf32>
    %591 = arith.mulf %589, %590 : vector<8x128xf32>
    %592 = vector.broadcast %5 : vector<1x128xf32> to vector<8x128xf32>
    %593 = arith.addf %591, %592 : vector<8x128xf32>
    %cst_199 = arith.constant 5.000000e-01 : f32
    %594 = vector.broadcast %cst_199 : f32 to vector<8x128xf32>
    %595 = arith.mulf %594, %593 : vector<8x128xf32>
    %cst_200 = arith.constant 0.707106769 : f32
    %596 = vector.broadcast %cst_200 : f32 to vector<8x128xf32>
    %597 = arith.mulf %593, %596 : vector<8x128xf32>
    %598 = math.erf %597 : vector<8x128xf32>
    %cst_201 = arith.constant 1.000000e+00 : f32
    %599 = vector.broadcast %cst_201 : f32 to vector<8x128xf32>
    %600 = arith.addf %599, %598 : vector<8x128xf32>
    %601 = arith.mulf %595, %600 : vector<8x128xf32>
    %c0_202 = arith.constant 0 : index
    %c0_203 = arith.constant 0 : index
    %602 = vector.load %arg5[%c0_202, %c0_203] : memref<128x128xf32, #tpu.memory_space<vmem>>, vector<128x128xf32>
    %cst_204 = arith.constant dense<0.000000e+00> : vector<8x128xf32>
    %603 = tpu.matmul %601, %602, %cst_204 {dimension_numbers = #tpu.dot_dimension_numbers<[1], [0], [0], [1], [0, 0, 1, 1], [], []>} : vector<8x128xf32>, vector<128x128xf32>, vector<8x128xf32> -> vector<8x128xf32>
    %604 = vector.broadcast %6 : vector<1x128xf32> to vector<8x128xf32>
    %605 = arith.addf %603, %604 : vector<8x128xf32>
    %cst_205 = arith.constant 29.034441 : f32
    %606 = vector.broadcast %cst_205 : f32 to vector<8x128xf32>
    %607 = arith.mulf %605, %606 : vector<8x128xf32>
    %c0_206 = arith.constant 0 : index
    %c0_207 = arith.constant 0 : index
    %608 = vector.load %arg8[%c0_206, %c0_207] : memref<8x128xf32, #tpu.memory_space<vmem>>, vector<8x128xf32>
    tpu.vector_store %arg8[%c0_206, %c0_207], %607 {strides = array<i32>} : memref<8x128xf32, #tpu.memory_space<vmem>>, vector<8x128xf32>,
    return
  }
  func.func @transform_0(%arg0: i32) -> (i32, i32) {
    %c0_i32 = arith.constant 0 : i32
    %c0_i32_0 = arith.constant 0 : i32
    return %arg0, %c0_i32 : i32, i32
  }
  func.func @transform_1(%arg0: i32) -> (i32, i32) {
    %c0_i32 = arith.constant 0 : i32
    %c0_i32_0 = arith.constant 0 : i32
    %c0_i32_1 = arith.constant 0 : i32
    return %c0_i32, %c0_i32_0 : i32, i32
  }
  func.func @transform_2(%arg0: i32) -> (i32, i32, i32) {
    %c0_i32 = arith.constant 0 : i32
    %c0_i32_0 = arith.constant 0 : i32
    %c0_i32_1 = arith.constant 0 : i32
    %c0_i32_2 = arith.constant 0 : i32
    return %c0_i32, %c0_i32_0, %c0_i32_1 : i32, i32, i32
  }
  func.func @transform_3(%arg0: i32) -> (i32, i32) {
    %c0_i32 = arith.constant 0 : i32
    %c0_i32_0 = arith.constant 0 : i32
    %c0_i32_1 = arith.constant 0 : i32
    return %c0_i32, %c0_i32_0 : i32, i32
  }
  func.func @transform_4(%arg0: i32) -> (i32, i32) {
    %c0_i32 = arith.constant 0 : i32
    %c0_i32_0 = arith.constant 0 : i32
    %c0_i32_1 = arith.constant 0 : i32
    return %c0_i32, %c0_i32_0 : i32, i32
  }
  func.func @transform_5(%arg0: i32) -> (i32, i32) {
    %c0_i32 = arith.constant 0 : i32
    %c0_i32_0 = arith.constant 0 : i32
    %c0_i32_1 = arith.constant 0 : i32
    return %c0_i32, %c0_i32_0 : i32, i32
  }
  func.func @transform_6(%arg0: i32) -> (i32, i32, i32) {
    %c0_i32 = arith.constant 0 : i32
    %c0_i32_0 = arith.constant 0 : i32
    %c0_i32_1 = arith.constant 0 : i32
    %c0_i32_2 = arith.constant 0 : i32
    return %c0_i32, %c0_i32_0, %c0_i32_1 : i32, i32, i32
  }
  func.func @transform_7(%arg0: i32) -> (i32, i32) {
    %c0_i32 = arith.constant 0 : i32
    %c0_i32_0 = arith.constant 0 : i32
    return %arg0, %c0_i32 : i32, i32
  }
}

</mosaic_0001>

<llo_original>
// kernel: tpu_custom_call.1
$region0: #{tpu_custom_call.1}
  #allocation0 [shape = 'u32[]', space=smem, size = 0x4, offset = 0x4, fixed_abs, tag = 'smem constant byte address 0x4 - core index']
  #allocation1 [shape = 'u32[144,128]{1,0:T(1,128)}', space=vmem, size = 0x12000, scoped, tag = 'internal scratch']
  %s0 = inlined_call_operand.hbm [shape: f32[8,128], index: 0, kind: input, shape index: {}]
  %s1 = inlined_call_operand.hbm [shape: f32[128,128], index: 1, kind: input, shape index: {}]
  %s2 = inlined_call_operand.hbm [shape: f32[8,128,256], index: 2, kind: input, shape index: {}]
  %s3 = inlined_call_operand.hbm [shape: f32[128,128], index: 3, kind: input, shape index: {}]
  %s4 = inlined_call_operand.hbm [shape: f32[128,128], index: 4, kind: input, shape index: {}]
  %s5 = inlined_call_operand.vmem [shape: f32[8,128], index: 5, kind: input, shape index: {}]
  %s6 = inlined_call_operand.hbm [shape: f32[8,8,256], index: 6, kind: input, shape index: {}]
  %s7 = inlined_call_operand.hbm [shape: f32[8,128], index: 7, kind: output, shape index: {}]
  %s8 = sld [smem:[#allocation0]]
  $region62: #{tpu_custom_call.1} parent=0
    _
  %s10 = ssub.s32 1, %s8
  %s11 = scalar_select 0, %s10, %s8
  $region1: #{tpu_custom_call.1} parent=0
    #allocation2 [shape = 'u8[4096]{0}', space=vmem, size = 0x1000, scoped, tag = 'input window, operand 0, single buffered']
    #allocation3 [shape = 's32[1]{0}', space=sflag, size = 0x4, scoped, tag = 'scoped memory for tpu_custom_call.1']
    #allocation4 [shape = 's32[1]{0}', space=sflag, size = 0x4, scoped, tag = 'scoped memory for tpu_custom_call.1']
    #allocation5 [shape = 'u8[65536]{0}', space=vmem, size = 0x10000, scoped, tag = 'input window, operand 1, single buffered']
    #allocation6 [shape = 's32[1]{0}', space=sflag, size = 0x4, scoped, tag = 'scoped memory for tpu_custom_call.1']
    #allocation7 [shape = 'u8[1048576]{0}', space=vmem, size = 0x100000, scoped, tag = 'input window, operand 2, single buffered']
    #allocation8 [shape = 'u8[65536]{0}', space=vmem, size = 0x10000, scoped, tag = 'input window, operand 3, single buffered']
    #allocation9 [shape = 's32[1]{0}', space=sflag, size = 0x4, scoped, tag = 'scoped memory for tpu_custom_call.1']
    #allocation10 [shape = 'u8[65536]{0}', space=vmem, size = 0x10000, scoped, tag = 'input window, operand 4, single buffered']
    #allocation11 [shape = 'u8[65536]{0}', space=vmem, size = 0x10000, scoped, tag = 'input window, operand 6, single buffered']
    #allocation12 [shape = 's32[1]{0}', space=sflag, size = 0x4, scoped, tag = 'scoped memory for tpu_custom_call.1']
    #allocation13 [shape = 'u8[4096]{0}', space=vmem, size = 0x1000, scoped, tag = 'output window, operand 0, single buffered']
    %12 = vsyncpa [#allocation3], 0
    %13 = vsyncpa [#allocation6], 0
    %14 = vsyncpa [#allocation9], 0
    %15 = vsyncpa [#allocation12], 0
    %16 = vsyncpa [#allocation4], 0
    // Predicated region
    $region2: #{tpu_custom_call.1} parent=1 // pred_check
      _
    $region3: #{tpu_custom_call.1} parent=1 // pred_check_branch
      %18 = sbr.rel (0) target = $region5
    $region4: #{tpu_custom_call.1} parent=1 // pred_region
      %s20 = ssub.s32 128, 128
      %21 = vsyncadd [#allocation3], %s20
      %s23 = sshll.u32 [#allocation2], 4
      %s24 = int_to_ptr.vmem [resolvable:$true] %s23
      %26 = dma.hbm_to_vmem [thread:$0]  %s0, 128, %s24, [#allocation3]
    $region5: #{tpu_custom_call.1} parent=1 // pred_fallthru
      _
    // Predicated region
    $region6: #{tpu_custom_call.1} parent=1 // pred_check
      _
    $region7: #{tpu_custom_call.1} parent=1 // pred_check_branch
      %28 = sbr.rel (0) target = $region9
    $region8: #{tpu_custom_call.1} parent=1 // pred_region
      %s30 = ssub.s32 2048, 2048
      %31 = vsyncadd [#allocation6], %s30
      %s32 = sshll.u32 [#allocation5], 4
      %s33 = int_to_ptr.vmem [resolvable:$true] %s32
      %38 = dma.hbm_to_vmem [thread:$0]  %s1, 2048, %s33, [#allocation6], 128, 128, 8
    $region9: #{tpu_custom_call.1} parent=1 // pred_fallthru
      _
    // Predicated region
    $region10: #{tpu_custom_call.1} parent=1 // pred_check
      _
    $region11: #{tpu_custom_call.1} parent=1 // pred_check_branch
      %40 = sbr.rel (0) target = $region13
    $region12: #{tpu_custom_call.1} parent=1 // pred_region
      %s42 = ssub.s32 32768, 32768
      %43 = vsyncadd [#allocation6], %s42
      %s44 = sshll.u32 [#allocation7], 4
      %s45 = int_to_ptr.vmem [resolvable:$true] %s44
      %50 = dma.hbm_to_vmem [thread:$0]  %s2, 32768, %s45, [#allocation6], 256, 256, 16
    $region13: #{tpu_custom_call.1} parent=1 // pred_fallthru
      _
    // Predicated region
    $region14: #{tpu_custom_call.1} parent=1 // pred_check
      _
    $region15: #{tpu_custom_call.1} parent=1 // pred_check_branch
      %52 = sbr.rel (0) target = $region17
    $region16: #{tpu_custom_call.1} parent=1 // pred_region
      %s54 = ssub.s32 2048, 2048
      %55 = vsyncadd [#allocation9], %s54
      %s56 = sshll.u32 [#allocation8], 4
      %s57 = int_to_ptr.vmem [resolvable:$true] %s56
      %62 = dma.hbm_to_vmem [thread:$0]  %s3, 2048, %s57, [#allocation9], 128, 128, 8
    $region17: #{tpu_custom_call.1} parent=1 // pred_fallthru
      _
    // Predicated region
    $region18: #{tpu_custom_call.1} parent=1 // pred_check
      _
    $region19: #{tpu_custom_call.1} parent=1 // pred_check_branch
      %64 = sbr.rel (0) target = $region21
    $region20: #{tpu_custom_call.1} parent=1 // pred_region
      %s66 = ssub.s32 2048, 2048
      %67 = vsyncadd [#allocation9], %s66
      %s68 = sshll.u32 [#allocation10], 4
      %s69 = int_to_ptr.vmem [resolvable:$true] %s68
      %74 = dma.hbm_to_vmem [thread:$0]  %s4, 2048, %s69, [#allocation9], 128, 128, 8
    $region21: #{tpu_custom_call.1} parent=1 // pred_fallthru
      _
    // Predicated region
    $region22: #{tpu_custom_call.1} parent=1 // pred_check
      _
    $region23: #{tpu_custom_call.1} parent=1 // pred_check_branch
      %76 = sbr.rel (0) target = $region25
    $region24: #{tpu_custom_call.1} parent=1 // pred_region
      _
    $region25: #{tpu_custom_call.1} parent=1 // pred_fallthru
      _
    // Predicated region
    $region26: #{tpu_custom_call.1} parent=1 // pred_check
      _
    $region27: #{tpu_custom_call.1} parent=1 // pred_check_branch
      %78 = sbr.rel (0) target = $region29
    $region28: #{tpu_custom_call.1} parent=1 // pred_region
      %s80 = ssub.s32 2048, 2048
      %81 = vsyncadd [#allocation12], %s80
      %s82 = sshll.u32 [#allocation11], 4
      %s83 = int_to_ptr.vmem [resolvable:$true] %s82
      %88 = dma.hbm_to_vmem [thread:$0]  %s6, 2048, %s83, [#allocation12], 256, 256, 16
    $region29: #{tpu_custom_call.1} parent=1 // pred_fallthru
      _
    // Predicated region
    $region30: #{tpu_custom_call.1} parent=1 // pred_check
      _
    $region31: #{tpu_custom_call.1} parent=1 // pred_check_branch
      %90 = sbr.rel (0) target = $region33
    $region32: #{tpu_custom_call.1} parent=1 // pred_region
      %91 = dma.done [#allocation3], 128
    $region33: #{tpu_custom_call.1} parent=1 // pred_fallthru
      _
    // Predicated region
    $region34: #{tpu_custom_call.1} parent=1 // pred_check
      _
    $region35: #{tpu_custom_call.1} parent=1 // pred_check_branch
      %93 = sbr.rel (0) target = $region37
    $region36: #{tpu_custom_call.1} parent=1 // pred_region
      %94 = dma.done [#allocation6], 2048
    $region37: #{tpu_custom_call.1} parent=1 // pred_fallthru
      _
    // Predicated region
    $region38: #{tpu_custom_call.1} parent=1 // pred_check
      _
    $region39: #{tpu_custom_call.1} parent=1 // pred_check_branch
      %96 = sbr.rel (0) target = $region41
    $region40: #{tpu_custom_call.1} parent=1 // pred_region
      %97 = dma.done [#allocation6], 32768
    $region41: #{tpu_custom_call.1} parent=1 // pred_fallthru
      _
    // Predicated region
    $region42: #{tpu_custom_call.1} parent=1 // pred_check
      _
    $region43: #{tpu_custom_call.1} parent=1 // pred_check_branch
      %99 = sbr.rel (0) target = $region45
    $region44: #{tpu_custom_call.1} parent=1 // pred_region
      %100 = dma.done [#allocation9], 2048
    $region45: #{tpu_custom_call.1} parent=1 // pred_fallthru
      _
    // Predicated region
    $region46: #{tpu_custom_call.1} parent=1 // pred_check
      _
    $region47: #{tpu_custom_call.1} parent=1 // pred_check_branch
      %102 = sbr.rel (0) target = $region49
    $region48: #{tpu_custom_call.1} parent=1 // pred_region
      %103 = dma.done [#allocation9], 2048
    $region49: #{tpu_custom_call.1} parent=1 // pred_fallthru
      _
    // Predicated region
    $region50: #{tpu_custom_call.1} parent=1 // pred_check
      _
    $region51: #{tpu_custom_call.1} parent=1 // pred_check_branch
      %105 = sbr.rel (0) target = $region53
    $region52: #{tpu_custom_call.1} parent=1 // pred_region
      %106 = dma.done [#allocation12], 2048
    $region53: #{tpu_custom_call.1} parent=1 // pred_fallthru
      _
    %v107 = vld [vmem:[%s5] sm:$0x1]
    %v108 = vld [vmem:[%s5 + $0x1] sm:$0x1]
    %v109 = vld [vmem:[%s5 + $0x2] sm:$0x1]
    %v110 = vld [vmem:[%s5 + $0x3] sm:$0x1]
    %v111 = vld [vmem:[%s5 + $0x4] sm:$0x1]
    %v112 = vld [vmem:[%s5 + $0x5] sm:$0x1]
    %v113 = vld [vmem:[%s5 + $0x6] sm:$0x1]
    %v114 = vld [vmem:[#allocation2] sm:$0xff]
    %v115 = vld [vmem:[#allocation5] sm:$0xff]
    %v116 = vld [vmem:[#allocation5 + $0x8] sm:$0xff]
    %v117 = vld [vmem:[#allocation5 + $0x10] sm:$0xff]
    %v118 = vld [vmem:[#allocation5 + $0x18] sm:$0xff]
    %v119 = vld [vmem:[#allocation5 + $0x20] sm:$0xff]
    %v120 = vld [vmem:[#allocation5 + $0x28] sm:$0xff]
    %v121 = vld [vmem:[#allocation5 + $0x30] sm:$0xff]
    %v122 = vld [vmem:[#allocation5 + $0x38] sm:$0xff]
    %v123 = vld [vmem:[#allocation5 + $0x40] sm:$0xff]
    %v124 = vld [vmem:[#allocation5 + $0x48] sm:$0xff]
    %v125 = vld [vmem:[#allocation5 + $0x50] sm:$0xff]
    %v126 = vld [vmem:[#allocation5 + $0x58] sm:$0xff]
    %v127 = vld [vmem:[#allocation5 + $0x60] sm:$0xff]
    %v128 = vld [vmem:[#allocation5 + $0x68] sm:$0xff]
    %v129 = vld [vmem:[#allocation5 + $0x70] sm:$0xff]
    %v130 = vld [vmem:[#allocation5 + $0x78] sm:$0xff]
    %v131 = vlaneseq
    %v132 = vshrl.u32 %v131, 7
    %v133 = vsub.s32 0, %v132
    %v134 = vrot.slane %v107, %v133
    %135 = vmatprep.subr.mxu0 0.0
    %136 = vmatpush1.msra.mxu0 %v115
    %137 = vmatprep.subr.mxu0 0.0
    %138 = vmatpush1.msra.mxu0 %v116
    %139 = vmatprep.subr.mxu0 0.0
    %140 = vmatpush1.msra.mxu0 %v117
    %141 = vmatprep.subr.mxu0 0.0
    %142 = vmatpush1.msra.mxu0 %v118
    %143 = vmatprep.subr.mxu0 0.0
    %144 = vmatpush1.msra.mxu0 %v119
    %145 = vmatprep.subr.mxu0 0.0
    %146 = vmatpush1.msra.mxu0 %v120
    %147 = vmatprep.subr.mxu0 0.0
    %148 = vmatpush1.msra.mxu0 %v121
    %149 = vmatprep.subr.mxu0 0.0
    %150 = vmatpush1.msra.mxu0 %v122
    %151 = vmatprep.subr.mxu0 0.0
    %152 = vmatpush1.msra.mxu0 %v123
    %153 = vmatprep.subr.mxu0 0.0
    %154 = vmatpush1.msra.mxu0 %v124
    %155 = vmatprep.subr.mxu0 0.0
    %156 = vmatpush1.msra.mxu0 %v125
    %157 = vmatprep.subr.mxu0 0.0
    %158 = vmatpush1.msra.mxu0 %v126
    %159 = vmatprep.subr.mxu0 0.0
    %160 = vmatpush1.msra.mxu0 %v127
    %161 = vmatprep.subr.mxu0 0.0
    %162 = vmatpush1.msra.mxu0 %v128
    %163 = vmatprep.subr.mxu0 0.0
    %164 = vmatpush1.msra.mxu0 %v129
    %165 = vmatprep.subr.mxu0 0.0
    %166 = vmatpush1.msra.mxu0 %v130
    %167 = vmatprep.subr.mxu0 0.0
    %168 = vmatpush1.msra.mxu0 0.0
    %169 = vmatprep.subr.mxu0 0.0
    %170 = vmatpush1.msra.mxu0 0.0
    %171 = vmatprep.subr.mxu0 0.0
    %172 = vmatpush1.msra.mxu0 0.0
    %173 = vmatprep.subr.mxu0 0.0
    %174 = vmatpush1.msra.mxu0 0.0
    %175 = vmatprep.subr.mxu0 0.0
    %176 = vmatpush1.msra.mxu0 0.0
    %177 = vmatprep.subr.mxu0 0.0
    %178 = vmatpush1.msra.mxu0 0.0
    %179 = vmatprep.subr.mxu0 0.0
    %180 = vmatpush1.msra.mxu0 0.0
    %181 = vmatprep.subr.mxu0 0.0
    %182 = vmatpush1.msra.mxu0 0.0
    %183 = vmatprep.subr.mxu0 0.0
    %184 = vmatpush1.msra.mxu0 0.0
    %185 = vmatprep.subr.mxu0 0.0
    %186 = vmatpush1.msra.mxu0 0.0
    %187 = vmatprep.subr.mxu0 0.0
    %188 = vmatpush1.msra.mxu0 0.0
    %189 = vmatprep.subr.mxu0 0.0
    %190 = vmatpush1.msra.mxu0 0.0
    %191 = vmatprep.subr.mxu0 0.0
    %192 = vmatpush1.msra.mxu0 0.0
    %193 = vmatprep.subr.mxu0 0.0
    %194 = vmatpush1.msra.mxu0 0.0
    %195 = vmatprep.subr.mxu0 0.0
    %196 = vmatpush1.msra.mxu0 0.0
    %197 = vmatprep.subr.mxu0 0.0
    %198 = vmatpush1.msra.mxu0 0.0
    %199 = vmatprep.mubr.f32.mxu0 0.0
    %200 = vmatmul.mubr.f32.gmra.mrb[0].mxu0 %v114
    %v201 = vpop.f32.mrb[0].mxu0
    %v202 = vadd.f32 %v134, %v201
    %v203 = vpop.f32.mrb[0].mxu0
    %204 = vdwg.mxu0
    %205 = vadd.xlane.f32.xlu0 %v202
    %v206 = vpop.xlane.xlu0 %205
    %v207 = vmul.f32 %v202, %v202
    %208 = vadd.xlane.f32.xlu0 %v207
    %v209 = vpop.xlane.xlu0 %208
    %v210 = vmul.f32 %v206, 0.03125
    %v211 = vmul.f32 %v209, 0.03125
    %v212 = vmul.f32 %v210, %v210
    %v213 = vsub.f32 %v211, %v212
    %v214 = vsub.f32 %v202, %v210
    %v215 = vadd.f32 %v213, 1e-05
    %v216 = vrsqrt.pop %v215
    %v217 = vmul.f32 %v214, %v216
    %v218 = vlaneseq
    %v219 = vshrl.u32 %v218, 7
    %v220 = vsub.s32 0, %v219
    %v221 = vrot.slane %v108, %v220
    %v222 = vmul.f32 %v217, %v221
    %v223 = vlaneseq
    %v224 = vshrl.u32 %v223, 7
    %v225 = vsub.s32 0, %v224
    %v226 = vrot.slane %v109, %v225
    %v227 = vadd.f32 %v222, %v226
    %v228 = vmul.f32 %v227, 0.5
    %v229 = vmul.f32 %v227, 0.70710677
    %v230 = verf.f32.pop %v229
    %v231 = vadd.f32 %v230, 1.0
    %v232 = vmul.f32 %v228, %v231
    %v233 = vld [vmem:[#allocation11] sm:$0xff]
    %v234 = vld [vmem:[#allocation11 + $0x8] sm:$0xff]
    %v235 = vld [vmem:[#allocation7] sm:$0xff]
    %v236 = vld [vmem:[#allocation7 + $0x8] sm:$0xff]
    %v237 = vld [vmem:[#allocation7 + $0x10] sm:$0xff]
    %v238 = vld [vmem:[#allocation7 + $0x18] sm:$0xff]
    %v239 = vld [vmem:[#allocation7 + $0x20] sm:$0xff]
    %v240 = vld [vmem:[#allocation7 + $0x28] sm:$0xff]
    %v241 = vld [vmem:[#allocation7 + $0x30] sm:$0xff]
    %v242 = vld [vmem:[#allocation7 + $0x38] sm:$0xff]
    %v243 = vld [vmem:[#allocation7 + $0x40] sm:$0xff]
    %v244 = vld [vmem:[#allocation7 + $0x48] sm:$0xff]
    %v245 = vld [vmem:[#allocation7 + $0x50] sm:$0xff]
    %v246 = vld [vmem:[#allocation7 + $0x58] sm:$0xff]
    %v247 = vld [vmem:[#allocation7 + $0x60] sm:$0xff]
    %v248 = vld [vmem:[#allocation7 + $0x68] sm:$0xff]
    %v249 = vld [vmem:[#allocation7 + $0x70] sm:$0xff]
    %v250 = vld [vmem:[#allocation7 + $0x78] sm:$0xff]
    %v251 = vld [vmem:[#allocation7 + $0x80] sm:$0xff]
    %v252 = vld [vmem:[#allocation7 + $0x88] sm:$0xff]
    %v253 = vld [vmem:[#allocation7 + $0x90] sm:$0xff]
    %v254 = vld [vmem:[#allocation7 + $0x98] sm:$0xff]
    %v255 = vld [vmem:[#allocation7 + $0xa0] sm:$0xff]
    %v256 = vld [vmem:[#allocation7 + $0xa8] sm:$0xff]
    %v257 = vld [vmem:[#allocation7 + $0xb0] sm:$0xff]
    %v258 = vld [vmem:[#allocation7 + $0xb8] sm:$0xff]
    %v259 = vld [vmem:[#allocation7 + $0xc0] sm:$0xff]
    %v260 = vld [vmem:[#allocation7 + $0xc8] sm:$0xff]
    %v261 = vld [vmem:[#allocation7 + $0xd0] sm:$0xff]
    %v262 = vld [vmem:[#allocation7 + $0xd8] sm:$0xff]
    %v263 = vld [vmem:[#allocation7 + $0xe0] sm:$0xff]
    %v264 = vld [vmem:[#allocation7 + $0xe8] sm:$0xff]
    %v265 = vld [vmem:[#allocation7 + $0xf0] sm:$0xff]
    %v266 = vld [vmem:[#allocation7 + $0xf8] sm:$0xff]
    %v267 = vlaneseq
    %v268 = vshrl.u32 %v267, 7
    %v269 = vsub.s32 0, %v268
    %v270 = vrot.slane %v233, %v269
    %v271 = vlaneseq
    %v272 = vshrl.u32 %v271, 7
    %v273 = vsub.s32 0, %v272
    %v274 = vrot.slane %v234, %v273
    %275 = vmatprep.subr.mxu0 %v236
    %276 = vmatpush1.msra.mxu0 %v235
    %277 = vmatprep.subr.mxu0 %v238
    %278 = vmatpush1.msra.mxu0 %v237
    %279 = vmatprep.subr.mxu0 %v240
    %280 = vmatpush1.msra.mxu0 %v239
    %281 = vmatprep.subr.mxu0 %v242
    %282 = vmatpush1.msra.mxu0 %v241
    %283 = vmatprep.subr.mxu0 %v244
    %284 = vmatpush1.msra.mxu0 %v243
    %285 = vmatprep.subr.mxu0 %v246
    %286 = vmatpush1.msra.mxu0 %v245
    %287 = vmatprep.subr.mxu0 %v248
    %288 = vmatpush1.msra.mxu0 %v247
    %289 = vmatprep.subr.mxu0 %v250
    %290 = vmatpush1.msra.mxu0 %v249
    %291 = vmatprep.subr.mxu0 %v252
    %292 = vmatpush1.msra.mxu0 %v251
    %293 = vmatprep.subr.mxu0 %v254
    %294 = vmatpush1.msra.mxu0 %v253
    %295 = vmatprep.subr.mxu0 %v256
    %296 = vmatpush1.msra.mxu0 %v255
    %297 = vmatprep.subr.mxu0 %v258
    %298 = vmatpush1.msra.mxu0 %v257
    %299 = vmatprep.subr.mxu0 %v260
    %300 = vmatpush1.msra.mxu0 %v259
    %301 = vmatprep.subr.mxu0 %v262
    %302 = vmatpush1.msra.mxu0 %v261
    %303 = vmatprep.subr.mxu0 %v264
    %304 = vmatpush1.msra.mxu0 %v263
    %305 = vmatprep.subr.mxu0 %v266
    %306 = vmatpush1.msra.mxu0 %v265
    %307 = vmatprep.subr.mxu0 0.0
    %308 = vmatpush1.msra.mxu0 0.0
    %309 = vmatprep.subr.mxu0 0.0
    %310 = vmatpush1.msra.mxu0 0.0
    %311 = vmatprep.subr.mxu0 0.0
    %312 = vmatpush1.msra.mxu0 0.0
    %313 = vmatprep.subr.mxu0 0.0
    %314 = vmatpush1.msra.mxu0 0.0
    %315 = vmatprep.subr.mxu0 0.0
    %316 = vmatpush1.msra.mxu0 0.0
    %317 = vmatprep.subr.mxu0 0.0
    %318 = vmatpush1.msra.mxu0 0.0
    %319 = vmatprep.subr.mxu0 0.0
    %320 = vmatpush1.msra.mxu0 0.0
    %321 = vmatprep.subr.mxu0 0.0
    %322 = vmatpush1.msra.mxu0 0.0
    %323 = vmatprep.subr.mxu0 0.0
    %324 = vmatpush1.msra.mxu0 0.0
    %325 = vmatprep.subr.mxu0 0.0
    %326 = vmatpush1.msra.mxu0 0.0
    %327 = vmatprep.subr.mxu0 0.0
    %328 = vmatpush1.msra.mxu0 0.0
    %329 = vmatprep.subr.mxu0 0.0
    %330 = vmatpush1.msra.mxu0 0.0
    %331 = vmatprep.subr.mxu0 0.0
    %332 = vmatpush1.msra.mxu0 0.0
    %333 = vmatprep.subr.mxu0 0.0
    %334 = vmatpush1.msra.mxu0 0.0
    %335 = vmatprep.subr.mxu0 0.0
    %336 = vmatpush1.msra.mxu0 0.0
    %337 = vmatprep.subr.mxu0 0.0
    %338 = vmatpush1.msra.mxu0 0.0
    %339 = vmatprep.mubr.f32.mxu0 0.0
    %340 = vmatmul.mubr.f32.gmra.mrb[0].mxu0 %v232
    %v341 = vpop.f32.mrb[0].mxu0
    %v342 = vadd.f32 %v270, %v341
    %v343 = vpop.f32.mrb[0].mxu0
    %v344 = vadd.f32 %v274, %v343
    %345 = vdwg.mxu0
    %346 = vadd.xlane.f32.xlu0 %v342
    %v347 = vpop.xlane.xlu0 %346
    %v348 = vmul.f32 %v342, %v342
    %349 = vadd.xlane.f32.xlu0 %v348
    %v350 = vpop.xlane.xlu0 %349
    %v351 = vmul.f32 %v347, 0.03125
    %v352 = vmul.f32 %v350, 0.03125
    %v353 = vmul.f32 %v351, %v351
    %v354 = vsub.f32 %v352, %v353
    %v355 = vsub.f32 %v342, %v351
    %v356 = vadd.f32 %v354, 1e-05
    %v357 = vrsqrt.pop %v356
    %v358 = vmul.f32 %v355, %v357
    %v359 = vlaneseq
    %v360 = vshrl.u32 %v359, 7
    %v361 = vsub.s32 1, %v360
    %v362 = vrot.slane %v233, %v361
    %v363 = vmul.f32 %v358, %v362
    %v364 = vlaneseq
    %v365 = vshrl.u32 %v364, 7
    %v366 = vsub.s32 2, %v365
    %v367 = vrot.slane %v233, %v366
    %v368 = vadd.f32 %v363, %v367
    %v369 = vtanh.pop %v368
    %v370 = vld [vmem:[#allocation8] sm:$0xff]
    %v371 = vld [vmem:[#allocation8 + $0x8] sm:$0xff]
    %v372 = vld [vmem:[#allocation8 + $0x10] sm:$0xff]
    %v373 = vld [vmem:[#allocation8 + $0x18] sm:$0xff]
    %v374 = vld [vmem:[#allocation8 + $0x20] sm:$0xff]
    %v375 = vld [vmem:[#allocation8 + $0x28] sm:$0xff]
    %v376 = vld [vmem:[#allocation8 + $0x30] sm:$0xff]
    %v377 = vld [vmem:[#allocation8 + $0x38] sm:$0xff]
    %v378 = vld [vmem:[#allocation8 + $0x40] sm:$0xff]
    %v379 = vld [vmem:[#allocation8 + $0x48] sm:$0xff]
    %v380 = vld [vmem:[#allocation8 + $0x50] sm:$0xff]
    %v381 = vld [vmem:[#allocation8 + $0x58] sm:$0xff]
    %v382 = vld [vmem:[#allocation8 + $0x60] sm:$0xff]
    %v383 = vld [vmem:[#allocation8 + $0x68] sm:$0xff]
    %v384 = vld [vmem:[#allocation8 + $0x70] sm:$0xff]
    %v385 = vld [vmem:[#allocation8 + $0x78] sm:$0xff]
    %386 = vmatprep.subr.mxu0 0.0
    %387 = vmatpush1.msra.mxu0 %v370
    %388 = vmatprep.subr.mxu0 0.0
    %389 = vmatpush1.msra.mxu0 %v371
    %390 = vmatprep.subr.mxu0 0.0
    %391 = vmatpush1.msra.mxu0 %v372
    %392 = vmatprep.subr.mxu0 0.0
    %393 = vmatpush1.msra.mxu0 %v373
    %394 = vmatprep.subr.mxu0 0.0
    %395 = vmatpush1.msra.mxu0 %v374
    %396 = vmatprep.subr.mxu0 0.0
    %397 = vmatpush1.msra.mxu0 %v375
    %398 = vmatprep.subr.mxu0 0.0
    %399 = vmatpush1.msra.mxu0 %v376
    %400 = vmatprep.subr.mxu0 0.0
    %401 = vmatpush1.msra.mxu0 %v377
    %402 = vmatprep.subr.mxu0 0.0
    %403 = vmatpush1.msra.mxu0 %v378
    %404 = vmatprep.subr.mxu0 0.0
    %405 = vmatpush1.msra.mxu0 %v379
    %406 = vmatprep.subr.mxu0 0.0
    %407 = vmatpush1.msra.mxu0 %v380
    %408 = vmatprep.subr.mxu0 0.0
    %409 = vmatpush1.msra.mxu0 %v381
    %410 = vmatprep.subr.mxu0 0.0
    %411 = vmatpush1.msra.mxu0 %v382
    %412 = vmatprep.subr.mxu0 0.0
    %413 = vmatpush1.msra.mxu0 %v383
    %414 = vmatprep.subr.mxu0 0.0
    %415 = vmatpush1.msra.mxu0 %v384
    %416 = vmatprep.subr.mxu0 0.0
    %417 = vmatpush1.msra.mxu0 %v385
    %418 = vmatprep.subr.mxu0 0.0
    %419 = vmatpush1.msra.mxu0 0.0
    %420 = vmatprep.subr.mxu0 0.0
    %421 = vmatpush1.msra.mxu0 0.0
    %422 = vmatprep.subr.mxu0 0.0
    %423 = vmatpush1.msra.mxu0 0.0
    %424 = vmatprep.subr.mxu0 0.0
    %425 = vmatpush1.msra.mxu0 0.0
    %426 = vmatprep.subr.mxu0 0.0
    %427 = vmatpush1.msra.mxu0 0.0
    %428 = vmatprep.subr.mxu0 0.0
    %429 = vmatpush1.msra.mxu0 0.0
    %430 = vmatprep.subr.mxu0 0.0
    %431 = vmatpush1.msra.mxu0 0.0
    %432 = vmatprep.subr.mxu0 0.0
    %433 = vmatpush1.msra.mxu0 0.0
    %434 = vmatprep.subr.mxu0 0.0
    %435 = vmatpush1.msra.mxu0 0.0
    %436 = vmatprep.subr.mxu0 0.0
    %437 = vmatpush1.msra.mxu0 0.0
    %438 = vmatprep.subr.mxu0 0.0
    %439 = vmatpush1.msra.mxu0 0.0
    %440 = vmatprep.subr.mxu0 0.0
    %441 = vmatpush1.msra.mxu0 0.0
    %442 = vmatprep.subr.mxu0 0.0
    %443 = vmatpush1.msra.mxu0 0.0
    %444 = vmatprep.subr.mxu0 0.0
    %445 = vmatpush1.msra.mxu0 0.0
    %446 = vmatprep.subr.mxu0 0.0
    %447 = vmatpush1.msra.mxu0 0.0
    %448 = vmatprep.subr.mxu0 0.0
    %449 = vmatpush1.msra.mxu0 0.0
    %450 = vmatprep.mubr.f32.mxu0 0.0
    %451 = vmatmul.mubr.f32.gmra.mrb[0].mxu0 %v369
    %v452 = vpop.f32.mrb[0].mxu0
    %v453 = vadd.f32 0.0, %v452
    %v454 = vpop.f32.mrb[0].mxu0
    %455 = vdwg.mxu0
    %v456 = vadd.f32 %v344, %v453
    %v457 = vlaneseq
    %v458 = vshrl.u32 %v457, 7
    %v459 = vsub.s32 0, %v458
    %v460 = vrot.slane %v110, %v459
    %v461 = vadd.f32 %v456, %v460
    %462 = vadd.xlane.f32.xlu0 %v461
    %v463 = vpop.xlane.xlu0 %462
    %v464 = vmul.f32 %v461, %v461
    %465 = vadd.xlane.f32.xlu0 %v464
    %v466 = vpop.xlane.xlu0 %465
    %v467 = vmul.f32 %v463, 0.03125
    %v468 = vmul.f32 %v466, 0.03125
    %v469 = vmul.f32 %v467, %v467
    %v470 = vsub.f32 %v468, %v469
    %v471 = vsub.f32 %v461, %v467
    %v472 = vadd.f32 %v470, 1e-05
    %v473 = vrsqrt.pop %v472
    %v474 = vmul.f32 %v471, %v473
    %v475 = vlaneseq
    %v476 = vshrl.u32 %v475, 7
    %v477 = vsub.s32 0, %v476
    %v478 = vrot.slane %v111, %v477
    %v479 = vmul.f32 %v474, %v478
    %v480 = vlaneseq
    %v481 = vshrl.u32 %v480, 7
    %v482 = vsub.s32 0, %v481
    %v483 = vrot.slane %v112, %v482
    %v484 = vadd.f32 %v479, %v483
    %v485 = vmul.f32 %v484, 0.5
    %v486 = vmul.f32 %v484, 0.70710677
    %v487 = verf.f32.pop %v486
    %v488 = vadd.f32 %v487, 1.0
    %v489 = vmul.f32 %v485, %v488
    %s490 = scalar_lea.vmem [#allocation11], 16
    %v491 = vld [vmem:[%s490] sm:$0xff]
    %v492 = vld [vmem:[%s490 + $0x8] sm:$0xff]
    %s493 = scalar_lea.vmem [#allocation7], 256
    %v494 = vld [vmem:[%s493] sm:$0xff]
    %v495 = vld [vmem:[%s493 + $0x8] sm:$0xff]
    %v496 = vld [vmem:[%s493 + $0x10] sm:$0xff]
    %v497 = vld [vmem:[%s493 + $0x18] sm:$0xff]
    %v498 = vld [vmem:[%s493 + $0x20] sm:$0xff]
    %v499 = vld [vmem:[%s493 + $0x28] sm:$0xff]
    %v500 = vld [vmem:[%s493 + $0x30] sm:$0xff]
    %v501 = vld [vmem:[%s493 + $0x38] sm:$0xff]
    %v502 = vld [vmem:[%s493 + $0x40] sm:$0xff]
    %v503 = vld [vmem:[%s493 + $0x48] sm:$0xff]
    %v504 = vld [vmem:[%s493 + $0x50] sm:$0xff]
    %v505 = vld [vmem:[%s493 + $0x58] sm:$0xff]
    %v506 = vld [vmem:[%s493 + $0x60] sm:$0xff]
    %v507 = vld [vmem:[%s493 + $0x68] sm:$0xff]
    %v508 = vld [vmem:[%s493 + $0x70] sm:$0xff]
    %v509 = vld [vmem:[%s493 + $0x78] sm:$0xff]
    %v510 = vld [vmem:[%s493 + $0x80] sm:$0xff]
    %v511 = vld [vmem:[%s493 + $0x88] sm:$0xff]
    %v512 = vld [vmem:[%s493 + $0x90] sm:$0xff]
    %v513 = vld [vmem:[%s493 + $0x98] sm:$0xff]
    %v514 = vld [vmem:[%s493 + $0xa0] sm:$0xff]
    %v515 = vld [vmem:[%s493 + $0xa8] sm:$0xff]
    %v516 = vld [vmem:[%s493 + $0xb0] sm:$0xff]
    %v517 = vld [vmem:[%s493 + $0xb8] sm:$0xff]
    %v518 = vld [vmem:[%s493 + $0xc0] sm:$0xff]
    %v519 = vld [vmem:[%s493 + $0xc8] sm:$0xff]
    %v520 = vld [vmem:[%s493 + $0xd0] sm:$0xff]
    %v521 = vld [vmem:[%s493 + $0xd8] sm:$0xff]
    %v522 = vld [vmem:[%s493 + $0xe0] sm:$0xff]
    %v523 = vld [vmem:[%s493 + $0xe8] sm:$0xff]
    %v524 = vld [vmem:[%s493 + $0xf0] sm:$0xff]
    %v525 = vld [vmem:[%s493 + $0xf8] sm:$0xff]
    %v526 = vlaneseq
    %v527 = vshrl.u32 %v526, 7
    %v528 = vsub.s32 0, %v527
    %v529 = vrot.slane %v491, %v528
    %v530 = vlaneseq
    %v531 = vshrl.u32 %v530, 7
    %v532 = vsub.s32 0, %v531
    %v533 = vrot.slane %v492, %v532
    %534 = vmatprep.subr.mxu0 %v495
    %535 = vmatpush1.msra.mxu0 %v494
    %536 = vmatprep.subr.mxu0 %v497
    %537 = vmatpush1.msra.mxu0 %v496
    %538 = vmatprep.subr.mxu0 %v499
    %539 = vmatpush1.msra.mxu0 %v498
    %540 = vmatprep.subr.mxu0 %v501
    %541 = vmatpush1.msra.mxu0 %v500
    %542 = vmatprep.subr.mxu0 %v503
    %543 = vmatpush1.msra.mxu0 %v502
    %544 = vmatprep.subr.mxu0 %v505
    %545 = vmatpush1.msra.mxu0 %v504
    %546 = vmatprep.subr.mxu0 %v507
    %547 = vmatpush1.msra.mxu0 %v506
    %548 = vmatprep.subr.mxu0 %v509
    %549 = vmatpush1.msra.mxu0 %v508
    %550 = vmatprep.subr.mxu0 %v511
    %551 = vmatpush1.msra.mxu0 %v510
    %552 = vmatprep.subr.mxu0 %v513
    %553 = vmatpush1.msra.mxu0 %v512
    %554 = vmatprep.subr.mxu0 %v515
    %555 = vmatpush1.msra.mxu0 %v514
    %556 = vmatprep.subr.mxu0 %v517
    %557 = vmatpush1.msra.mxu0 %v516
    %558 = vmatprep.subr.mxu0 %v519
    %559 = vmatpush1.msra.mxu0 %v518
    %560 = vmatprep.subr.mxu0 %v521
    %561 = vmatpush1.msra.mxu0 %v520
    %562 = vmatprep.subr.mxu0 %v523
    %563 = vmatpush1.msra.mxu0 %v522
    %564 = vmatprep.subr.mxu0 %v525
    %565 = vmatpush1.msra.mxu0 %v524
    %566 = vmatprep.subr.mxu0 0.0
    %567 = vmatpush1.msra.mxu0 0.0
    %568 = vmatprep.subr.mxu0 0.0
    %569 = vmatpush1.msra.mxu0 0.0
    %570 = vmatprep.subr.mxu0 0.0
    %571 = vmatpush1.msra.mxu0 0.0
    %572 = vmatprep.subr.mxu0 0.0
    %573 = vmatpush1.msra.mxu0 0.0
    %574 = vmatprep.subr.mxu0 0.0
    %575 = vmatpush1.msra.mxu0 0.0
    %576 = vmatprep.subr.mxu0 0.0
    %577 = vmatpush1.msra.mxu0 0.0
    %578 = vmatprep.subr.mxu0 0.0
    %579 = vmatpush1.msra.mxu0 0.0
    %580 = vmatprep.subr.mxu0 0.0
    %581 = vmatpush1.msra.mxu0 0.0
    %582 = vmatprep.subr.mxu0 0.0
    %583 = vmatpush1.msra.mxu0 0.0
    %584 = vmatprep.subr.mxu0 0.0
    %585 = vmatpush1.msra.mxu0 0.0
    %586 = vmatprep.subr.mxu0 0.0
    %587 = vmatpush1.msra.mxu0 0.0
    %588 = vmatprep.subr.mxu0 0.0
    %589 = vmatpush1.msra.mxu0 0.0
    %590 = vmatprep.subr.mxu0 0.0
    %591 = vmatpush1.msra.mxu0 0.0
    %592 = vmatprep.subr.mxu0 0.0
    %593 = vmatpush1.msra.mxu0 0.0
    %594 = vmatprep.subr.mxu0 0.0
    %595 = vmatpush1.msra.mxu0 0.0
    %596 = vmatprep.subr.mxu0 0.0
    %597 = vmatpush1.msra.mxu0 0.0
    %598 = vmatprep.mubr.f32.mxu0 0.0
    %599 = vmatmul.mubr.f32.gmra.mrb[0].mxu0 %v489
    %v600 = vpop.f32.mrb[0].mxu0
    %v601 = vadd.f32 %v529, %v600
    %v602 = vpop.f32.mrb[0].mxu0
    %v603 = vadd.f32 %v533, %v602
    %604 = vdwg.mxu0
    %605 = vadd.xlane.f32.xlu0 %v601
    %v606 = vpop.xlane.xlu0 %605
    %v607 = vmul.f32 %v601, %v601
    %608 = vadd.xlane.f32.xlu0 %v607
    %v609 = vpop.xlane.xlu0 %608
    %v610 = vmul.f32 %v606, 0.03125
    %v611 = vmul.f32 %v609, 0.03125
    %v612 = vmul.f32 %v610, %v610
    %v613 = vsub.f32 %v611, %v612
    %v614 = vsub.f32 %v601, %v610
    %v615 = vadd.f32 %v613, 1e-05
    %v616 = vrsqrt.pop %v615
    %v617 = vmul.f32 %v614, %v616
    %v618 = vlaneseq
    %v619 = vshrl.u32 %v618, 7
    %v620 = vsub.s32 1, %v619
    %v621 = vrot.slane %v491, %v620
    %v622 = vmul.f32 %v617, %v621
    %v623 = vlaneseq
    %v624 = vshrl.u32 %v623, 7
    %v625 = vsub.s32 2, %v624
    %v626 = vrot.slane %v491, %v625
    %v627 = vadd.f32 %v622, %v626
    %v628 = vtanh.pop %v627
    %629 = vmatprep.subr.mxu0 0.0
    %630 = vmatpush1.msra.mxu0 %v370
    %631 = vmatprep.subr.mxu0 0.0
    %632 = vmatpush1.msra.mxu0 %v371
    %633 = vmatprep.subr.mxu0 0.0
    %634 = vmatpush1.msra.mxu0 %v372
    %635 = vmatprep.subr.mxu0 0.0
    %636 = vmatpush1.msra.mxu0 %v373
    %637 = vmatprep.subr.mxu0 0.0
    %638 = vmatpush1.msra.mxu0 %v374
    %639 = vmatprep.subr.mxu0 0.0
    %640 = vmatpush1.msra.mxu0 %v375
    %641 = vmatprep.subr.mxu0 0.0
    %642 = vmatpush1.msra.mxu0 %v376
    %643 = vmatprep.subr.mxu0 0.0
    %644 = vmatpush1.msra.mxu0 %v377
    %645 = vmatprep.subr.mxu0 0.0
    %646 = vmatpush1.msra.mxu0 %v378
    %647 = vmatprep.subr.mxu0 0.0
    %648 = vmatpush1.msra.mxu0 %v379
    %649 = vmatprep.subr.mxu0 0.0
    %650 = vmatpush1.msra.mxu0 %v380
    %651 = vmatprep.subr.mxu0 0.0
    %652 = vmatpush1.msra.mxu0 %v381
    %653 = vmatprep.subr.mxu0 0.0
    %654 = vmatpush1.msra.mxu0 %v382
    %655 = vmatprep.subr.mxu0 0.0
    %656 = vmatpush1.msra.mxu0 %v383
    %657 = vmatprep.subr.mxu0 0.0
    %658 = vmatpush1.msra.mxu0 %v384
    %659 = vmatprep.subr.mxu0 0.0
    %660 = vmatpush1.msra.mxu0 %v385
    %661 = vmatprep.subr.mxu0 0.0
    %662 = vmatpush1.msra.mxu0 0.0
    %663 = vmatprep.subr.mxu0 0.0
    %664 = vmatpush1.msra.mxu0 0.0
    %665 = vmatprep.subr.mxu0 0.0
    %666 = vmatpush1.msra.mxu0 0.0
    %667 = vmatprep.subr.mxu0 0.0
    %668 = vmatpush1.msra.mxu0 0.0
    %669 = vmatprep.subr.mxu0 0.0
    %670 = vmatpush1.msra.mxu0 0.0
    %671 = vmatprep.subr.mxu0 0.0
    %672 = vmatpush1.msra.mxu0 0.0
    %673 = vmatprep.subr.mxu0 0.0
    %674 = vmatpush1.msra.mxu0 0.0
    %675 = vmatprep.subr.mxu0 0.0
    %676 = vmatpush1.msra.mxu0 0.0
    %677 = vmatprep.subr.mxu0 0.0
    %678 = vmatpush1.msra.mxu0 0.0
    %679 = vmatprep.subr.mxu0 0.0
    %680 = vmatpush1.msra.mxu0 0.0
    %681 = vmatprep.subr.mxu0 0.0
    %682 = vmatpush1.msra.mxu0 0.0
    %683 = vmatprep.subr.mxu0 0.0
    %684 = vmatpush1.msra.mxu0 0.0
    %685 = vmatprep.subr.mxu0 0.0
    %686 = vmatpush1.msra.mxu0 0.0
    %687 = vmatprep.subr.mxu0 0.0
    %688 = vmatpush1.msra.mxu0 0.0
    %689 = vmatprep.subr.mxu0 0.0
    %690 = vmatpush1.msra.mxu0 0.0
    %691 = vmatprep.subr.mxu0 0.0
    %692 = vmatpush1.msra.mxu0 0.0
    %693 = vmatprep.mubr.f32.mxu0 0.0
    %694 = vmatmul.mubr.f32.gmra.mrb[0].mxu0 %v628
    %v695 = vpop.f32.mrb[0].mxu0
    %v696 = vadd.f32 0.0, %v695
    %v697 = vpop.f32.mrb[0].mxu0
    %698 = vdwg.mxu0
    %v699 = vadd.f32 %v603, %v696
    %v700 = vadd.f32 %v699, %v460
    %701 = vadd.xlane.f32.xlu0 %v700
    %v702 = vpop.xlane.xlu0 %701
    %v703 = vmul.f32 %v700, %v700
    %704 = vadd.xlane.f32.xlu0 %v703
    %v705 = vpop.xlane.xlu0 %704
    %v706 = vmul.f32 %v702, 0.03125
    %v707 = vmul.f32 %v705, 0.03125
    %v708 = vmul.f32 %v706, %v706
    %v709 = vsub.f32 %v707, %v708
    %v710 = vsub.f32 %v700, %v706
    %v711 = vadd.f32 %v709, 1e-05
    %v712 = vrsqrt.pop %v711
    %v713 = vmul.f32 %v710, %v712
    %v714 = vmul.f32 %v713, %v478
    %v715 = vadd.f32 %v714, %v483
    %v716 = vmul.f32 %v715, 0.5
    %v717 = vmul.f32 %v715, 0.70710677
    %v718 = verf.f32.pop %v717
    %v719 = vadd.f32 %v718, 1.0
    %v720 = vmul.f32 %v716, %v719
    %s721 = scalar_lea.vmem [#allocation11], 32
    %v722 = vld [vmem:[%s721] sm:$0xff]
    %v723 = vld [vmem:[%s721 + $0x8] sm:$0xff]
    %s724 = scalar_lea.vmem [#allocation7], 512
    %v725 = vld [vmem:[%s724] sm:$0xff]
    %v726 = vld [vmem:[%s724 + $0x8] sm:$0xff]
    %v727 = vld [vmem:[%s724 + $0x10] sm:$0xff]
    %v728 = vld [vmem:[%s724 + $0x18] sm:$0xff]
    %v729 = vld [vmem:[%s724 + $0x20] sm:$0xff]
    %v730 = vld [vmem:[%s724 + $0x28] sm:$0xff]
    %v731 = vld [vmem:[%s724 + $0x30] sm:$0xff]
    %v732 = vld [vmem:[%s724 + $0x38] sm:$0xff]
    %v733 = vld [vmem:[%s724 + $0x40] sm:$0xff]
    %v734 = vld [vmem:[%s724 + $0x48] sm:$0xff]
    %v735 = vld [vmem:[%s724 + $0x50] sm:$0xff]
    %v736 = vld [vmem:[%s724 + $0x58] sm:$0xff]
    %v737 = vld [vmem:[%s724 + $0x60] sm:$0xff]
    %v738 = vld [vmem:[%s724 + $0x68] sm:$0xff]
    %v739 = vld [vmem:[%s724 + $0x70] sm:$0xff]
    %v740 = vld [vmem:[%s724 + $0x78] sm:$0xff]
    %v741 = vld [vmem:[%s724 + $0x80] sm:$0xff]
    %v742 = vld [vmem:[%s724 + $0x88] sm:$0xff]
    %v743 = vld [vmem:[%s724 + $0x90] sm:$0xff]
    %v744 = vld [vmem:[%s724 + $0x98] sm:$0xff]
    %v745 = vld [vmem:[%s724 + $0xa0] sm:$0xff]
    %v746 = vld [vmem:[%s724 + $0xa8] sm:$0xff]
    %v747 = vld [vmem:[%s724 + $0xb0] sm:$0xff]
    %v748 = vld [vmem:[%s724 + $0xb8] sm:$0xff]
    %v749 = vld [vmem:[%s724 + $0xc0] sm:$0xff]
    %v750 = vld [vmem:[%s724 + $0xc8] sm:$0xff]
    %v751 = vld [vmem:[%s724 + $0xd0] sm:$0xff]
    %v752 = vld [vmem:[%s724 + $0xd8] sm:$0xff]
    %v753 = vld [vmem:[%s724 + $0xe0] sm:$0xff]
    %v754 = vld [vmem:[%s724 + $0xe8] sm:$0xff]
    %v755 = vld [vmem:[%s724 + $0xf0] sm:$0xff]
    %v756 = vld [vmem:[%s724 + $0xf8] sm:$0xff]
    %v757 = vlaneseq
    %v758 = vshrl.u32 %v757, 7
    %v759 = vsub.s32 0, %v758
    %v760 = vrot.slane %v722, %v759
    %v761 = vlaneseq
    %v762 = vshrl.u32 %v761, 7
    %v763 = vsub.s32 0, %v762
    %v764 = vrot.slane %v723, %v763
    %765 = vmatprep.subr.mxu0 %v726
    %766 = vmatpush1.msra.mxu0 %v725
    %767 = vmatprep.subr.mxu0 %v728
    %768 = vmatpush1.msra.mxu0 %v727
    %769 = vmatprep.subr.mxu0 %v730
    %770 = vmatpush1.msra.mxu0 %v729
    %771 = vmatprep.subr.mxu0 %v732
    %772 = vmatpush1.msra.mxu0 %v731
    %773 = vmatprep.subr.mxu0 %v734
    %774 = vmatpush1.msra.mxu0 %v733
    %775 = vmatprep.subr.mxu0 %v736
    %776 = vmatpush1.msra.mxu0 %v735
    %777 = vmatprep.subr.mxu0 %v738
    %778 = vmatpush1.msra.mxu0 %v737
    %779 = vmatprep.subr.mxu0 %v740
    %780 = vmatpush1.msra.mxu0 %v739
    %781 = vmatprep.subr.mxu0 %v742
    %782 = vmatpush1.msra.mxu0 %v741
    %783 = vmatprep.subr.mxu0 %v744
    %784 = vmatpush1.msra.mxu0 %v743
    %785 = vmatprep.subr.mxu0 %v746
    %786 = vmatpush1.msra.mxu0 %v745
    %787 = vmatprep.subr.mxu0 %v748
    %788 = vmatpush1.msra.mxu0 %v747
    %789 = vmatprep.subr.mxu0 %v750
    %790 = vmatpush1.msra.mxu0 %v749
    %791 = vmatprep.subr.mxu0 %v752
    %792 = vmatpush1.msra.mxu0 %v751
    %793 = vmatprep.subr.mxu0 %v754
    %794 = vmatpush1.msra.mxu0 %v753
    %795 = vmatprep.subr.mxu0 %v756
    %796 = vmatpush1.msra.mxu0 %v755
    %797 = vmatprep.subr.mxu0 0.0
    %798 = vmatpush1.msra.mxu0 0.0
    %799 = vmatprep.subr.mxu0 0.0
    %800 = vmatpush1.msra.mxu0 0.0
    %801 = vmatprep.subr.mxu0 0.0
    %802 = vmatpush1.msra.mxu0 0.0
    %803 = vmatprep.subr.mxu0 0.0
    %804 = vmatpush1.msra.mxu0 0.0
    %805 = vmatprep.subr.mxu0 0.0
    %806 = vmatpush1.msra.mxu0 0.0
    %807 = vmatprep.subr.mxu0 0.0
    %808 = vmatpush1.msra.mxu0 0.0
    %809 = vmatprep.subr.mxu0 0.0
    %810 = vmatpush1.msra.mxu0 0.0
    %811 = vmatprep.subr.mxu0 0.0
    %812 = vmatpush1.msra.mxu0 0.0
    %813 = vmatprep.subr.mxu0 0.0
    %814 = vmatpush1.msra.mxu0 0.0
    %815 = vmatprep.subr.mxu0 0.0
    %816 = vmatpush1.msra.mxu0 0.0
    %817 = vmatprep.subr.mxu0 0.0
    %818 = vmatpush1.msra.mxu0 0.0
    %819 = vmatprep.subr.mxu0 0.0
    %820 = vmatpush1.msra.mxu0 0.0
    %821 = vmatprep.subr.mxu0 0.0
    %822 = vmatpush1.msra.mxu0 0.0
    %823 = vmatprep.subr.mxu0 0.0
    %824 = vmatpush1.msra.mxu0 0.0
    %825 = vmatprep.subr.mxu0 0.0
    %826 = vmatpush1.msra.mxu0 0.0
    %827 = vmatprep.subr.mxu0 0.0
    %828 = vmatpush1.msra.mxu0 0.0
    %829 = vmatprep.mubr.f32.mxu0 0.0
    %830 = vmatmul.mubr.f32.gmra.mrb[0].mxu0 %v720
    %v831 = vpop.f32.mrb[0].mxu0
    %v832 = vadd.f32 %v760, %v831
    %v833 = vpop.f32.mrb[0].mxu0
    %v834 = vadd.f32 %v764, %v833
    %835 = vdwg.mxu0
    %836 = vadd.xlane.f32.xlu0 %v832
    %v837 = vpop.xlane.xlu0 %836
    %v838 = vmul.f32 %v832, %v832
    %839 = vadd.xlane.f32.xlu0 %v838
    %v840 = vpop.xlane.xlu0 %839
    %v841 = vmul.f32 %v837, 0.03125
    %v842 = vmul.f32 %v840, 0.03125
    %v843 = vmul.f32 %v841, %v841
    %v844 = vsub.f32 %v842, %v843
    %v845 = vsub.f32 %v832, %v841
    %v846 = vadd.f32 %v844, 1e-05
    %v847 = vrsqrt.pop %v846
    %v848 = vmul.f32 %v845, %v847
    %v849 = vlaneseq
    %v850 = vshrl.u32 %v849, 7
    %v851 = vsub.s32 1, %v850
    %v852 = vrot.slane %v722, %v851
    %v853 = vmul.f32 %v848, %v852
    %v854 = vlaneseq
    %v855 = vshrl.u32 %v854, 7
    %v856 = vsub.s32 2, %v855
    %v857 = vrot.slane %v722, %v856
    %v858 = vadd.f32 %v853, %v857
    %v859 = vtanh.pop %v858
    %860 = vmatprep.subr.mxu0 0.0
    %861 = vmatpush1.msra.mxu0 %v370
    %862 = vmatprep.subr.mxu0 0.0
    %863 = vmatpush1.msra.mxu0 %v371
    %864 = vmatprep.subr.mxu0 0.0
    %865 = vmatpush1.msra.mxu0 %v372
    %866 = vmatprep.subr.mxu0 0.0
    %867 = vmatpush1.msra.mxu0 %v373
    %868 = vmatprep.subr.mxu0 0.0
    %869 = vmatpush1.msra.mxu0 %v374
    %870 = vmatprep.subr.mxu0 0.0
    %871 = vmatpush1.msra.mxu0 %v375
    %872 = vmatprep.subr.mxu0 0.0
    %873 = vmatpush1.msra.mxu0 %v376
    %874 = vmatprep.subr.mxu0 0.0
    %875 = vmatpush1.msra.mxu0 %v377
    %876 = vmatprep.subr.mxu0 0.0
    %877 = vmatpush1.msra.mxu0 %v378
    %878 = vmatprep.subr.mxu0 0.0
    %879 = vmatpush1.msra.mxu0 %v379
    %880 = vmatprep.subr.mxu0 0.0
    %881 = vmatpush1.msra.mxu0 %v380
    %882 = vmatprep.subr.mxu0 0.0
    %883 = vmatpush1.msra.mxu0 %v381
    %884 = vmatprep.subr.mxu0 0.0
    %885 = vmatpush1.msra.mxu0 %v382
    %886 = vmatprep.subr.mxu0 0.0
    %887 = vmatpush1.msra.mxu0 %v383
    %888 = vmatprep.subr.mxu0 0.0
    %889 = vmatpush1.msra.mxu0 %v384
    %890 = vmatprep.subr.mxu0 0.0
    %891 = vmatpush1.msra.mxu0 %v385
    %892 = vmatprep.subr.mxu0 0.0
    %893 = vmatpush1.msra.mxu0 0.0
    %894 = vmatprep.subr.mxu0 0.0
    %895 = vmatpush1.msra.mxu0 0.0
    %896 = vmatprep.subr.mxu0 0.0
    %897 = vmatpush1.msra.mxu0 0.0
    %898 = vmatprep.subr.mxu0 0.0
    %899 = vmatpush1.msra.mxu0 0.0
    %900 = vmatprep.subr.mxu0 0.0
    %901 = vmatpush1.msra.mxu0 0.0
    %902 = vmatprep.subr.mxu0 0.0
    %903 = vmatpush1.msra.mxu0 0.0
    %904 = vmatprep.subr.mxu0 0.0
    %905 = vmatpush1.msra.mxu0 0.0
    %906 = vmatprep.subr.mxu0 0.0
    %907 = vmatpush1.msra.mxu0 0.0
    %908 = vmatprep.subr.mxu0 0.0
    %909 = vmatpush1.msra.mxu0 0.0
    %910 = vmatprep.subr.mxu0 0.0
    %911 = vmatpush1.msra.mxu0 0.0
    %912 = vmatprep.subr.mxu0 0.0
    %913 = vmatpush1.msra.mxu0 0.0
    %914 = vmatprep.subr.mxu0 0.0
    %915 = vmatpush1.msra.mxu0 0.0
    %916 = vmatprep.subr.mxu0 0.0
    %917 = vmatpush1.msra.mxu0 0.0
    %918 = vmatprep.subr.mxu0 0.0
    %919 = vmatpush1.msra.mxu0 0.0
    %920 = vmatprep.subr.mxu0 0.0
    %921 = vmatpush1.msra.mxu0 0.0
    %922 = vmatprep.subr.mxu0 0.0
    %923 = vmatpush1.msra.mxu0 0.0
    %924 = vmatprep.mubr.f32.mxu0 0.0
    %925 = vmatmul.mubr.f32.gmra.mrb[0].mxu0 %v859
    %v926 = vpop.f32.mrb[0].mxu0
    %v927 = vadd.f32 0.0, %v926
    %v928 = vpop.f32.mrb[0].mxu0
    %929 = vdwg.mxu0
    %v930 = vadd.f32 %v834, %v927
    %v931 = vadd.f32 %v930, %v460
    %932 = vadd.xlane.f32.xlu0 %v931
    %v933 = vpop.xlane.xlu0 %932
    %v934 = vmul.f32 %v931, %v931
    %935 = vadd.xlane.f32.xlu0 %v934
    %v936 = vpop.xlane.xlu0 %935
    %v937 = vmul.f32 %v933, 0.03125
    %v938 = vmul.f32 %v936, 0.03125
    %v939 = vmul.f32 %v937, %v937
    %v940 = vsub.f32 %v938, %v939
    %v941 = vsub.f32 %v931, %v937
    %v942 = vadd.f32 %v940, 1e-05
    %v943 = vrsqrt.pop %v942
    %v944 = vmul.f32 %v941, %v943
    %v945 = vmul.f32 %v944, %v478
    %v946 = vadd.f32 %v945, %v483
    %v947 = vmul.f32 %v946, 0.5
    %v948 = vmul.f32 %v946, 0.70710677
    %v949 = verf.f32.pop %v948
    %v950 = vadd.f32 %v949, 1.0
    %v951 = vmul.f32 %v947, %v950
    %s952 = scalar_lea.vmem [#allocation11], 48
    %v953 = vld [vmem:[%s952] sm:$0xff]
    %v954 = vld [vmem:[%s952 + $0x8] sm:$0xff]
    %s955 = scalar_lea.vmem [#allocation7], 768
    %v956 = vld [vmem:[%s955] sm:$0xff]
    %v957 = vld [vmem:[%s955 + $0x8] sm:$0xff]
    %v958 = vld [vmem:[%s955 + $0x10] sm:$0xff]
    %v959 = vld [vmem:[%s955 + $0x18] sm:$0xff]
    %v960 = vld [vmem:[%s955 + $0x20] sm:$0xff]
    %v961 = vld [vmem:[%s955 + $0x28] sm:$0xff]
    %v962 = vld [vmem:[%s955 + $0x30] sm:$0xff]
    %v963 = vld [vmem:[%s955 + $0x38] sm:$0xff]
    %v964 = vld [vmem:[%s955 + $0x40] sm:$0xff]
    %v965 = vld [vmem:[%s955 + $0x48] sm:$0xff]
    %v966 = vld [vmem:[%s955 + $0x50] sm:$0xff]
    %v967 = vld [vmem:[%s955 + $0x58] sm:$0xff]
    %v968 = vld [vmem:[%s955 + $0x60] sm:$0xff]
    %v969 = vld [vmem:[%s955 + $0x68] sm:$0xff]
    %v970 = vld [vmem:[%s955 + $0x70] sm:$0xff]
    %v971 = vld [vmem:[%s955 + $0x78] sm:$0xff]
    %v972 = vld [vmem:[%s955 + $0x80] sm:$0xff]
    %v973 = vld [vmem:[%s955 + $0x88] sm:$0xff]
    %v974 = vld [vmem:[%s955 + $0x90] sm:$0xff]
    %v975 = vld [vmem:[%s955 + $0x98] sm:$0xff]
    %v976 = vld [vmem:[%s955 + $0xa0] sm:$0xff]
    %v977 = vld [vmem:[%s955 + $0xa8] sm:$0xff]
    %v978 = vld [vmem:[%s955 + $0xb0] sm:$0xff]
    %v979 = vld [vmem:[%s955 + $0xb8] sm:$0xff]
    %v980 = vld [vmem:[%s955 + $0xc0] sm:$0xff]
    %v981 = vld [vmem:[%s955 + $0xc8] sm:$0xff]
    %v982 = vld [vmem:[%s955 + $0xd0] sm:$0xff]
    %v983 = vld [vmem:[%s955 + $0xd8] sm:$0xff]
    %v984 = vld [vmem:[%s955 + $0xe0] sm:$0xff]
    %v985 = vld [vmem:[%s955 + $0xe8] sm:$0xff]
    %v986 = vld [vmem:[%s955 + $0xf0] sm:$0xff]
    %v987 = vld [vmem:[%s955 + $0xf8] sm:$0xff]
    %v988 = vlaneseq
    %v989 = vshrl.u32 %v988, 7
    %v990 = vsub.s32 0, %v989
    %v991 = vrot.slane %v953, %v990
    %v992 = vlaneseq
    %v993 = vshrl.u32 %v992, 7
    %v994 = vsub.s32 0, %v993
    %v995 = vrot.slane %v954, %v994
    %996 = vmatprep.subr.mxu0 %v957
    %997 = vmatpush1.msra.mxu0 %v956
    %998 = vmatprep.subr.mxu0 %v959
    %999 = vmatpush1.msra.mxu0 %v958
    %1000 = vmatprep.subr.mxu0 %v961
    %1001 = vmatpush1.msra.mxu0 %v960
    %1002 = vmatprep.subr.mxu0 %v963
    %1003 = vmatpush1.msra.mxu0 %v962
    %1004 = vmatprep.subr.mxu0 %v965
    %1005 = vmatpush1.msra.mxu0 %v964
    %1006 = vmatprep.subr.mxu0 %v967
    %1007 = vmatpush1.msra.mxu0 %v966
    %1008 = vmatprep.subr.mxu0 %v969
    %1009 = vmatpush1.msra.mxu0 %v968
    %1010 = vmatprep.subr.mxu0 %v971
    %1011 = vmatpush1.msra.mxu0 %v970
    %1012 = vmatprep.subr.mxu0 %v973
    %1013 = vmatpush1.msra.mxu0 %v972
    %1014 = vmatprep.subr.mxu0 %v975
    %1015 = vmatpush1.msra.mxu0 %v974
    %1016 = vmatprep.subr.mxu0 %v977
    %1017 = vmatpush1.msra.mxu0 %v976
    %1018 = vmatprep.subr.mxu0 %v979
    %1019 = vmatpush1.msra.mxu0 %v978
    %1020 = vmatprep.subr.mxu0 %v981
    %1021 = vmatpush1.msra.mxu0 %v980
    %1022 = vmatprep.subr.mxu0 %v983
    %1023 = vmatpush1.msra.mxu0 %v982
    %1024 = vmatprep.subr.mxu0 %v985
    %1025 = vmatpush1.msra.mxu0 %v984
    %1026 = vmatprep.subr.mxu0 %v987
    %1027 = vmatpush1.msra.mxu0 %v986
    %1028 = vmatprep.subr.mxu0 0.0
    %1029 = vmatpush1.msra.mxu0 0.0
    %1030 = vmatprep.subr.mxu0 0.0
    %1031 = vmatpush1.msra.mxu0 0.0
    %1032 = vmatprep.subr.mxu0 0.0
    %1033 = vmatpush1.msra.mxu0 0.0
    %1034 = vmatprep.subr.mxu0 0.0
    %1035 = vmatpush1.msra.mxu0 0.0
    %1036 = vmatprep.subr.mxu0 0.0
    %1037 = vmatpush1.msra.mxu0 0.0
    %1038 = vmatprep.subr.mxu0 0.0
    %1039 = vmatpush1.msra.mxu0 0.0
    %1040 = vmatprep.subr.mxu0 0.0
    %1041 = vmatpush1.msra.mxu0 0.0
    %1042 = vmatprep.subr.mxu0 0.0
    %1043 = vmatpush1.msra.mxu0 0.0
    %1044 = vmatprep.subr.mxu0 0.0
    %1045 = vmatpush1.msra.mxu0 0.0
    %1046 = vmatprep.subr.mxu0 0.0
    %1047 = vmatpush1.msra.mxu0 0.0
    %1048 = vmatprep.subr.mxu0 0.0
    %1049 = vmatpush1.msra.mxu0 0.0
    %1050 = vmatprep.subr.mxu0 0.0
    %1051 = vmatpush1.msra.mxu0 0.0
    %1052 = vmatprep.subr.mxu0 0.0
    %1053 = vmatpush1.msra.mxu0 0.0
    %1054 = vmatprep.subr.mxu0 0.0
    %1055 = vmatpush1.msra.mxu0 0.0
    %1056 = vmatprep.subr.mxu0 0.0
    %1057 = vmatpush1.msra.mxu0 0.0
    %1058 = vmatprep.subr.mxu0 0.0
    %1059 = vmatpush1.msra.mxu0 0.0
    %1060 = vmatprep.mubr.f32.mxu0 0.0
    %1061 = vmatmul.mubr.f32.gmra.mrb[0].mxu0 %v951
    %v1062 = vpop.f32.mrb[0].mxu0
    %v1063 = vadd.f32 %v991, %v1062
    %v1064 = vpop.f32.mrb[0].mxu0
    %v1065 = vadd.f32 %v995, %v1064
    %1066 = vdwg.mxu0
    %1067 = vadd.xlane.f32.xlu0 %v1063
    %v1068 = vpop.xlane.xlu0 %1067
    %v1069 = vmul.f32 %v1063, %v1063
    %1070 = vadd.xlane.f32.xlu0 %v1069
    %v1071 = vpop.xlane.xlu0 %1070
    %v1072 = vmul.f32 %v1068, 0.03125
    %v1073 = vmul.f32 %v1071, 0.03125
    %v1074 = vmul.f32 %v1072, %v1072
    %v1075 = vsub.f32 %v1073, %v1074
    %v1076 = vsub.f32 %v1063, %v1072
    %v1077 = vadd.f32 %v1075, 1e-05
    %v1078 = vrsqrt.pop %v1077
    %v1079 = vmul.f32 %v1076, %v1078
    %v1080 = vlaneseq
    %v1081 = vshrl.u32 %v1080, 7
    %v1082 = vsub.s32 1, %v1081
    %v1083 = vrot.slane %v953, %v1082
    %v1084 = vmul.f32 %v1079, %v1083
    %v1085 = vlaneseq
    %v1086 = vshrl.u32 %v1085, 7
    %v1087 = vsub.s32 2, %v1086
    %v1088 = vrot.slane %v953, %v1087
    %v1089 = vadd.f32 %v1084, %v1088
    %v1090 = vtanh.pop %v1089
    %1091 = vmatprep.subr.mxu0 0.0
    %1092 = vmatpush1.msra.mxu0 %v370
    %1093 = vmatprep.subr.mxu0 0.0
    %1094 = vmatpush1.msra.mxu0 %v371
    %1095 = vmatprep.subr.mxu0 0.0
    %1096 = vmatpush1.msra.mxu0 %v372
    %1097 = vmatprep.subr.mxu0 0.0
    %1098 = vmatpush1.msra.mxu0 %v373
    %1099 = vmatprep.subr.mxu0 0.0
    %1100 = vmatpush1.msra.mxu0 %v374
    %1101 = vmatprep.subr.mxu0 0.0
    %1102 = vmatpush1.msra.mxu0 %v375
    %1103 = vmatprep.subr.mxu0 0.0
    %1104 = vmatpush1.msra.mxu0 %v376
    %1105 = vmatprep.subr.mxu0 0.0
    %1106 = vmatpush1.msra.mxu0 %v377
    %1107 = vmatprep.subr.mxu0 0.0
    %1108 = vmatpush1.msra.mxu0 %v378
    %1109 = vmatprep.subr.mxu0 0.0
    %1110 = vmatpush1.msra.mxu0 %v379
    %1111 = vmatprep.subr.mxu0 0.0
    %1112 = vmatpush1.msra.mxu0 %v380
    %1113 = vmatprep.subr.mxu0 0.0
    %1114 = vmatpush1.msra.mxu0 %v381
    %1115 = vmatprep.subr.mxu0 0.0
    %1116 = vmatpush1.msra.mxu0 %v382
    %1117 = vmatprep.subr.mxu0 0.0
    %1118 = vmatpush1.msra.mxu0 %v383
    %1119 = vmatprep.subr.mxu0 0.0
    %1120 = vmatpush1.msra.mxu0 %v384
    %1121 = vmatprep.subr.mxu0 0.0
    %1122 = vmatpush1.msra.mxu0 %v385
    %1123 = vmatprep.subr.mxu0 0.0
    %1124 = vmatpush1.msra.mxu0 0.0
    %1125 = vmatprep.subr.mxu0 0.0
    %1126 = vmatpush1.msra.mxu0 0.0
    %1127 = vmatprep.subr.mxu0 0.0
    %1128 = vmatpush1.msra.mxu0 0.0
    %1129 = vmatprep.subr.mxu0 0.0
    %1130 = vmatpush1.msra.mxu0 0.0
    %1131 = vmatprep.subr.mxu0 0.0
    %1132 = vmatpush1.msra.mxu0 0.0
    %1133 = vmatprep.subr.mxu0 0.0
    %1134 = vmatpush1.msra.mxu0 0.0
    %1135 = vmatprep.subr.mxu0 0.0
    %1136 = vmatpush1.msra.mxu0 0.0
    %1137 = vmatprep.subr.mxu0 0.0
    %1138 = vmatpush1.msra.mxu0 0.0
    %1139 = vmatprep.subr.mxu0 0.0
    %1140 = vmatpush1.msra.mxu0 0.0
    %1141 = vmatprep.subr.mxu0 0.0
    %1142 = vmatpush1.msra.mxu0 0.0
    %1143 = vmatprep.subr.mxu0 0.0
    %1144 = vmatpush1.msra.mxu0 0.0
    %1145 = vmatprep.subr.mxu0 0.0
    %1146 = vmatpush1.msra.mxu0 0.0
    %1147 = vmatprep.subr.mxu0 0.0
    %1148 = vmatpush1.msra.mxu0 0.0
    %1149 = vmatprep.subr.mxu0 0.0
    %1150 = vmatpush1.msra.mxu0 0.0
    %1151 = vmatprep.subr.mxu0 0.0
    %1152 = vmatpush1.msra.mxu0 0.0
    %1153 = vmatprep.subr.mxu0 0.0
    %1154 = vmatpush1.msra.mxu0 0.0
    %1155 = vmatprep.mubr.f32.mxu0 0.0
    %1156 = vmatmul.mubr.f32.gmra.mrb[0].mxu0 %v1090
    %v1157 = vpop.f32.mrb[0].mxu0
    %v1158 = vadd.f32 0.0, %v1157
    %v1159 = vpop.f32.mrb[0].mxu0
    %1160 = vdwg.mxu0
    %v1161 = vadd.f32 %v1065, %v1158
    %v1162 = vadd.f32 %v1161, %v460
    %1163 = vadd.xlane.f32.xlu0 %v1162
    %v1164 = vpop.xlane.xlu0 %1163
    %v1165 = vmul.f32 %v1162, %v1162
    %1166 = vadd.xlane.f32.xlu0 %v1165
    %v1167 = vpop.xlane.xlu0 %1166
    %v1168 = vmul.f32 %v1164, 0.03125
    %v1169 = vmul.f32 %v1167, 0.03125
    %v1170 = vmul.f32 %v1168, %v1168
    %v1171 = vsub.f32 %v1169, %v1170
    %v1172 = vsub.f32 %v1162, %v1168
    %v1173 = vadd.f32 %v1171, 1e-05
    %v1174 = vrsqrt.pop %v1173
    %v1175 = vmul.f32 %v1172, %v1174
    %v1176 = vmul.f32 %v1175, %v478
    %v1177 = vadd.f32 %v1176, %v483
    %v1178 = vmul.f32 %v1177, 0.5
    %v1179 = vmul.f32 %v1177, 0.70710677
    %v1180 = verf.f32.pop %v1179
    %v1181 = vadd.f32 %v1180, 1.0
    %v1182 = vmul.f32 %v1178, %v1181
    %s1183 = scalar_lea.vmem [#allocation11], 64
    %v1184 = vld [vmem:[%s1183] sm:$0xff]
    %v1185 = vld [vmem:[%s1183 + $0x8] sm:$0xff]
    %s1186 = scalar_lea.vmem [#allocation7], 1024
    %v1187 = vld [vmem:[%s1186] sm:$0xff]
    %v1188 = vld [vmem:[%s1186 + $0x8] sm:$0xff]
    %v1189 = vld [vmem:[%s1186 + $0x10] sm:$0xff]
    %v1190 = vld [vmem:[%s1186 + $0x18] sm:$0xff]
    %v1191 = vld [vmem:[%s1186 + $0x20] sm:$0xff]
    %v1192 = vld [vmem:[%s1186 + $0x28] sm:$0xff]
    %v1193 = vld [vmem:[%s1186 + $0x30] sm:$0xff]
    %v1194 = vld [vmem:[%s1186 + $0x38] sm:$0xff]
    %v1195 = vld [vmem:[%s1186 + $0x40] sm:$0xff]
    %v1196 = vld [vmem:[%s1186 + $0x48] sm:$0xff]
    %v1197 = vld [vmem:[%s1186 + $0x50] sm:$0xff]
    %v1198 = vld [vmem:[%s1186 + $0x58] sm:$0xff]
    %v1199 = vld [vmem:[%s1186 + $0x60] sm:$0xff]
    %v1200 = vld [vmem:[%s1186 + $0x68] sm:$0xff]
    %v1201 = vld [vmem:[%s1186 + $0x70] sm:$0xff]
    %v1202 = vld [vmem:[%s1186 + $0x78] sm:$0xff]
    %v1203 = vld [vmem:[%s1186 + $0x80] sm:$0xff]
    %v1204 = vld [vmem:[%s1186 + $0x88] sm:$0xff]
    %v1205 = vld [vmem:[%s1186 + $0x90] sm:$0xff]
    %v1206 = vld [vmem:[%s1186 + $0x98] sm:$0xff]
    %v1207 = vld [vmem:[%s1186 + $0xa0] sm:$0xff]
    %v1208 = vld [vmem:[%s1186 + $0xa8] sm:$0xff]
    %v1209 = vld [vmem:[%s1186 + $0xb0] sm:$0xff]
    %v1210 = vld [vmem:[%s1186 + $0xb8] sm:$0xff]
    %v1211 = vld [vmem:[%s1186 + $0xc0] sm:$0xff]
    %v1212 = vld [vmem:[%s1186 + $0xc8] sm:$0xff]
    %v1213 = vld [vmem:[%s1186 + $0xd0] sm:$0xff]
    %v1214 = vld [vmem:[%s1186 + $0xd8] sm:$0xff]
    %v1215 = vld [vmem:[%s1186 + $0xe0] sm:$0xff]
    %v1216 = vld [vmem:[%s1186 + $0xe8] sm:$0xff]
    %v1217 = vld [vmem:[%s1186 + $0xf0] sm:$0xff]
    %v1218 = vld [vmem:[%s1186 + $0xf8] sm:$0xff]
    %v1219 = vlaneseq
    %v1220 = vshrl.u32 %v1219, 7
    %v1221 = vsub.s32 0, %v1220
    %v1222 = vrot.slane %v1184, %v1221
    %v1223 = vlaneseq
    %v1224 = vshrl.u32 %v1223, 7
    %v1225 = vsub.s32 0, %v1224
    %v1226 = vrot.slane %v1185, %v1225
    %1227 = vmatprep.subr.mxu0 %v1188
    %1228 = vmatpush1.msra.mxu0 %v1187
    %1229 = vmatprep.subr.mxu0 %v1190
    %1230 = vmatpush1.msra.mxu0 %v1189
    %1231 = vmatprep.subr.mxu0 %v1192
    %1232 = vmatpush1.msra.mxu0 %v1191
    %1233 = vmatprep.subr.mxu0 %v1194
    %1234 = vmatpush1.msra.mxu0 %v1193
    %1235 = vmatprep.subr.mxu0 %v1196
    %1236 = vmatpush1.msra.mxu0 %v1195
    %1237 = vmatprep.subr.mxu0 %v1198
    %1238 = vmatpush1.msra.mxu0 %v1197
    %1239 = vmatprep.subr.mxu0 %v1200
    %1240 = vmatpush1.msra.mxu0 %v1199
    %1241 = vmatprep.subr.mxu0 %v1202
    %1242 = vmatpush1.msra.mxu0 %v1201
    %1243 = vmatprep.subr.mxu0 %v1204
    %1244 = vmatpush1.msra.mxu0 %v1203
    %1245 = vmatprep.subr.mxu0 %v1206
    %1246 = vmatpush1.msra.mxu0 %v1205
    %1247 = vmatprep.subr.mxu0 %v1208
    %1248 = vmatpush1.msra.mxu0 %v1207
    %1249 = vmatprep.subr.mxu0 %v1210
    %1250 = vmatpush1.msra.mxu0 %v1209
    %1251 = vmatprep.subr.mxu0 %v1212
    %1252 = vmatpush1.msra.mxu0 %v1211
    %1253 = vmatprep.subr.mxu0 %v1214
    %1254 = vmatpush1.msra.mxu0 %v1213
    %1255 = vmatprep.subr.mxu0 %v1216
    %1256 = vmatpush1.msra.mxu0 %v1215
    %1257 = vmatprep.subr.mxu0 %v1218
    %1258 = vmatpush1.msra.mxu0 %v1217
    %1259 = vmatprep.subr.mxu0 0.0
    %1260 = vmatpush1.msra.mxu0 0.0
    %1261 = vmatprep.subr.mxu0 0.0
    %1262 = vmatpush1.msra.mxu0 0.0
    %1263 = vmatprep.subr.mxu0 0.0
    %1264 = vmatpush1.msra.mxu0 0.0
    %1265 = vmatprep.subr.mxu0 0.0
    %1266 = vmatpush1.msra.mxu0 0.0
    %1267 = vmatprep.subr.mxu0 0.0
    %1268 = vmatpush1.msra.mxu0 0.0
    %1269 = vmatprep.subr.mxu0 0.0
    %1270 = vmatpush1.msra.mxu0 0.0
    %1271 = vmatprep.subr.mxu0 0.0
    %1272 = vmatpush1.msra.mxu0 0.0
    %1273 = vmatprep.subr.mxu0 0.0
    %1274 = vmatpush1.msra.mxu0 0.0
    %1275 = vmatprep.subr.mxu0 0.0
    %1276 = vmatpush1.msra.mxu0 0.0
    %1277 = vmatprep.subr.mxu0 0.0
    %1278 = vmatpush1.msra.mxu0 0.0
    %1279 = vmatprep.subr.mxu0 0.0
    %1280 = vmatpush1.msra.mxu0 0.0
    %1281 = vmatprep.subr.mxu0 0.0
    %1282 = vmatpush1.msra.mxu0 0.0
    %1283 = vmatprep.subr.mxu0 0.0
    %1284 = vmatpush1.msra.mxu0 0.0
    %1285 = vmatprep.subr.mxu0 0.0
    %1286 = vmatpush1.msra.mxu0 0.0
    %1287 = vmatprep.subr.mxu0 0.0
    %1288 = vmatpush1.msra.mxu0 0.0
    %1289 = vmatprep.subr.mxu0 0.0
    %1290 = vmatpush1.msra.mxu0 0.0
    %1291 = vmatprep.mubr.f32.mxu0 0.0
    %1292 = vmatmul.mubr.f32.gmra.mrb[0].mxu0 %v1182
    %v1293 = vpop.f32.mrb[0].mxu0
    %v1294 = vadd.f32 %v1222, %v1293
    %v1295 = vpop.f32.mrb[0].mxu0
    %v1296 = vadd.f32 %v1226, %v1295
    %1297 = vdwg.mxu0
    %1298 = vadd.xlane.f32.xlu0 %v1294
    %v1299 = vpop.xlane.xlu0 %1298
    %v1300 = vmul.f32 %v1294, %v1294
    %1301 = vadd.xlane.f32.xlu0 %v1300
    %v1302 = vpop.xlane.xlu0 %1301
    %v1303 = vmul.f32 %v1299, 0.03125
    %v1304 = vmul.f32 %v1302, 0.03125
    %v1305 = vmul.f32 %v1303, %v1303
    %v1306 = vsub.f32 %v1304, %v1305
    %v1307 = vsub.f32 %v1294, %v1303
    %v1308 = vadd.f32 %v1306, 1e-05
    %v1309 = vrsqrt.pop %v1308
    %v1310 = vmul.f32 %v1307, %v1309
    %v1311 = vlaneseq
    %v1312 = vshrl.u32 %v1311, 7
    %v1313 = vsub.s32 1, %v1312
    %v1314 = vrot.slane %v1184, %v1313
    %v1315 = vmul.f32 %v1310, %v1314
    %v1316 = vlaneseq
    %v1317 = vshrl.u32 %v1316, 7
    %v1318 = vsub.s32 2, %v1317
    %v1319 = vrot.slane %v1184, %v1318
    %v1320 = vadd.f32 %v1315, %v1319
    %v1321 = vtanh.pop %v1320
    %1322 = vmatprep.subr.mxu0 0.0
    %1323 = vmatpush1.msra.mxu0 %v370
    %1324 = vmatprep.subr.mxu0 0.0
    %1325 = vmatpush1.msra.mxu0 %v371
    %1326 = vmatprep.subr.mxu0 0.0
    %1327 = vmatpush1.msra.mxu0 %v372
    %1328 = vmatprep.subr.mxu0 0.0
    %1329 = vmatpush1.msra.mxu0 %v373
    %1330 = vmatprep.subr.mxu0 0.0
    %1331 = vmatpush1.msra.mxu0 %v374
    %1332 = vmatprep.subr.mxu0 0.0
    %1333 = vmatpush1.msra.mxu0 %v375
    %1334 = vmatprep.subr.mxu0 0.0
    %1335 = vmatpush1.msra.mxu0 %v376
    %1336 = vmatprep.subr.mxu0 0.0
    %1337 = vmatpush1.msra.mxu0 %v377
    %1338 = vmatprep.subr.mxu0 0.0
    %1339 = vmatpush1.msra.mxu0 %v378
    %1340 = vmatprep.subr.mxu0 0.0
    %1341 = vmatpush1.msra.mxu0 %v379
    %1342 = vmatprep.subr.mxu0 0.0
    %1343 = vmatpush1.msra.mxu0 %v380
    %1344 = vmatprep.subr.mxu0 0.0
    %1345 = vmatpush1.msra.mxu0 %v381
    %1346 = vmatprep.subr.mxu0 0.0
    %1347 = vmatpush1.msra.mxu0 %v382
    %1348 = vmatprep.subr.mxu0 0.0
    %1349 = vmatpush1.msra.mxu0 %v383
    %1350 = vmatprep.subr.mxu0 0.0
    %1351 = vmatpush1.msra.mxu0 %v384
    %1352 = vmatprep.subr.mxu0 0.0
    %1353 = vmatpush1.msra.mxu0 %v385
    %1354 = vmatprep.subr.mxu0 0.0
    %1355 = vmatpush1.msra.mxu0 0.0
    %1356 = vmatprep.subr.mxu0 0.0
    %1357 = vmatpush1.msra.mxu0 0.0
    %1358 = vmatprep.subr.mxu0 0.0
    %1359 = vmatpush1.msra.mxu0 0.0
    %1360 = vmatprep.subr.mxu0 0.0
    %1361 = vmatpush1.msra.mxu0 0.0
    %1362 = vmatprep.subr.mxu0 0.0
    %1363 = vmatpush1.msra.mxu0 0.0
    %1364 = vmatprep.subr.mxu0 0.0
    %1365 = vmatpush1.msra.mxu0 0.0
    %1366 = vmatprep.subr.mxu0 0.0
    %1367 = vmatpush1.msra.mxu0 0.0
    %1368 = vmatprep.subr.mxu0 0.0
    %1369 = vmatpush1.msra.mxu0 0.0
    %1370 = vmatprep.subr.mxu0 0.0
    %1371 = vmatpush1.msra.mxu0 0.0
    %1372 = vmatprep.subr.mxu0 0.0
    %1373 = vmatpush1.msra.mxu0 0.0
    %1374 = vmatprep.subr.mxu0 0.0
    %1375 = vmatpush1.msra.mxu0 0.0
    %1376 = vmatprep.subr.mxu0 0.0
    %1377 = vmatpush1.msra.mxu0 0.0
    %1378 = vmatprep.subr.mxu0 0.0
    %1379 = vmatpush1.msra.mxu0 0.0
    %1380 = vmatprep.subr.mxu0 0.0
    %1381 = vmatpush1.msra.mxu0 0.0
    %1382 = vmatprep.subr.mxu0 0.0
    %1383 = vmatpush1.msra.mxu0 0.0
    %1384 = vmatprep.subr.mxu0 0.0
    %1385 = vmatpush1.msra.mxu0 0.0
    %1386 = vmatprep.mubr.f32.mxu0 0.0
    %1387 = vmatmul.mubr.f32.gmra.mrb[0].mxu0 %v1321
    %v1388 = vpop.f32.mrb[0].mxu0
    %v1389 = vadd.f32 0.0, %v1388
    %v1390 = vpop.f32.mrb[0].mxu0
    %1391 = vdwg.mxu0
    %v1392 = vadd.f32 %v1296, %v1389
    %v1393 = vadd.f32 %v1392, %v460
    %1394 = vadd.xlane.f32.xlu0 %v1393
    %v1395 = vpop.xlane.xlu0 %1394
    %v1396 = vmul.f32 %v1393, %v1393
    %1397 = vadd.xlane.f32.xlu0 %v1396
    %v1398 = vpop.xlane.xlu0 %1397
    %v1399 = vmul.f32 %v1395, 0.03125
    %v1400 = vmul.f32 %v1398, 0.03125
    %v1401 = vmul.f32 %v1399, %v1399
    %v1402 = vsub.f32 %v1400, %v1401
    %v1403 = vsub.f32 %v1393, %v1399
    %v1404 = vadd.f32 %v1402, 1e-05
    %v1405 = vrsqrt.pop %v1404
    %v1406 = vmul.f32 %v1403, %v1405
    %v1407 = vmul.f32 %v1406, %v478
    %v1408 = vadd.f32 %v1407, %v483
    %v1409 = vmul.f32 %v1408, 0.5
    %v1410 = vmul.f32 %v1408, 0.70710677
    %v1411 = verf.f32.pop %v1410
    %v1412 = vadd.f32 %v1411, 1.0
    %v1413 = vmul.f32 %v1409, %v1412
    %s1414 = scalar_lea.vmem [#allocation11], 80
    %v1415 = vld [vmem:[%s1414] sm:$0xff]
    %v1416 = vld [vmem:[%s1414 + $0x8] sm:$0xff]
    %s1417 = scalar_lea.vmem [#allocation7], 1280
    %v1418 = vld [vmem:[%s1417] sm:$0xff]
    %v1419 = vld [vmem:[%s1417 + $0x8] sm:$0xff]
    %v1420 = vld [vmem:[%s1417 + $0x10] sm:$0xff]
    %v1421 = vld [vmem:[%s1417 + $0x18] sm:$0xff]
    %v1422 = vld [vmem:[%s1417 + $0x20] sm:$0xff]
    %v1423 = vld [vmem:[%s1417 + $0x28] sm:$0xff]
    %v1424 = vld [vmem:[%s1417 + $0x30] sm:$0xff]
    %v1425 = vld [vmem:[%s1417 + $0x38] sm:$0xff]
    %v1426 = vld [vmem:[%s1417 + $0x40] sm:$0xff]
    %v1427 = vld [vmem:[%s1417 + $0x48] sm:$0xff]
    %v1428 = vld [vmem:[%s1417 + $0x50] sm:$0xff]
    %v1429 = vld [vmem:[%s1417 + $0x58] sm:$0xff]
    %v1430 = vld [vmem:[%s1417 + $0x60] sm:$0xff]
    %v1431 = vld [vmem:[%s1417 + $0x68] sm:$0xff]
    %v1432 = vld [vmem:[%s1417 + $0x70] sm:$0xff]
    %v1433 = vld [vmem:[%s1417 + $0x78] sm:$0xff]
    %v1434 = vld [vmem:[%s1417 + $0x80] sm:$0xff]
    %v1435 = vld [vmem:[%s1417 + $0x88] sm:$0xff]
    %v1436 = vld [vmem:[%s1417 + $0x90] sm:$0xff]
    %v1437 = vld [vmem:[%s1417 + $0x98] sm:$0xff]
    %v1438 = vld [vmem:[%s1417 + $0xa0] sm:$0xff]
    %v1439 = vld [vmem:[%s1417 + $0xa8] sm:$0xff]
    %v1440 = vld [vmem:[%s1417 + $0xb0] sm:$0xff]
    %v1441 = vld [vmem:[%s1417 + $0xb8] sm:$0xff]
    %v1442 = vld [vmem:[%s1417 + $0xc0] sm:$0xff]
    %v1443 = vld [vmem:[%s1417 + $0xc8] sm:$0xff]
    %v1444 = vld [vmem:[%s1417 + $0xd0] sm:$0xff]
    %v1445 = vld [vmem:[%s1417 + $0xd8] sm:$0xff]
    %v1446 = vld [vmem:[%s1417 + $0xe0] sm:$0xff]
    %v1447 = vld [vmem:[%s1417 + $0xe8] sm:$0xff]
    %v1448 = vld [vmem:[%s1417 + $0xf0] sm:$0xff]
    %v1449 = vld [vmem:[%s1417 + $0xf8] sm:$0xff]
    %v1450 = vlaneseq
    %v1451 = vshrl.u32 %v1450, 7
    %v1452 = vsub.s32 0, %v1451
    %v1453 = vrot.slane %v1415, %v1452
    %v1454 = vlaneseq
    %v1455 = vshrl.u32 %v1454, 7
    %v1456 = vsub.s32 0, %v1455
    %v1457 = vrot.slane %v1416, %v1456
    %1458 = vmatprep.subr.mxu0 %v1419
    %1459 = vmatpush1.msra.mxu0 %v1418
    %1460 = vmatprep.subr.mxu0 %v1421
    %1461 = vmatpush1.msra.mxu0 %v1420
    %1462 = vmatprep.subr.mxu0 %v1423
    %1463 = vmatpush1.msra.mxu0 %v1422
    %1464 = vmatprep.subr.mxu0 %v1425
    %1465 = vmatpush1.msra.mxu0 %v1424
    %1466 = vmatprep.subr.mxu0 %v1427
    %1467 = vmatpush1.msra.mxu0 %v1426
    %1468 = vmatprep.subr.mxu0 %v1429
    %1469 = vmatpush1.msra.mxu0 %v1428
    %1470 = vmatprep.subr.mxu0 %v1431
    %1471 = vmatpush1.msra.mxu0 %v1430
    %1472 = vmatprep.subr.mxu0 %v1433
    %1473 = vmatpush1.msra.mxu0 %v1432
    %1474 = vmatprep.subr.mxu0 %v1435
    %1475 = vmatpush1.msra.mxu0 %v1434
    %1476 = vmatprep.subr.mxu0 %v1437
    %1477 = vmatpush1.msra.mxu0 %v1436
    %1478 = vmatprep.subr.mxu0 %v1439
    %1479 = vmatpush1.msra.mxu0 %v1438
    %1480 = vmatprep.subr.mxu0 %v1441
    %1481 = vmatpush1.msra.mxu0 %v1440
    %1482 = vmatprep.subr.mxu0 %v1443
    %1483 = vmatpush1.msra.mxu0 %v1442
    %1484 = vmatprep.subr.mxu0 %v1445
    %1485 = vmatpush1.msra.mxu0 %v1444
    %1486 = vmatprep.subr.mxu0 %v1447
    %1487 = vmatpush1.msra.mxu0 %v1446
    %1488 = vmatprep.subr.mxu0 %v1449
    %1489 = vmatpush1.msra.mxu0 %v1448
    %1490 = vmatprep.subr.mxu0 0.0
    %1491 = vmatpush1.msra.mxu0 0.0
    %1492 = vmatprep.subr.mxu0 0.0
    %1493 = vmatpush1.msra.mxu0 0.0
    %1494 = vmatprep.subr.mxu0 0.0
    %1495 = vmatpush1.msra.mxu0 0.0
    %1496 = vmatprep.subr.mxu0 0.0
    %1497 = vmatpush1.msra.mxu0 0.0
    %1498 = vmatprep.subr.mxu0 0.0
    %1499 = vmatpush1.msra.mxu0 0.0
    %1500 = vmatprep.subr.mxu0 0.0
    %1501 = vmatpush1.msra.mxu0 0.0
    %1502 = vmatprep.subr.mxu0 0.0
    %1503 = vmatpush1.msra.mxu0 0.0
    %1504 = vmatprep.subr.mxu0 0.0
    %1505 = vmatpush1.msra.mxu0 0.0
    %1506 = vmatprep.subr.mxu0 0.0
    %1507 = vmatpush1.msra.mxu0 0.0
    %1508 = vmatprep.subr.mxu0 0.0
    %1509 = vmatpush1.msra.mxu0 0.0
    %1510 = vmatprep.subr.mxu0 0.0
    %1511 = vmatpush1.msra.mxu0 0.0
    %1512 = vmatprep.subr.mxu0 0.0
    %1513 = vmatpush1.msra.mxu0 0.0
    %1514 = vmatprep.subr.mxu0 0.0
    %1515 = vmatpush1.msra.mxu0 0.0
    %1516 = vmatprep.subr.mxu0 0.0
    %1517 = vmatpush1.msra.mxu0 0.0
    %1518 = vmatprep.subr.mxu0 0.0
    %1519 = vmatpush1.msra.mxu0 0.0
    %1520 = vmatprep.subr.mxu0 0.0
    %1521 = vmatpush1.msra.mxu0 0.0
    %1522 = vmatprep.mubr.f32.mxu0 0.0
    %1523 = vmatmul.mubr.f32.gmra.mrb[0].mxu0 %v1413
    %v1524 = vpop.f32.mrb[0].mxu0
    %v1525 = vadd.f32 %v1453, %v1524
    %v1526 = vpop.f32.mrb[0].mxu0
    %v1527 = vadd.f32 %v1457, %v1526
    %1528 = vdwg.mxu0
    %1529 = vadd.xlane.f32.xlu0 %v1525
    %v1530 = vpop.xlane.xlu0 %1529
    %v1531 = vmul.f32 %v1525, %v1525
    %1532 = vadd.xlane.f32.xlu0 %v1531
    %v1533 = vpop.xlane.xlu0 %1532
    %v1534 = vmul.f32 %v1530, 0.03125
    %v1535 = vmul.f32 %v1533, 0.03125
    %v1536 = vmul.f32 %v1534, %v1534
    %v1537 = vsub.f32 %v1535, %v1536
    %v1538 = vsub.f32 %v1525, %v1534
    %v1539 = vadd.f32 %v1537, 1e-05
    %v1540 = vrsqrt.pop %v1539
    %v1541 = vmul.f32 %v1538, %v1540
    %v1542 = vlaneseq
    %v1543 = vshrl.u32 %v1542, 7
    %v1544 = vsub.s32 1, %v1543
    %v1545 = vrot.slane %v1415, %v1544
    %v1546 = vmul.f32 %v1541, %v1545
    %v1547 = vlaneseq
    %v1548 = vshrl.u32 %v1547, 7
    %v1549 = vsub.s32 2, %v1548
    %v1550 = vrot.slane %v1415, %v1549
    %v1551 = vadd.f32 %v1546, %v1550
    %v1552 = vtanh.pop %v1551
    %1553 = vmatprep.subr.mxu0 0.0
    %1554 = vmatpush1.msra.mxu0 %v370
    %1555 = vmatprep.subr.mxu0 0.0
    %1556 = vmatpush1.msra.mxu0 %v371
    %1557 = vmatprep.subr.mxu0 0.0
    %1558 = vmatpush1.msra.mxu0 %v372
    %1559 = vmatprep.subr.mxu0 0.0
    %1560 = vmatpush1.msra.mxu0 %v373
    %1561 = vmatprep.subr.mxu0 0.0
    %1562 = vmatpush1.msra.mxu0 %v374
    %1563 = vmatprep.subr.mxu0 0.0
    %1564 = vmatpush1.msra.mxu0 %v375
    %1565 = vmatprep.subr.mxu0 0.0
    %1566 = vmatpush1.msra.mxu0 %v376
    %1567 = vmatprep.subr.mxu0 0.0
    %1568 = vmatpush1.msra.mxu0 %v377
    %1569 = vmatprep.subr.mxu0 0.0
    %1570 = vmatpush1.msra.mxu0 %v378
    %1571 = vmatprep.subr.mxu0 0.0
    %1572 = vmatpush1.msra.mxu0 %v379
    %1573 = vmatprep.subr.mxu0 0.0
    %1574 = vmatpush1.msra.mxu0 %v380
    %1575 = vmatprep.subr.mxu0 0.0
    %1576 = vmatpush1.msra.mxu0 %v381
    %1577 = vmatprep.subr.mxu0 0.0
    %1578 = vmatpush1.msra.mxu0 %v382
    %1579 = vmatprep.subr.mxu0 0.0
    %1580 = vmatpush1.msra.mxu0 %v383
    %1581 = vmatprep.subr.mxu0 0.0
    %1582 = vmatpush1.msra.mxu0 %v384
    %1583 = vmatprep.subr.mxu0 0.0
    %1584 = vmatpush1.msra.mxu0 %v385
    %1585 = vmatprep.subr.mxu0 0.0
    %1586 = vmatpush1.msra.mxu0 0.0
    %1587 = vmatprep.subr.mxu0 0.0
    %1588 = vmatpush1.msra.mxu0 0.0
    %1589 = vmatprep.subr.mxu0 0.0
    %1590 = vmatpush1.msra.mxu0 0.0
    %1591 = vmatprep.subr.mxu0 0.0
    %1592 = vmatpush1.msra.mxu0 0.0
    %1593 = vmatprep.subr.mxu0 0.0
    %1594 = vmatpush1.msra.mxu0 0.0
    %1595 = vmatprep.subr.mxu0 0.0
    %1596 = vmatpush1.msra.mxu0 0.0
    %1597 = vmatprep.subr.mxu0 0.0
    %1598 = vmatpush1.msra.mxu0 0.0
    %1599 = vmatprep.subr.mxu0 0.0
    %1600 = vmatpush1.msra.mxu0 0.0
    %1601 = vmatprep.subr.mxu0 0.0
    %1602 = vmatpush1.msra.mxu0 0.0
    %1603 = vmatprep.subr.mxu0 0.0
    %1604 = vmatpush1.msra.mxu0 0.0
    %1605 = vmatprep.subr.mxu0 0.0
    %1606 = vmatpush1.msra.mxu0 0.0
    %1607 = vmatprep.subr.mxu0 0.0
    %1608 = vmatpush1.msra.mxu0 0.0
    %1609 = vmatprep.subr.mxu0 0.0
    %1610 = vmatpush1.msra.mxu0 0.0
    %1611 = vmatprep.subr.mxu0 0.0
    %1612 = vmatpush1.msra.mxu0 0.0
    %1613 = vmatprep.subr.mxu0 0.0
    %1614 = vmatpush1.msra.mxu0 0.0
    %1615 = vmatprep.subr.mxu0 0.0
    %1616 = vmatpush1.msra.mxu0 0.0
    %1617 = vmatprep.mubr.f32.mxu0 0.0
    %1618 = vmatmul.mubr.f32.gmra.mrb[0].mxu0 %v1552
    %v1619 = vpop.f32.mrb[0].mxu0
    %v1620 = vadd.f32 0.0, %v1619
    %v1621 = vpop.f32.mrb[0].mxu0
    %1622 = vdwg.mxu0
    %v1623 = vadd.f32 %v1527, %v1620
    %v1624 = vadd.f32 %v1623, %v460
    %1625 = vadd.xlane.f32.xlu0 %v1624
    %v1626 = vpop.xlane.xlu0 %1625
    %v1627 = vmul.f32 %v1624, %v1624
    %1628 = vadd.xlane.f32.xlu0 %v1627
    %v1629 = vpop.xlane.xlu0 %1628
    %v1630 = vmul.f32 %v1626, 0.03125
    %v1631 = vmul.f32 %v1629, 0.03125
    %v1632 = vmul.f32 %v1630, %v1630
    %v1633 = vsub.f32 %v1631, %v1632
    %v1634 = vsub.f32 %v1624, %v1630
    %v1635 = vadd.f32 %v1633, 1e-05
    %v1636 = vrsqrt.pop %v1635
    %v1637 = vmul.f32 %v1634, %v1636
    %v1638 = vmul.f32 %v1637, %v478
    %v1639 = vadd.f32 %v1638, %v483
    %v1640 = vmul.f32 %v1639, 0.5
    %v1641 = vmul.f32 %v1639, 0.70710677
    %v1642 = verf.f32.pop %v1641
    %v1643 = vadd.f32 %v1642, 1.0
    %v1644 = vmul.f32 %v1640, %v1643
    %s1645 = scalar_lea.vmem [#allocation11], 96
    %v1646 = vld [vmem:[%s1645] sm:$0xff]
    %v1647 = vld [vmem:[%s1645 + $0x8] sm:$0xff]
    %s1648 = scalar_lea.vmem [#allocation7], 1536
    %v1649 = vld [vmem:[%s1648] sm:$0xff]
    %v1650 = vld [vmem:[%s1648 + $0x8] sm:$0xff]
    %v1651 = vld [vmem:[%s1648 + $0x10] sm:$0xff]
    %v1652 = vld [vmem:[%s1648 + $0x18] sm:$0xff]
    %v1653 = vld [vmem:[%s1648 + $0x20] sm:$0xff]
    %v1654 = vld [vmem:[%s1648 + $0x28] sm:$0xff]
    %v1655 = vld [vmem:[%s1648 + $0x30] sm:$0xff]
    %v1656 = vld [vmem:[%s1648 + $0x38] sm:$0xff]
    %v1657 = vld [vmem:[%s1648 + $0x40] sm:$0xff]
    %v1658 = vld [vmem:[%s1648 + $0x48] sm:$0xff]
    %v1659 = vld [vmem:[%s1648 + $0x50] sm:$0xff]
    %v1660 = vld [vmem:[%s1648 + $0x58] sm:$0xff]
    %v1661 = vld [vmem:[%s1648 + $0x60] sm:$0xff]
    %v1662 = vld [vmem:[%s1648 + $0x68] sm:$0xff]
    %v1663 = vld [vmem:[%s1648 + $0x70] sm:$0xff]
    %v1664 = vld [vmem:[%s1648 + $0x78] sm:$0xff]
    %v1665 = vld [vmem:[%s1648 + $0x80] sm:$0xff]
    %v1666 = vld [vmem:[%s1648 + $0x88] sm:$0xff]
    %v1667 = vld [vmem:[%s1648 + $0x90] sm:$0xff]
    %v1668 = vld [vmem:[%s1648 + $0x98] sm:$0xff]
    %v1669 = vld [vmem:[%s1648 + $0xa0] sm:$0xff]
    %v1670 = vld [vmem:[%s1648 + $0xa8] sm:$0xff]
    %v1671 = vld [vmem:[%s1648 + $0xb0] sm:$0xff]
    %v1672 = vld [vmem:[%s1648 + $0xb8] sm:$0xff]
    %v1673 = vld [vmem:[%s1648 + $0xc0] sm:$0xff]
    %v1674 = vld [vmem:[%s1648 + $0xc8] sm:$0xff]
    %v1675 = vld [vmem:[%s1648 + $0xd0] sm:$0xff]
    %v1676 = vld [vmem:[%s1648 + $0xd8] sm:$0xff]
    %v1677 = vld [vmem:[%s1648 + $0xe0] sm:$0xff]
    %v1678 = vld [vmem:[%s1648 + $0xe8] sm:$0xff]
    %v1679 = vld [vmem:[%s1648 + $0xf0] sm:$0xff]
    %v1680 = vld [vmem:[%s1648 + $0xf8] sm:$0xff]
    %v1681 = vlaneseq
    %v1682 = vshrl.u32 %v1681, 7
    %v1683 = vsub.s32 0, %v1682
    %v1684 = vrot.slane %v1646, %v1683
    %v1685 = vlaneseq
    %v1686 = vshrl.u32 %v1685, 7
    %v1687 = vsub.s32 0, %v1686
    %v1688 = vrot.slane %v1647, %v1687
    %1689 = vmatprep.subr.mxu0 %v1650
    %1690 = vmatpush1.msra.mxu0 %v1649
    %1691 = vmatprep.subr.mxu0 %v1652
    %1692 = vmatpush1.msra.mxu0 %v1651
    %1693 = vmatprep.subr.mxu0 %v1654
    %1694 = vmatpush1.msra.mxu0 %v1653
    %1695 = vmatprep.subr.mxu0 %v1656
    %1696 = vmatpush1.msra.mxu0 %v1655
    %1697 = vmatprep.subr.mxu0 %v1658
    %1698 = vmatpush1.msra.mxu0 %v1657
    %1699 = vmatprep.subr.mxu0 %v1660
    %1700 = vmatpush1.msra.mxu0 %v1659
    %1701 = vmatprep.subr.mxu0 %v1662
    %1702 = vmatpush1.msra.mxu0 %v1661
    %1703 = vmatprep.subr.mxu0 %v1664
    %1704 = vmatpush1.msra.mxu0 %v1663
    %1705 = vmatprep.subr.mxu0 %v1666
    %1706 = vmatpush1.msra.mxu0 %v1665
    %1707 = vmatprep.subr.mxu0 %v1668
    %1708 = vmatpush1.msra.mxu0 %v1667
    %1709 = vmatprep.subr.mxu0 %v1670
    %1710 = vmatpush1.msra.mxu0 %v1669
    %1711 = vmatprep.subr.mxu0 %v1672
    %1712 = vmatpush1.msra.mxu0 %v1671
    %1713 = vmatprep.subr.mxu0 %v1674
    %1714 = vmatpush1.msra.mxu0 %v1673
    %1715 = vmatprep.subr.mxu0 %v1676
    %1716 = vmatpush1.msra.mxu0 %v1675
    %1717 = vmatprep.subr.mxu0 %v1678
    %1718 = vmatpush1.msra.mxu0 %v1677
    %1719 = vmatprep.subr.mxu0 %v1680
    %1720 = vmatpush1.msra.mxu0 %v1679
    %1721 = vmatprep.subr.mxu0 0.0
    %1722 = vmatpush1.msra.mxu0 0.0
    %1723 = vmatprep.subr.mxu0 0.0
    %1724 = vmatpush1.msra.mxu0 0.0
    %1725 = vmatprep.subr.mxu0 0.0
    %1726 = vmatpush1.msra.mxu0 0.0
    %1727 = vmatprep.subr.mxu0 0.0
    %1728 = vmatpush1.msra.mxu0 0.0
    %1729 = vmatprep.subr.mxu0 0.0
    %1730 = vmatpush1.msra.mxu0 0.0
    %1731 = vmatprep.subr.mxu0 0.0
    %1732 = vmatpush1.msra.mxu0 0.0
    %1733 = vmatprep.subr.mxu0 0.0
    %1734 = vmatpush1.msra.mxu0 0.0
    %1735 = vmatprep.subr.mxu0 0.0
    %1736 = vmatpush1.msra.mxu0 0.0
    %1737 = vmatprep.subr.mxu0 0.0
    %1738 = vmatpush1.msra.mxu0 0.0
    %1739 = vmatprep.subr.mxu0 0.0
    %1740 = vmatpush1.msra.mxu0 0.0
    %1741 = vmatprep.subr.mxu0 0.0
    %1742 = vmatpush1.msra.mxu0 0.0
    %1743 = vmatprep.subr.mxu0 0.0
    %1744 = vmatpush1.msra.mxu0 0.0
    %1745 = vmatprep.subr.mxu0 0.0
    %1746 = vmatpush1.msra.mxu0 0.0
    %1747 = vmatprep.subr.mxu0 0.0
    %1748 = vmatpush1.msra.mxu0 0.0
    %1749 = vmatprep.subr.mxu0 0.0
    %1750 = vmatpush1.msra.mxu0 0.0
    %1751 = vmatprep.subr.mxu0 0.0
    %1752 = vmatpush1.msra.mxu0 0.0
    %1753 = vmatprep.mubr.f32.mxu0 0.0
    %1754 = vmatmul.mubr.f32.gmra.mrb[0].mxu0 %v1644
    %v1755 = vpop.f32.mrb[0].mxu0
    %v1756 = vadd.f32 %v1684, %v1755
    %v1757 = vpop.f32.mrb[0].mxu0
    %v1758 = vadd.f32 %v1688, %v1757
    %1759 = vdwg.mxu0
    %1760 = vadd.xlane.f32.xlu0 %v1756
    %v1761 = vpop.xlane.xlu0 %1760
    %v1762 = vmul.f32 %v1756, %v1756
    %1763 = vadd.xlane.f32.xlu0 %v1762
    %v1764 = vpop.xlane.xlu0 %1763
    %v1765 = vmul.f32 %v1761, 0.03125
    %v1766 = vmul.f32 %v1764, 0.03125
    %v1767 = vmul.f32 %v1765, %v1765
    %v1768 = vsub.f32 %v1766, %v1767
    %v1769 = vsub.f32 %v1756, %v1765
    %v1770 = vadd.f32 %v1768, 1e-05
    %v1771 = vrsqrt.pop %v1770
    %v1772 = vmul.f32 %v1769, %v1771
    %v1773 = vlaneseq
    %v1774 = vshrl.u32 %v1773, 7
    %v1775 = vsub.s32 1, %v1774
    %v1776 = vrot.slane %v1646, %v1775
    %v1777 = vmul.f32 %v1772, %v1776
    %v1778 = vlaneseq
    %v1779 = vshrl.u32 %v1778, 7
    %v1780 = vsub.s32 2, %v1779
    %v1781 = vrot.slane %v1646, %v1780
    %v1782 = vadd.f32 %v1777, %v1781
    %v1783 = vtanh.pop %v1782
    %1784 = vmatprep.subr.mxu0 0.0
    %1785 = vmatpush1.msra.mxu0 %v370
    %1786 = vmatprep.subr.mxu0 0.0
    %1787 = vmatpush1.msra.mxu0 %v371
    %1788 = vmatprep.subr.mxu0 0.0
    %1789 = vmatpush1.msra.mxu0 %v372
    %1790 = vmatprep.subr.mxu0 0.0
    %1791 = vmatpush1.msra.mxu0 %v373
    %1792 = vmatprep.subr.mxu0 0.0
    %1793 = vmatpush1.msra.mxu0 %v374
    %1794 = vmatprep.subr.mxu0 0.0
    %1795 = vmatpush1.msra.mxu0 %v375
    %1796 = vmatprep.subr.mxu0 0.0
    %1797 = vmatpush1.msra.mxu0 %v376
    %1798 = vmatprep.subr.mxu0 0.0
    %1799 = vmatpush1.msra.mxu0 %v377
    %1800 = vmatprep.subr.mxu0 0.0
    %1801 = vmatpush1.msra.mxu0 %v378
    %1802 = vmatprep.subr.mxu0 0.0
    %1803 = vmatpush1.msra.mxu0 %v379
    %1804 = vmatprep.subr.mxu0 0.0
    %1805 = vmatpush1.msra.mxu0 %v380
    %1806 = vmatprep.subr.mxu0 0.0
    %1807 = vmatpush1.msra.mxu0 %v381
    %1808 = vmatprep.subr.mxu0 0.0
    %1809 = vmatpush1.msra.mxu0 %v382
    %1810 = vmatprep.subr.mxu0 0.0
    %1811 = vmatpush1.msra.mxu0 %v383
    %1812 = vmatprep.subr.mxu0 0.0
    %1813 = vmatpush1.msra.mxu0 %v384
    %1814 = vmatprep.subr.mxu0 0.0
    %1815 = vmatpush1.msra.mxu0 %v385
    %1816 = vmatprep.subr.mxu0 0.0
    %1817 = vmatpush1.msra.mxu0 0.0
    %1818 = vmatprep.subr.mxu0 0.0
    %1819 = vmatpush1.msra.mxu0 0.0
    %1820 = vmatprep.subr.mxu0 0.0
    %1821 = vmatpush1.msra.mxu0 0.0
    %1822 = vmatprep.subr.mxu0 0.0
    %1823 = vmatpush1.msra.mxu0 0.0
    %1824 = vmatprep.subr.mxu0 0.0
    %1825 = vmatpush1.msra.mxu0 0.0
    %1826 = vmatprep.subr.mxu0 0.0
    %1827 = vmatpush1.msra.mxu0 0.0
    %1828 = vmatprep.subr.mxu0 0.0
    %1829 = vmatpush1.msra.mxu0 0.0
    %1830 = vmatprep.subr.mxu0 0.0
    %1831 = vmatpush1.msra.mxu0 0.0
    %1832 = vmatprep.subr.mxu0 0.0
    %1833 = vmatpush1.msra.mxu0 0.0
    %1834 = vmatprep.subr.mxu0 0.0
    %1835 = vmatpush1.msra.mxu0 0.0
    %1836 = vmatprep.subr.mxu0 0.0
    %1837 = vmatpush1.msra.mxu0 0.0
    %1838 = vmatprep.subr.mxu0 0.0
    %1839 = vmatpush1.msra.mxu0 0.0
    %1840 = vmatprep.subr.mxu0 0.0
    %1841 = vmatpush1.msra.mxu0 0.0
    %1842 = vmatprep.subr.mxu0 0.0
    %1843 = vmatpush1.msra.mxu0 0.0
    %1844 = vmatprep.subr.mxu0 0.0
    %1845 = vmatpush1.msra.mxu0 0.0
    %1846 = vmatprep.subr.mxu0 0.0
    %1847 = vmatpush1.msra.mxu0 0.0
    %1848 = vmatprep.mubr.f32.mxu0 0.0
    %1849 = vmatmul.mubr.f32.gmra.mrb[0].mxu0 %v1783
    %v1850 = vpop.f32.mrb[0].mxu0
    %v1851 = vadd.f32 0.0, %v1850
    %v1852 = vpop.f32.mrb[0].mxu0
    %1853 = vdwg.mxu0
    %v1854 = vadd.f32 %v1758, %v1851
    %v1855 = vadd.f32 %v1854, %v460
    %1856 = vadd.xlane.f32.xlu0 %v1855
    %v1857 = vpop.xlane.xlu0 %1856
    %v1858 = vmul.f32 %v1855, %v1855
    %1859 = vadd.xlane.f32.xlu0 %v1858
    %v1860 = vpop.xlane.xlu0 %1859
    %v1861 = vmul.f32 %v1857, 0.03125
    %v1862 = vmul.f32 %v1860, 0.03125
    %v1863 = vmul.f32 %v1861, %v1861
    %v1864 = vsub.f32 %v1862, %v1863
    %v1865 = vsub.f32 %v1855, %v1861
    %v1866 = vadd.f32 %v1864, 1e-05
    %v1867 = vrsqrt.pop %v1866
    %v1868 = vmul.f32 %v1865, %v1867
    %v1869 = vmul.f32 %v1868, %v478
    %v1870 = vadd.f32 %v1869, %v483
    %v1871 = vmul.f32 %v1870, 0.5
    %v1872 = vmul.f32 %v1870, 0.70710677
    %v1873 = verf.f32.pop %v1872
    %v1874 = vadd.f32 %v1873, 1.0
    %v1875 = vmul.f32 %v1871, %v1874
    %s1876 = scalar_lea.vmem [#allocation11], 112
    %v1877 = vld [vmem:[%s1876] sm:$0xff]
    %v1878 = vld [vmem:[%s1876 + $0x8] sm:$0xff]
    %s1879 = scalar_lea.vmem [#allocation7], 1792
    %v1880 = vld [vmem:[%s1879] sm:$0xff]
    %v1881 = vld [vmem:[%s1879 + $0x8] sm:$0xff]
    %v1882 = vld [vmem:[%s1879 + $0x10] sm:$0xff]
    %v1883 = vld [vmem:[%s1879 + $0x18] sm:$0xff]
    %v1884 = vld [vmem:[%s1879 + $0x20] sm:$0xff]
    %v1885 = vld [vmem:[%s1879 + $0x28] sm:$0xff]
    %v1886 = vld [vmem:[%s1879 + $0x30] sm:$0xff]
    %v1887 = vld [vmem:[%s1879 + $0x38] sm:$0xff]
    %v1888 = vld [vmem:[%s1879 + $0x40] sm:$0xff]
    %v1889 = vld [vmem:[%s1879 + $0x48] sm:$0xff]
    %v1890 = vld [vmem:[%s1879 + $0x50] sm:$0xff]
    %v1891 = vld [vmem:[%s1879 + $0x58] sm:$0xff]
    %v1892 = vld [vmem:[%s1879 + $0x60] sm:$0xff]
    %v1893 = vld [vmem:[%s1879 + $0x68] sm:$0xff]
    %v1894 = vld [vmem:[%s1879 + $0x70] sm:$0xff]
    %v1895 = vld [vmem:[%s1879 + $0x78] sm:$0xff]
    %v1896 = vld [vmem:[%s1879 + $0x80] sm:$0xff]
    %v1897 = vld [vmem:[%s1879 + $0x88] sm:$0xff]
    %v1898 = vld [vmem:[%s1879 + $0x90] sm:$0xff]
    %v1899 = vld [vmem:[%s1879 + $0x98] sm:$0xff]
    %v1900 = vld [vmem:[%s1879 + $0xa0] sm:$0xff]
    %v1901 = vld [vmem:[%s1879 + $0xa8] sm:$0xff]
    %v1902 = vld [vmem:[%s1879 + $0xb0] sm:$0xff]
    %v1903 = vld [vmem:[%s1879 + $0xb8] sm:$0xff]
    %v1904 = vld [vmem:[%s1879 + $0xc0] sm:$0xff]
    %v1905 = vld [vmem:[%s1879 + $0xc8] sm:$0xff]
    %v1906 = vld [vmem:[%s1879 + $0xd0] sm:$0xff]
    %v1907 = vld [vmem:[%s1879 + $0xd8] sm:$0xff]
    %v1908 = vld [vmem:[%s1879 + $0xe0] sm:$0xff]
    %v1909 = vld [vmem:[%s1879 + $0xe8] sm:$0xff]
    %v1910 = vld [vmem:[%s1879 + $0xf0] sm:$0xff]
    %v1911 = vld [vmem:[%s1879 + $0xf8] sm:$0xff]
    %v1912 = vlaneseq
    %v1913 = vshrl.u32 %v1912, 7
    %v1914 = vsub.s32 0, %v1913
    %v1915 = vrot.slane %v1877, %v1914
    %v1916 = vlaneseq
    %v1917 = vshrl.u32 %v1916, 7
    %v1918 = vsub.s32 0, %v1917
    %v1919 = vrot.slane %v1878, %v1918
    %1920 = vmatprep.subr.mxu0 %v1881
    %1921 = vmatpush1.msra.mxu0 %v1880
    %1922 = vmatprep.subr.mxu0 %v1883
    %1923 = vmatpush1.msra.mxu0 %v1882
    %1924 = vmatprep.subr.mxu0 %v1885
    %1925 = vmatpush1.msra.mxu0 %v1884
    %1926 = vmatprep.subr.mxu0 %v1887
    %1927 = vmatpush1.msra.mxu0 %v1886
    %1928 = vmatprep.subr.mxu0 %v1889
    %1929 = vmatpush1.msra.mxu0 %v1888
    %1930 = vmatprep.subr.mxu0 %v1891
    %1931 = vmatpush1.msra.mxu0 %v1890
    %1932 = vmatprep.subr.mxu0 %v1893
    %1933 = vmatpush1.msra.mxu0 %v1892
    %1934 = vmatprep.subr.mxu0 %v1895
    %1935 = vmatpush1.msra.mxu0 %v1894
    %1936 = vmatprep.subr.mxu0 %v1897
    %1937 = vmatpush1.msra.mxu0 %v1896
    %1938 = vmatprep.subr.mxu0 %v1899
    %1939 = vmatpush1.msra.mxu0 %v1898
    %1940 = vmatprep.subr.mxu0 %v1901
    %1941 = vmatpush1.msra.mxu0 %v1900
    %1942 = vmatprep.subr.mxu0 %v1903
    %1943 = vmatpush1.msra.mxu0 %v1902
    %1944 = vmatprep.subr.mxu0 %v1905
    %1945 = vmatpush1.msra.mxu0 %v1904
    %1946 = vmatprep.subr.mxu0 %v1907
    %1947 = vmatpush1.msra.mxu0 %v1906
    %1948 = vmatprep.subr.mxu0 %v1909
    %1949 = vmatpush1.msra.mxu0 %v1908
    %1950 = vmatprep.subr.mxu0 %v1911
    %1951 = vmatpush1.msra.mxu0 %v1910
    %1952 = vmatprep.subr.mxu0 0.0
    %1953 = vmatpush1.msra.mxu0 0.0
    %1954 = vmatprep.subr.mxu0 0.0
    %1955 = vmatpush1.msra.mxu0 0.0
    %1956 = vmatprep.subr.mxu0 0.0
    %1957 = vmatpush1.msra.mxu0 0.0
    %1958 = vmatprep.subr.mxu0 0.0
    %1959 = vmatpush1.msra.mxu0 0.0
    %1960 = vmatprep.subr.mxu0 0.0
    %1961 = vmatpush1.msra.mxu0 0.0
    %1962 = vmatprep.subr.mxu0 0.0
    %1963 = vmatpush1.msra.mxu0 0.0
    %1964 = vmatprep.subr.mxu0 0.0
    %1965 = vmatpush1.msra.mxu0 0.0
    %1966 = vmatprep.subr.mxu0 0.0
    %1967 = vmatpush1.msra.mxu0 0.0
    %1968 = vmatprep.subr.mxu0 0.0
    %1969 = vmatpush1.msra.mxu0 0.0
    %1970 = vmatprep.subr.mxu0 0.0
    %1971 = vmatpush1.msra.mxu0 0.0
    %1972 = vmatprep.subr.mxu0 0.0
    %1973 = vmatpush1.msra.mxu0 0.0
    %1974 = vmatprep.subr.mxu0 0.0
    %1975 = vmatpush1.msra.mxu0 0.0
    %1976 = vmatprep.subr.mxu0 0.0
    %1977 = vmatpush1.msra.mxu0 0.0
    %1978 = vmatprep.subr.mxu0 0.0
    %1979 = vmatpush1.msra.mxu0 0.0
    %1980 = vmatprep.subr.mxu0 0.0
    %1981 = vmatpush1.msra.mxu0 0.0
    %1982 = vmatprep.subr.mxu0 0.0
    %1983 = vmatpush1.msra.mxu0 0.0
    %1984 = vmatprep.mubr.f32.mxu0 0.0
    %1985 = vmatmul.mubr.f32.gmra.mrb[0].mxu0 %v1875
    %v1986 = vpop.f32.mrb[0].mxu0
    %v1987 = vadd.f32 %v1915, %v1986
    %v1988 = vpop.f32.mrb[0].mxu0
    %v1989 = vadd.f32 %v1919, %v1988
    %1990 = vdwg.mxu0
    %1991 = vadd.xlane.f32.xlu0 %v1987
    %v1992 = vpop.xlane.xlu0 %1991
    %v1993 = vmul.f32 %v1987, %v1987
    %1994 = vadd.xlane.f32.xlu0 %v1993
    %v1995 = vpop.xlane.xlu0 %1994
    %v1996 = vmul.f32 %v1992, 0.03125
    %v1997 = vmul.f32 %v1995, 0.03125
    %v1998 = vmul.f32 %v1996, %v1996
    %v1999 = vsub.f32 %v1997, %v1998
    %v2000 = vsub.f32 %v1987, %v1996
    %v2001 = vadd.f32 %v1999, 1e-05
    %v2002 = vrsqrt.pop %v2001
    %v2003 = vmul.f32 %v2000, %v2002
    %v2004 = vlaneseq
    %v2005 = vshrl.u32 %v2004, 7
    %v2006 = vsub.s32 1, %v2005
    %v2007 = vrot.slane %v1877, %v2006
    %v2008 = vmul.f32 %v2003, %v2007
    %v2009 = vlaneseq
    %v2010 = vshrl.u32 %v2009, 7
    %v2011 = vsub.s32 2, %v2010
    %v2012 = vrot.slane %v1877, %v2011
    %v2013 = vadd.f32 %v2008, %v2012
    %v2014 = vtanh.pop %v2013
    %2015 = vmatprep.subr.mxu0 0.0
    %2016 = vmatpush1.msra.mxu0 %v370
    %2017 = vmatprep.subr.mxu0 0.0
    %2018 = vmatpush1.msra.mxu0 %v371
    %2019 = vmatprep.subr.mxu0 0.0
    %2020 = vmatpush1.msra.mxu0 %v372
    %2021 = vmatprep.subr.mxu0 0.0
    %2022 = vmatpush1.msra.mxu0 %v373
    %2023 = vmatprep.subr.mxu0 0.0
    %2024 = vmatpush1.msra.mxu0 %v374
    %2025 = vmatprep.subr.mxu0 0.0
    %2026 = vmatpush1.msra.mxu0 %v375
    %2027 = vmatprep.subr.mxu0 0.0
    %2028 = vmatpush1.msra.mxu0 %v376
    %2029 = vmatprep.subr.mxu0 0.0
    %2030 = vmatpush1.msra.mxu0 %v377
    %2031 = vmatprep.subr.mxu0 0.0
    %2032 = vmatpush1.msra.mxu0 %v378
    %2033 = vmatprep.subr.mxu0 0.0
    %2034 = vmatpush1.msra.mxu0 %v379
    %2035 = vmatprep.subr.mxu0 0.0
    %2036 = vmatpush1.msra.mxu0 %v380
    %2037 = vmatprep.subr.mxu0 0.0
    %2038 = vmatpush1.msra.mxu0 %v381
    %2039 = vmatprep.subr.mxu0 0.0
    %2040 = vmatpush1.msra.mxu0 %v382
    %2041 = vmatprep.subr.mxu0 0.0
    %2042 = vmatpush1.msra.mxu0 %v383
    %2043 = vmatprep.subr.mxu0 0.0
    %2044 = vmatpush1.msra.mxu0 %v384
    %2045 = vmatprep.subr.mxu0 0.0
    %2046 = vmatpush1.msra.mxu0 %v385
    %2047 = vmatprep.subr.mxu0 0.0
    %2048 = vmatpush1.msra.mxu0 0.0
    %2049 = vmatprep.subr.mxu0 0.0
    %2050 = vmatpush1.msra.mxu0 0.0
    %2051 = vmatprep.subr.mxu0 0.0
    %2052 = vmatpush1.msra.mxu0 0.0
    %2053 = vmatprep.subr.mxu0 0.0
    %2054 = vmatpush1.msra.mxu0 0.0
    %2055 = vmatprep.subr.mxu0 0.0
    %2056 = vmatpush1.msra.mxu0 0.0
    %2057 = vmatprep.subr.mxu0 0.0
    %2058 = vmatpush1.msra.mxu0 0.0
    %2059 = vmatprep.subr.mxu0 0.0
    %2060 = vmatpush1.msra.mxu0 0.0
    %2061 = vmatprep.subr.mxu0 0.0
    %2062 = vmatpush1.msra.mxu0 0.0
    %2063 = vmatprep.subr.mxu0 0.0
    %2064 = vmatpush1.msra.mxu0 0.0
    %2065 = vmatprep.subr.mxu0 0.0
    %2066 = vmatpush1.msra.mxu0 0.0
    %2067 = vmatprep.subr.mxu0 0.0
    %2068 = vmatpush1.msra.mxu0 0.0
    %2069 = vmatprep.subr.mxu0 0.0
    %2070 = vmatpush1.msra.mxu0 0.0
    %2071 = vmatprep.subr.mxu0 0.0
    %2072 = vmatpush1.msra.mxu0 0.0
    %2073 = vmatprep.subr.mxu0 0.0
    %2074 = vmatpush1.msra.mxu0 0.0
    %2075 = vmatprep.subr.mxu0 0.0
    %2076 = vmatpush1.msra.mxu0 0.0
    %2077 = vmatprep.subr.mxu0 0.0
    %2078 = vmatpush1.msra.mxu0 0.0
    %2079 = vmatprep.mubr.f32.mxu0 0.0
    %2080 = vmatmul.mubr.f32.gmra.mrb[0].mxu0 %v2014
    %v2081 = vpop.f32.mrb[0].mxu0
    %v2082 = vadd.f32 0.0, %v2081
    %v2083 = vpop.f32.mrb[0].mxu0
    %2084 = vdwg.mxu0
    %v2085 = vadd.f32 %v1989, %v2082
    %v2086 = vadd.f32 %v2085, %v460
    %2087 = vadd.xlane.f32.xlu0 %v2086
    %v2088 = vpop.xlane.xlu0 %2087
    %v2089 = vmul.f32 %v2086, %v2086
    %2090 = vadd.xlane.f32.xlu0 %v2089
    %v2091 = vpop.xlane.xlu0 %2090
    %v2092 = vmul.f32 %v2088, 0.03125
    %v2093 = vmul.f32 %v2091, 0.03125
    %v2094 = vmul.f32 %v2092, %v2092
    %v2095 = vsub.f32 %v2093, %v2094
    %v2096 = vsub.f32 %v2086, %v2092
    %v2097 = vadd.f32 %v2095, 1e-05
    %v2098 = vrsqrt.pop %v2097
    %v2099 = vmul.f32 %v2096, %v2098
    %v2100 = vmul.f32 %v2099, %v478
    %v2101 = vadd.f32 %v2100, %v483
    %v2102 = vmul.f32 %v2101, 0.5
    %v2103 = vmul.f32 %v2101, 0.70710677
    %v2104 = verf.f32.pop %v2103
    %v2105 = vadd.f32 %v2104, 1.0
    %v2106 = vmul.f32 %v2102, %v2105
    %v2107 = vld [vmem:[#allocation10] sm:$0xff]
    %v2108 = vld [vmem:[#allocation10 + $0x8] sm:$0xff]
    %v2109 = vld [vmem:[#allocation10 + $0x10] sm:$0xff]
    %v2110 = vld [vmem:[#allocation10 + $0x18] sm:$0xff]
    %v2111 = vld [vmem:[#allocation10 + $0x20] sm:$0xff]
    %v2112 = vld [vmem:[#allocation10 + $0x28] sm:$0xff]
    %v2113 = vld [vmem:[#allocation10 + $0x30] sm:$0xff]
    %v2114 = vld [vmem:[#allocation10 + $0x38] sm:$0xff]
    %v2115 = vld [vmem:[#allocation10 + $0x40] sm:$0xff]
    %v2116 = vld [vmem:[#allocation10 + $0x48] sm:$0xff]
    %v2117 = vld [vmem:[#allocation10 + $0x50] sm:$0xff]
    %v2118 = vld [vmem:[#allocation10 + $0x58] sm:$0xff]
    %v2119 = vld [vmem:[#allocation10 + $0x60] sm:$0xff]
    %v2120 = vld [vmem:[#allocation10 + $0x68] sm:$0xff]
    %v2121 = vld [vmem:[#allocation10 + $0x70] sm:$0xff]
    %v2122 = vld [vmem:[#allocation10 + $0x78] sm:$0xff]
    %v2123 = vlaneseq
    %v2124 = vshrl.u32 %v2123, 7
    %v2125 = vsub.s32 0, %v2124
    %v2126 = vrot.slane %v113, %v2125
    %2127 = vmatprep.subr.mxu0 0.0
    %2128 = vmatpush1.msra.mxu0 %v2107
    %2129 = vmatprep.subr.mxu0 0.0
    %2130 = vmatpush1.msra.mxu0 %v2108
    %2131 = vmatprep.subr.mxu0 0.0
    %2132 = vmatpush1.msra.mxu0 %v2109
    %2133 = vmatprep.subr.mxu0 0.0
    %2134 = vmatpush1.msra.mxu0 %v2110
    %2135 = vmatprep.subr.mxu0 0.0
    %2136 = vmatpush1.msra.mxu0 %v2111
    %2137 = vmatprep.subr.mxu0 0.0
    %2138 = vmatpush1.msra.mxu0 %v2112
    %2139 = vmatprep.subr.mxu0 0.0
    %2140 = vmatpush1.msra.mxu0 %v2113
    %2141 = vmatprep.subr.mxu0 0.0
    %2142 = vmatpush1.msra.mxu0 %v2114
    %2143 = vmatprep.subr.mxu0 0.0
    %2144 = vmatpush1.msra.mxu0 %v2115
    %2145 = vmatprep.subr.mxu0 0.0
    %2146 = vmatpush1.msra.mxu0 %v2116
    %2147 = vmatprep.subr.mxu0 0.0
    %2148 = vmatpush1.msra.mxu0 %v2117
    %2149 = vmatprep.subr.mxu0 0.0
    %2150 = vmatpush1.msra.mxu0 %v2118
    %2151 = vmatprep.subr.mxu0 0.0
    %2152 = vmatpush1.msra.mxu0 %v2119
    %2153 = vmatprep.subr.mxu0 0.0
    %2154 = vmatpush1.msra.mxu0 %v2120
    %2155 = vmatprep.subr.mxu0 0.0
    %2156 = vmatpush1.msra.mxu0 %v2121
    %2157 = vmatprep.subr.mxu0 0.0
    %2158 = vmatpush1.msra.mxu0 %v2122
    %2159 = vmatprep.subr.mxu0 0.0
    %2160 = vmatpush1.msra.mxu0 0.0
    %2161 = vmatprep.subr.mxu0 0.0
    %2162 = vmatpush1.msra.mxu0 0.0
    %2163 = vmatprep.subr.mxu0 0.0
    %2164 = vmatpush1.msra.mxu0 0.0
    %2165 = vmatprep.subr.mxu0 0.0
    %2166 = vmatpush1.msra.mxu0 0.0
    %2167 = vmatprep.subr.mxu0 0.0
    %2168 = vmatpush1.msra.mxu0 0.0
    %2169 = vmatprep.subr.mxu0 0.0
    %2170 = vmatpush1.msra.mxu0 0.0
    %2171 = vmatprep.subr.mxu0 0.0
    %2172 = vmatpush1.msra.mxu0 0.0
    %2173 = vmatprep.subr.mxu0 0.0
    %2174 = vmatpush1.msra.mxu0 0.0
    %2175 = vmatprep.subr.mxu0 0.0
    %2176 = vmatpush1.msra.mxu0 0.0
    %2177 = vmatprep.subr.mxu0 0.0
    %2178 = vmatpush1.msra.mxu0 0.0
    %2179 = vmatprep.subr.mxu0 0.0
    %2180 = vmatpush1.msra.mxu0 0.0
    %2181 = vmatprep.subr.mxu0 0.0
    %2182 = vmatpush1.msra.mxu0 0.0
    %2183 = vmatprep.subr.mxu0 0.0
    %2184 = vmatpush1.msra.mxu0 0.0
    %2185 = vmatprep.subr.mxu0 0.0
    %2186 = vmatpush1.msra.mxu0 0.0
    %2187 = vmatprep.subr.mxu0 0.0
    %2188 = vmatpush1.msra.mxu0 0.0
    %2189 = vmatprep.subr.mxu0 0.0
    %2190 = vmatpush1.msra.mxu0 0.0
    %2191 = vmatprep.mubr.f32.mxu0 0.0
    %2192 = vmatmul.mubr.f32.gmra.mrb[0].mxu0 %v2106
    %v2193 = vpop.f32.mrb[0].mxu0
    %v2194 = vadd.f32 %v2126, %v2193
    %v2195 = vpop.f32.mrb[0].mxu0
    %2196 = vdwg.mxu0
    %v2197 = vmul.f32 %v2194, 29.034441
    %2198 = vst [vmem:[#allocation13] sm:$0xff] %v2197
    // Predicated region
    $region54: #{tpu_custom_call.1} parent=1 // pred_check
      _
    $region55: #{tpu_custom_call.1} parent=1 // pred_check_branch
      %2200 = sbr.rel (0) target = $region57
    $region56: #{tpu_custom_call.1} parent=1 // pred_region
      %s2202 = ssub.s32 128, 128
      %2203 = vsyncadd [#allocation4], %s2202
      %s2205 = sshll.u32 [#allocation13], 4
      %s2206 = int_to_ptr.vmem [resolvable:$true] %s2205
      %2208 = dma.vmem_to_hbm [thread:$0]  %s2206, 128, %s7, [#allocation4]
    $region57: #{tpu_custom_call.1} parent=1 // pred_fallthru
      _
    // Predicated region
    $region58: #{tpu_custom_call.1} parent=1 // pred_check
      _
    $region59: #{tpu_custom_call.1} parent=1 // pred_check_branch
      %2210 = sbr.rel (0) target = $region61
    $region60: #{tpu_custom_call.1} parent=1 // pred_region
      %2211 = dma.done [#allocation4], 128
    $region61: #{tpu_custom_call.1} parent=1 // pred_fallthru
      _
    %2212 = vsyncpa [#allocation3], 1
    %2213 = vsyncpa [#allocation6], 1
    %2214 = vsyncpa [#allocation9], 1
    %2215 = vsyncpa [#allocation12], 1
    %2216 = vsyncpa [#allocation4], 1

</llo_original>
